<compile_context>
chip_gen: v5e
topology: v5e:2x2
jax: 0.10.0
libtpu: 0.0.40
codegen_flags: <defaults>
</compile_context>

<pallas_src>
import functools
import math

import jax
import jax.numpy as jnp
from jax.experimental import pallas as pl
from jax.experimental.pallas import tpu as pltpu

LANE = 128            # all feature dims are zero-padded to a multiple of this
SUBLANE = 8           # f32 sublane count: batch tiles are multiples of this
MXU_BATCH_TILE = 256  # batch tile for large B (2x256x256 MXU on v6e/v7x; fine on v5e)
OUT_PAD = 128         # classifier width padded to one lane group
NEG_LOGIT = -1e30     # bias for padded logit lanes -> exp() underflows to exactly 0


def _round_up(n, m):
    return ((n + m - 1) // m) * m


def _pad2d(a, shape):
    out = jnp.zeros(shape, a.dtype)
    return out.at[:a.shape[0], :a.shape[1]].set(a)


# ----------------------------------------------------------------------------
# Fused kernel: GRU stack (wavefront over layers) + MLP head + log_softmax
# ----------------------------------------------------------------------------
def fused_kernel(T, Bt, Hp, gru_layers, num_hiddens, *refs):
    it = iter(refs)
    x_ref = next(it)            # (T, Bt, Dp)    bf16  time-major particle tile
    hlf_ref = next(it)          # (Bt, Dhlf_p)   bf16
    gru = [(next(it), next(it), next(it), next(it)) for _ in range(gru_layers)]
    #   per layer: w_ih (Din_p, 3Hp) bf16, w_hh (Hp, 3Hp) bf16,
    #              b_gi (1, 3Hp) f32 [b_ih_r+b_hh_r | b_ih_z+b_hh_z | b_ih_n],
    #              b_hn (1, Hp)  f32 [b_hh_n]
    w_hlf_ref = next(it)        # (Dhlf_p, N0)   bf16   merge weight, hlf half
    w_gru_ref = next(it)        # (Hp, N0)       bf16   merge weight, gru half
    b_merge_ref = next(it)      # (1, N0)        f32
    hidden = [(next(it), next(it)) for _ in range(num_hiddens)]
    w_out_ref = next(it)        # (Nlast, OUT_PAD) bf16
    b_out_ref = next(it)        # (1, OUT_PAD)   f32 (padded lanes = NEG_LOGIT)
    out_ref = next(it)          # (Bt, OUT_PAD)  f32

    H2, H3 = 2 * Hp, 3 * Hp

    # hoisted out of the time loop: broadcast of the n-gate recurrent bias
    bhn = [jnp.broadcast_to(g[3][...], (Bt, Hp)) for g in gru]

    def gru_step(l, inp_bf, h):
        wih_ref, whh_ref, bgi_ref, _ = gru[l]
        # x-projection has no dependence on h -> scheduler can overlap it with the
        # previous step's serial h-chain (the time loop is statically unrolled).
        gi = jnp.dot(inp_bf, wih_ref[...],
                     preferred_element_type=jnp.float32) + bgi_ref[...]
        gh = jnp.dot(h.astype(jnp.bfloat16), whh_ref[...],
                     preferred_element_type=jnp.float32)
        rz = jax.nn.sigmoid(gi[:, :H2] + gh[:, :H2])     # fused r/z gates
        r, z = rz[:, :Hp], rz[:, Hp:H2]
        n = jnp.tanh(gi[:, H2:H3] + r * (gh[:, H2:H3] + bhn[l]))
        return (1.0 - z) * n + z * h

    # Wavefront over the layer stack: layer l consumes h^{l-1}_t immediately, so
    # the inter-layer hidden sequence never touches VMEM scratch.
    h = [jnp.zeros((Bt, Hp), jnp.float32) for _ in range(gru_layers)]
    for t in range(T):                                    # static unroll (T small)
        inp = x_ref[t]                                    # (Bt, Dp) bf16
        for l in range(gru_layers):
            h[l] = gru_step(l, inp, h[l])
            inp = h[l].astype(jnp.bfloat16)               # dropout_g: identity (inference)

    # ---- MLP head: concat(hlf, h_fin) folded into two matmuls on split weights ----
    act = (jnp.dot(hlf_ref[...], w_hlf_ref[...], preferred_element_type=jnp.float32)
           + jnp.dot(h[-1].astype(jnp.bfloat16), w_gru_ref[...],
                     preferred_element_type=jnp.float32)
           + b_merge_ref[...])
    # F.dropout(..., training=False) -> identity
    for w_ref, b_ref in hidden:
        act = jnp.maximum(
            jnp.dot(act.astype(jnp.bfloat16), w_ref[...],
                    preferred_element_type=jnp.float32) + b_ref[...], 0.0)
    logits = jnp.dot(act.astype(jnp.bfloat16), w_out_ref[...],
                     preferred_element_type=jnp.float32) + b_out_ref[...]
    # padded logit lanes sit at NEG_LOGIT -> exp() underflows to 0, so the
    # log_softmax over the two real classes is unchanged.
    m = jnp.max(logits, axis=1, keepdims=True)
    lse = m + jnp.log(jnp.sum(jnp.exp(logits - m), axis=1, keepdims=True))
    out_ref[...] = logits - lse


# ----------------------------------------------------------------------------
# Parameter init (PyTorch-style uniform bounds, logical/unpadded layout)
# ----------------------------------------------------------------------------
def init_torch_params(key, cfg):
    p = {}
    H = cfg["gru_size"]

    def u(k, shape, bound):
        return jax.random.uniform(k, shape, jnp.float32, -bound, bound)

    bg = 1.0 / math.sqrt(H)
    for l in range(cfg["gru_layers"]):
        din = cfg["rnn_input"] if l == 0 else H
        key, k1, k2, k3, k4 = jax.random.split(key, 5)
        p[f"w_ih_l{l}"] = u(k1, (3 * H, din), bg)        # PyTorch layout (3H, in)
        p[f"w_hh_l{l}"] = u(k2, (3 * H, H), bg)
        p[f"b_ih_l{l}"] = u(k3, (3 * H,), bg)
        p[f"b_hh_l{l}"] = u(k4, (3 * H,), bg)

    nodes = [cfg["initial_node"]]
    for i in range(cfg["num_hiddens"]):
        nodes.append(int(nodes[i] / 2))

    dmerge = cfg["dnn_input"] + H
    key, k1, k2 = jax.random.split(key, 3)
    b = 1.0 / math.sqrt(dmerge)
    p["merge_w"] = u(k1, (nodes[0], dmerge), b)          # (out, in)
    p["merge_b"] = u(k2, (nodes[0],), b)
    for i in range(cfg["num_hiddens"]):
        key, k1, k2 = jax.random.split(key, 3)
        b = 1.0 / math.sqrt(nodes[i])
        p[f"h{i}_w"] = u(k1, (nodes[i + 1], nodes[i]), b)
        p[f"h{i}_b"] = u(k2, (nodes[i + 1],), b)
    key, k1, k2 = jax.random.split(key, 3)
    b = 1.0 / math.sqrt(nodes[-1])
    p["out_w"] = u(k1, (2, nodes[-1]), b)
    p["out_b"] = u(k2, (2,), b)
    return p


# ----------------------------------------------------------------------------
# Pack parameters into kernel layout: transpose, lane-pad with zeros, fold the
# recurrent r/z biases into the input-projection bias, cast weights to bf16.
# ----------------------------------------------------------------------------
def pack_params(p, cfg):
    H = cfg["gru_size"]
    Hp = _round_up(H, LANE)
    packed = {}

    for l in range(cfg["gru_layers"]):
        din = cfg["rnn_input"] if l == 0 else H
        dinp = _round_up(din, LANE)
        w_ih, w_hh = p[f"w_ih_l{l}"], p[f"w_hh_l{l}"]
        b_ih, b_hh = p[f"b_ih_l{l}"], p[f"b_hh_l{l}"]

        def gate_pack(w, in_pad):
            blocks = [_pad2d(w[g * H:(g + 1) * H, :].T, (in_pad, Hp)) for g in range(3)]
            return jnp.concatenate(blocks, axis=1)               # (in_pad, 3Hp)

        packed[f"w_ih_{l}"] = gate_pack(w_ih, dinp).astype(jnp.bfloat16)
        packed[f"w_hh_{l}"] = gate_pack(w_hh, Hp).astype(jnp.bfloat16)

        bgi = []
        for g in range(3):
            bg_ = b_ih[g * H:(g + 1) * H]
            if g < 2:                                            # r,z: fold b_hh in
                bg_ = bg_ + b_hh[g * H:(g + 1) * H]
            bgi.append(_pad2d(bg_.reshape(1, H), (1, Hp)))
        packed[f"b_gi_{l}"] = jnp.concatenate(bgi, axis=1)       # (1, 3Hp) f32
        packed[f"b_hn_{l}"] = _pad2d(b_hh[2 * H:3 * H].reshape(1, H), (1, Hp))

    nodes = [cfg["initial_node"]]
    for i in range(cfg["num_hiddens"]):
        nodes.append(int(nodes[i] / 2))
    n_pad = [_round_up(n, LANE) for n in nodes]
    dhlf = cfg["dnn_input"]
    dhlf_p = _round_up(dhlf, LANE)

    mw = p["merge_w"]                                            # (n0, dhlf + H)
    packed["w_hlf"] = _pad2d(mw[:, :dhlf].T, (dhlf_p, n_pad[0])).astype(jnp.bfloat16)
    packed["w_gru"] = _pad2d(mw[:, dhlf:].T, (Hp, n_pad[0])).astype(jnp.bfloat16)
    packed["b_merge"] = _pad2d(p["merge_b"].reshape(1, -1), (1, n_pad[0]))

    for i in range(cfg["num_hiddens"]):
        packed[f"w_h{i}"] = _pad2d(p[f"h{i}_w"].T,
                                   (n_pad[i], n_pad[i + 1])).astype(jnp.bfloat16)
        packed[f"b_h{i}"] = _pad2d(p[f"h{i}_b"].reshape(1, -1), (1, n_pad[i + 1]))

    # classifier padded to OUT_PAD lanes; padded lanes get a huge negative bias so
    # they vanish under softmax while keeping the output store lane-dense.
    packed["w_out"] = _pad2d(p["out_w"].T, (n_pad[-1], OUT_PAD)).astype(jnp.bfloat16)
    b_out = jnp.full((1, OUT_PAD), NEG_LOGIT, jnp.float32)
    packed["b_out"] = b_out.at[0, :2].set(p["out_b"])
    return packed


# ----------------------------------------------------------------------------
# Forward pass wrapper: pad/tile inputs, one gridded pallas_call, slice result
# ----------------------------------------------------------------------------
def inclusive_network_forward(packed, cfg, particles, hlf):
    B, T, rnn_in = particles.shape
    L, nh = cfg["gru_layers"], cfg["num_hiddens"]
    Hp = _round_up(cfg["gru_size"], LANE)
    Dp = _round_up(rnn_in, LANE)
    Dhlf_p = _round_up(hlf.shape[1], LANE)

    # batch tiling: MXU-friendly tiles when B is large, one sublane-padded tile
    # otherwise. Grid over tiles => DMA/compute pipelining + v7x megacore sharding.
    Bt = min(MXU_BATCH_TILE, _round_up(B, SUBLANE))
    Bp = _round_up(B, Bt)
    grid = (Bp // Bt,)

    # time-major (T, Bp, Dp): every batch tile is a contiguous block at each t.
    x = jnp.transpose(particles.astype(jnp.float32), (1, 0, 2))
    x = jnp.pad(x, ((0, 0), (0, Bp - B), (0, Dp - rnn_in))).astype(jnp.bfloat16)
    hlf_p = jnp.pad(hlf.astype(jnp.float32),
                    ((0, Bp - B), (0, Dhlf_p - hlf.shape[1]))).astype(jnp.bfloat16)

    def resident(arr):
        # constant index_map -> block fetched once, stays VMEM-resident across grid
        return pl.BlockSpec(arr.shape, lambda i, _nd=arr.ndim: (0,) * _nd)

    args = [x, hlf_p]
    in_specs = [pl.BlockSpec((T, Bt, Dp), lambda i: (0, i, 0)),
                pl.BlockSpec((Bt, Dhlf_p), lambda i: (i, 0))]
    for l in range(L):
        for name in (f"w_ih_{l}", f"w_hh_{l}", f"b_gi_{l}", f"b_hn_{l}"):
            args.append(packed[name])
            in_specs.append(resident(packed[name]))
    for name in ("w_hlf", "w_gru", "b_merge"):
        args.append(packed[name])
        in_specs.append(resident(packed[name]))
    for i in range(nh):
        for name in (f"w_h{i}", f"b_h{i}"):
            args.append(packed[name])
            in_specs.append(resident(packed[name]))
    for name in ("w_out", "b_out"):
        args.append(packed[name])
        in_specs.append(resident(packed[name]))

    kernel = functools.partial(fused_kernel, T, Bt, Hp, L, nh)
    out = pl.pallas_call(
        kernel,
        grid=grid,
        out_shape=jax.ShapeDtypeStruct((Bp, OUT_PAD), jnp.float32),
        in_specs=in_specs,
        out_specs=pl.BlockSpec((Bt, OUT_PAD), lambda i: (i, 0)),
        compiler_params=pltpu.CompilerParams(
            dimension_semantics=("parallel",),       # shard batch tiles across TCs (v7x)
            vmem_limit_bytes=64 * 1024 * 1024,       # explicit; per-tile use is ~few MiB
        ),
    )(*args)
    return out[:B, :2]


# ----------------------------------------------------------------------------
# Pure-JAX f32 reference (mirrors the PyTorch module at inference)
# ----------------------------------------------------------------------------
def reference_forward(p, cfg, particles, hlf):
    H, L = cfg["gru_size"], cfg["gru_layers"]
    B, T, _ = particles.shape
    x = particles.astype(jnp.float32)
    h = jnp.zeros((B, H), jnp.float32)
    for l in range(L):
        w_ih, w_hh = p[f"w_ih_l{l}"], p[f"w_hh_l{l}"]
        b_ih, b_hh = p[f"b_ih_l{l}"], p[f"b_hh_l{l}"]
        h = jnp.zeros((B, H), jnp.float32)
        outs = []
        for t in range(T):
            gi = x[:, t, :] @ w_ih.T + b_ih
            gh = h @ w_hh.T + b_hh
            r = jax.nn.sigmoid(gi[:, :H] + gh[:, :H])
            z = jax.nn.sigmoid(gi[:, H:2 * H] + gh[:, H:2 * H])
            n = jnp.tanh(gi[:, 2 * H:] + r * gh[:, 2 * H:])
            h = (1.0 - z) * n + z * h
            outs.append(h)
        x = jnp.stack(outs, axis=1)
    a = jnp.concatenate([hlf.astype(jnp.float32), h], axis=1) @ p["merge_w"].T + p["merge_b"]
    for i in range(cfg["num_hiddens"]):
        a = jax.nn.relu(a @ p[f"h{i}_w"].T + p[f"h{i}_b"])
    logits = a @ p["out_w"].T + p["out_b"]
    return jax.nn.log_softmax(logits, axis=1)


if __name__ == "__main__":
    cfg = dict(num_hiddens=2, initial_node=500, gru_layers=2, gru_size=50,
               rnn_input=6, dnn_input=21)

    key = jax.random.PRNGKey(0)
    kp, kx, kh = jax.random.split(key, 3)
    torch_params = init_torch_params(kp, cfg)
    packed = pack_params(torch_params, cfg)

    B, T = 2, 8
    particles = jax.random.normal(kx, (B, T, cfg["rnn_input"]), jnp.float32)
    hlf = jax.random.normal(kh, (B, cfg["dnn_input"]), jnp.float32)

    fwd = jax.jit(lambda pk, p_, h_: inclusive_network_forward(pk, cfg, p_, h_))
    out = jax.block_until_ready(fwd(packed, particles, hlf))

    assert out.shape == (B, 2), out.shape
    assert bool(jnp.all(jnp.isfinite(out)))
    # log_softmax rows must exponentiate-sum to 1
    assert bool(jnp.all(jnp.abs(jnp.sum(jnp.exp(out), axis=1) - 1.0) < 1e-4))
    # agreement with the f32 reference (loose tolerance: bf16 MXU operands)
    ref = reference_forward(torch_params, cfg, particles, hlf)
    max_err = float(jnp.max(jnp.abs(out - ref)))
    assert max_err < 1e-1, max_err
    print("KERNEL_OK")
</pallas_src>

<mosaic_0001>
module attributes {stable_mosaic.version = 11 : i64} {
  func.func @fused_kernel(%arg0: i32, %arg1: memref<8x8x128xbf16, #tpu.memory_space<vmem>>, %arg2: memref<8x128xbf16, #tpu.memory_space<vmem>>, %arg3: memref<128x384xbf16, #tpu.memory_space<vmem>>, %arg4: memref<128x384xbf16, #tpu.memory_space<vmem>>, %arg5: memref<1x384xf32, #tpu.memory_space<vmem>>, %arg6: memref<1x128xf32, #tpu.memory_space<vmem>>, %arg7: memref<128x384xbf16, #tpu.memory_space<vmem>>, %arg8: memref<128x384xbf16, #tpu.memory_space<vmem>>, %arg9: memref<1x384xf32, #tpu.memory_space<vmem>>, %arg10: memref<1x128xf32, #tpu.memory_space<vmem>>, %arg11: memref<128x512xbf16, #tpu.memory_space<vmem>>, %arg12: memref<128x512xbf16, #tpu.memory_space<vmem>>, %arg13: memref<1x512xf32, #tpu.memory_space<vmem>>, %arg14: memref<512x256xbf16, #tpu.memory_space<vmem>>, %arg15: memref<1x256xf32, #tpu.memory_space<vmem>>, %arg16: memref<256x128xbf16, #tpu.memory_space<vmem>>, %arg17: memref<1x128xf32, #tpu.memory_space<vmem>>, %arg18: memref<128x128xbf16, #tpu.memory_space<vmem>>, %arg19: memref<1x128xf32, #tpu.memory_space<vmem>>, %arg20: memref<8x128xf32, #tpu.memory_space<vmem>>) attributes {dimension_semantics = [#tpu.dimension_semantics<parallel>], iteration_bounds = array<i64: 1>, scalar_prefetch = 0 : i64, scratch_operands = 0 : i64, tpu.core_type = #tpu.core_type<tc>, window_params = [{transform_indices = @transform_0, window_bounds = array<i64: 8, 8, 128>}, {transform_indices = @transform_1, window_bounds = array<i64: 8, 128>}, {pipeline_mode = #tpu.pipeline_mode<synchronous>, transform_indices = @transform_2, window_bounds = array<i64: 128, 384>}, {pipeline_mode = #tpu.pipeline_mode<synchronous>, transform_indices = @transform_3, window_bounds = array<i64: 128, 384>}, {pipeline_mode = #tpu.pipeline_mode<synchronous>, transform_indices = @transform_4, window_bounds = array<i64: 1, 384>}, {pipeline_mode = #tpu.pipeline_mode<synchronous>, transform_indices = @transform_5, window_bounds = array<i64: 1, 128>}, {pipeline_mode = #tpu.pipeline_mode<synchronous>, transform_indices = @transform_6, window_bounds = array<i64: 128, 384>}, {pipeline_mode = #tpu.pipeline_mode<synchronous>, transform_indices = @transform_7, window_bounds = array<i64: 128, 384>}, {pipeline_mode = #tpu.pipeline_mode<synchronous>, transform_indices = @transform_8, window_bounds = array<i64: 1, 384>}, {pipeline_mode = #tpu.pipeline_mode<synchronous>, transform_indices = @transform_9, window_bounds = array<i64: 1, 128>}, {pipeline_mode = #tpu.pipeline_mode<synchronous>, transform_indices = @transform_10, window_bounds = array<i64: 128, 512>}, {pipeline_mode = #tpu.pipeline_mode<synchronous>, transform_indices = @transform_11, window_bounds = array<i64: 128, 512>}, {pipeline_mode = #tpu.pipeline_mode<synchronous>, transform_indices = @transform_12, window_bounds = array<i64: 1, 512>}, {pipeline_mode = #tpu.pipeline_mode<synchronous>, transform_indices = @transform_13, window_bounds = array<i64: 512, 256>}, {pipeline_mode = #tpu.pipeline_mode<synchronous>, transform_indices = @transform_14, window_bounds = array<i64: 1, 256>}, {pipeline_mode = #tpu.pipeline_mode<synchronous>, transform_indices = @transform_15, window_bounds = array<i64: 256, 128>}, {pipeline_mode = #tpu.pipeline_mode<synchronous>, transform_indices = @transform_16, window_bounds = array<i64: 1, 128>}, {pipeline_mode = #tpu.pipeline_mode<synchronous>, transform_indices = @transform_17, window_bounds = array<i64: 128, 128>}, {pipeline_mode = #tpu.pipeline_mode<synchronous>, transform_indices = @transform_18, window_bounds = array<i64: 1, 128>}, {transform_indices = @transform_19, window_bounds = array<i64: 8, 128>}]} {
    %c0 = arith.constant 0 : index
    %c0_0 = arith.constant 0 : index
    %0 = vector.load %arg6[%c0, %c0_0] : memref<1x128xf32, #tpu.memory_space<vmem>>, vector<1x128xf32>
    %1 = vector.shape_cast %0 : vector<1x128xf32> to vector<1x128xf32>
    %2 = vector.broadcast %1 : vector<1x128xf32> to vector<8x128xf32>
    %c0_1 = arith.constant 0 : index
    %c0_2 = arith.constant 0 : index
    %3 = vector.load %arg10[%c0_1, %c0_2] : memref<1x128xf32, #tpu.memory_space<vmem>>, vector<1x128xf32>
    %4 = vector.shape_cast %3 : vector<1x128xf32> to vector<1x128xf32>
    %5 = vector.broadcast %4 : vector<1x128xf32> to vector<8x128xf32>
    %cst = arith.constant 0.000000e+00 : f32
    %6 = vector.broadcast %cst : f32 to vector<8x128xf32>
    %cst_3 = arith.constant 0.000000e+00 : f32
    %7 = vector.broadcast %cst_3 : f32 to vector<8x128xf32>
    %c0_4 = arith.constant 0 : index
    %c0_5 = arith.constant 0 : index
    %c0_6 = arith.constant 0 : index
    %8 = vector.load %arg1[%c0_4, %c0_5, %c0_6] : memref<8x8x128xbf16, #tpu.memory_space<vmem>>, vector<1x8x128xbf16>
    %9 = vector.shape_cast %8 : vector<1x8x128xbf16> to vector<8x128xbf16>
    %c0_7 = arith.constant 0 : index
    %c0_8 = arith.constant 0 : index
    %10 = vector.load %arg3[%c0_7, %c0_8] : memref<128x384xbf16, #tpu.memory_space<vmem>>, vector<128x384xbf16>
    %cst_9 = arith.constant dense<0.000000e+00> : vector<8x384xf32>
    %11 = tpu.matmul %9, %10, %cst_9 {dimension_numbers = #tpu.dot_dimension_numbers<[1], [0], [0], [1], [0, 0, 1, 1], [], []>} : vector<8x128xbf16>, vector<128x384xbf16>, vector<8x384xf32> -> vector<8x384xf32>
    %c0_10 = arith.constant 0 : index
    %c0_11 = arith.constant 0 : index
    %12 = vector.load %arg5[%c0_10, %c0_11] : memref<1x384xf32, #tpu.memory_space<vmem>>, vector<1x384xf32>
    %13 = vector.broadcast %12 : vector<1x384xf32> to vector<8x384xf32>
    %14 = arith.addf %11, %13 : vector<8x384xf32>
    %15 = arith.truncf %6 : vector<8x128xf32> to vector<8x128xbf16>
    %c0_12 = arith.constant 0 : index
    %c0_13 = arith.constant 0 : index
    %16 = vector.load %arg4[%c0_12, %c0_13] : memref<128x384xbf16, #tpu.memory_space<vmem>>, vector<128x384xbf16>
    %cst_14 = arith.constant dense<0.000000e+00> : vector<8x384xf32>
    %17 = tpu.matmul %15, %16, %cst_14 {dimension_numbers = #tpu.dot_dimension_numbers<[1], [0], [0], [1], [0, 0, 1, 1], [], []>} : vector<8x128xbf16>, vector<128x384xbf16>, vector<8x384xf32> -> vector<8x384xf32>
    %18 = vector.extract_strided_slice %14 {offsets = [0, 0], sizes = [8, 256], strides = [1, 1]} : vector<8x384xf32> to vector<8x256xf32>
    %19 = vector.extract_strided_slice %17 {offsets = [0, 0], sizes = [8, 256], strides = [1, 1]} : vector<8x384xf32> to vector<8x256xf32>
    %20 = arith.addf %18, %19 : vector<8x256xf32>
    %21 = arith.negf %20 : vector<8x256xf32>
    %22 = math.exp %21 : vector<8x256xf32>
    %cst_15 = arith.constant 1.000000e+00 : f32
    %23 = vector.broadcast %cst_15 : f32 to vector<8x256xf32>
    %24 = arith.addf %23, %22 : vector<8x256xf32>
    %25 = arith.divf %23, %24 : vector<8x256xf32>
    %26 = vector.extract_strided_slice %25 {offsets = [0, 0], sizes = [8, 128], strides = [1, 1]} : vector<8x256xf32> to vector<8x128xf32>
    %27 = vector.extract_strided_slice %25 {offsets = [0, 128], sizes = [8, 128], strides = [1, 1]} : vector<8x256xf32> to vector<8x128xf32>
    %28 = vector.extract_strided_slice %14 {offsets = [0, 256], sizes = [8, 128], strides = [1, 1]} : vector<8x384xf32> to vector<8x128xf32>
    %29 = vector.extract_strided_slice %17 {offsets = [0, 256], sizes = [8, 128], strides = [1, 1]} : vector<8x384xf32> to vector<8x128xf32>
    %30 = arith.addf %29, %2 : vector<8x128xf32>
    %31 = arith.mulf %26, %30 : vector<8x128xf32>
    %32 = arith.addf %28, %31 : vector<8x128xf32>
    %33 = math.tanh %32 : vector<8x128xf32>
    %cst_16 = arith.constant 1.000000e+00 : f32
    %34 = vector.broadcast %cst_16 : f32 to vector<8x128xf32>
    %35 = arith.subf %34, %27 : vector<8x128xf32>
    %36 = arith.mulf %35, %33 : vector<8x128xf32>
    %37 = arith.mulf %27, %6 : vector<8x128xf32>
    %38 = arith.addf %36, %37 : vector<8x128xf32>
    %39 = arith.truncf %38 : vector<8x128xf32> to vector<8x128xbf16>
    %c0_17 = arith.constant 0 : index
    %c0_18 = arith.constant 0 : index
    %40 = vector.load %arg7[%c0_17, %c0_18] : memref<128x384xbf16, #tpu.memory_space<vmem>>, vector<128x384xbf16>
    %cst_19 = arith.constant dense<0.000000e+00> : vector<8x384xf32>
    %41 = tpu.matmul %39, %40, %cst_19 {dimension_numbers = #tpu.dot_dimension_numbers<[1], [0], [0], [1], [0, 0, 1, 1], [], []>} : vector<8x128xbf16>, vector<128x384xbf16>, vector<8x384xf32> -> vector<8x384xf32>
    %c0_20 = arith.constant 0 : index
    %c0_21 = arith.constant 0 : index
    %42 = vector.load %arg9[%c0_20, %c0_21] : memref<1x384xf32, #tpu.memory_space<vmem>>, vector<1x384xf32>
    %43 = vector.broadcast %42 : vector<1x384xf32> to vector<8x384xf32>
    %44 = arith.addf %41, %43 : vector<8x384xf32>
    %45 = arith.truncf %7 : vector<8x128xf32> to vector<8x128xbf16>
    %c0_22 = arith.constant 0 : index
    %c0_23 = arith.constant 0 : index
    %46 = vector.load %arg8[%c0_22, %c0_23] : memref<128x384xbf16, #tpu.memory_space<vmem>>, vector<128x384xbf16>
    %cst_24 = arith.constant dense<0.000000e+00> : vector<8x384xf32>
    %47 = tpu.matmul %45, %46, %cst_24 {dimension_numbers = #tpu.dot_dimension_numbers<[1], [0], [0], [1], [0, 0, 1, 1], [], []>} : vector<8x128xbf16>, vector<128x384xbf16>, vector<8x384xf32> -> vector<8x384xf32>
    %48 = vector.extract_strided_slice %44 {offsets = [0, 0], sizes = [8, 256], strides = [1, 1]} : vector<8x384xf32> to vector<8x256xf32>
    %49 = vector.extract_strided_slice %47 {offsets = [0, 0], sizes = [8, 256], strides = [1, 1]} : vector<8x384xf32> to vector<8x256xf32>
    %50 = arith.addf %48, %49 : vector<8x256xf32>
    %51 = arith.negf %50 : vector<8x256xf32>
    %52 = math.exp %51 : vector<8x256xf32>
    %cst_25 = arith.constant 1.000000e+00 : f32
    %53 = vector.broadcast %cst_25 : f32 to vector<8x256xf32>
    %54 = arith.addf %53, %52 : vector<8x256xf32>
    %55 = arith.divf %53, %54 : vector<8x256xf32>
    %56 = vector.extract_strided_slice %55 {offsets = [0, 0], sizes = [8, 128], strides = [1, 1]} : vector<8x256xf32> to vector<8x128xf32>
    %57 = vector.extract_strided_slice %55 {offsets = [0, 128], sizes = [8, 128], strides = [1, 1]} : vector<8x256xf32> to vector<8x128xf32>
    %58 = vector.extract_strided_slice %44 {offsets = [0, 256], sizes = [8, 128], strides = [1, 1]} : vector<8x384xf32> to vector<8x128xf32>
    %59 = vector.extract_strided_slice %47 {offsets = [0, 256], sizes = [8, 128], strides = [1, 1]} : vector<8x384xf32> to vector<8x128xf32>
    %60 = arith.addf %59, %5 : vector<8x128xf32>
    %61 = arith.mulf %56, %60 : vector<8x128xf32>
    %62 = arith.addf %58, %61 : vector<8x128xf32>
    %63 = math.tanh %62 : vector<8x128xf32>
    %cst_26 = arith.constant 1.000000e+00 : f32
    %64 = vector.broadcast %cst_26 : f32 to vector<8x128xf32>
    %65 = arith.subf %64, %57 : vector<8x128xf32>
    %66 = arith.mulf %65, %63 : vector<8x128xf32>
    %67 = arith.mulf %57, %7 : vector<8x128xf32>
    %68 = arith.addf %66, %67 : vector<8x128xf32>
    %c1 = arith.constant 1 : index
    %c0_27 = arith.constant 0 : index
    %c0_28 = arith.constant 0 : index
    %69 = vector.load %arg1[%c1, %c0_27, %c0_28] : memref<8x8x128xbf16, #tpu.memory_space<vmem>>, vector<1x8x128xbf16>
    %70 = vector.shape_cast %69 : vector<1x8x128xbf16> to vector<8x128xbf16>
    %c0_29 = arith.constant 0 : index
    %c0_30 = arith.constant 0 : index
    %71 = vector.load %arg3[%c0_29, %c0_30] : memref<128x384xbf16, #tpu.memory_space<vmem>>, vector<128x384xbf16>
    %cst_31 = arith.constant dense<0.000000e+00> : vector<8x384xf32>
    %72 = tpu.matmul %70, %71, %cst_31 {dimension_numbers = #tpu.dot_dimension_numbers<[1], [0], [0], [1], [0, 0, 1, 1], [], []>} : vector<8x128xbf16>, vector<128x384xbf16>, vector<8x384xf32> -> vector<8x384xf32>
    %c0_32 = arith.constant 0 : index
    %c0_33 = arith.constant 0 : index
    %73 = vector.load %arg5[%c0_32, %c0_33] : memref<1x384xf32, #tpu.memory_space<vmem>>, vector<1x384xf32>
    %74 = vector.broadcast %73 : vector<1x384xf32> to vector<8x384xf32>
    %75 = arith.addf %72, %74 : vector<8x384xf32>
    %76 = arith.truncf %38 : vector<8x128xf32> to vector<8x128xbf16>
    %c0_34 = arith.constant 0 : index
    %c0_35 = arith.constant 0 : index
    %77 = vector.load %arg4[%c0_34, %c0_35] : memref<128x384xbf16, #tpu.memory_space<vmem>>, vector<128x384xbf16>
    %cst_36 = arith.constant dense<0.000000e+00> : vector<8x384xf32>
    %78 = tpu.matmul %76, %77, %cst_36 {dimension_numbers = #tpu.dot_dimension_numbers<[1], [0], [0], [1], [0, 0, 1, 1], [], []>} : vector<8x128xbf16>, vector<128x384xbf16>, vector<8x384xf32> -> vector<8x384xf32>
    %79 = vector.extract_strided_slice %75 {offsets = [0, 0], sizes = [8, 256], strides = [1, 1]} : vector<8x384xf32> to vector<8x256xf32>
    %80 = vector.extract_strided_slice %78 {offsets = [0, 0], sizes = [8, 256], strides = [1, 1]} : vector<8x384xf32> to vector<8x256xf32>
    %81 = arith.addf %79, %80 : vector<8x256xf32>
    %82 = arith.negf %81 : vector<8x256xf32>
    %83 = math.exp %82 : vector<8x256xf32>
    %cst_37 = arith.constant 1.000000e+00 : f32
    %84 = vector.broadcast %cst_37 : f32 to vector<8x256xf32>
    %85 = arith.addf %84, %83 : vector<8x256xf32>
    %86 = arith.divf %84, %85 : vector<8x256xf32>
    %87 = vector.extract_strided_slice %86 {offsets = [0, 0], sizes = [8, 128], strides = [1, 1]} : vector<8x256xf32> to vector<8x128xf32>
    %88 = vector.extract_strided_slice %86 {offsets = [0, 128], sizes = [8, 128], strides = [1, 1]} : vector<8x256xf32> to vector<8x128xf32>
    %89 = vector.extract_strided_slice %75 {offsets = [0, 256], sizes = [8, 128], strides = [1, 1]} : vector<8x384xf32> to vector<8x128xf32>
    %90 = vector.extract_strided_slice %78 {offsets = [0, 256], sizes = [8, 128], strides = [1, 1]} : vector<8x384xf32> to vector<8x128xf32>
    %91 = arith.addf %90, %2 : vector<8x128xf32>
    %92 = arith.mulf %87, %91 : vector<8x128xf32>
    %93 = arith.addf %89, %92 : vector<8x128xf32>
    %94 = math.tanh %93 : vector<8x128xf32>
    %cst_38 = arith.constant 1.000000e+00 : f32
    %95 = vector.broadcast %cst_38 : f32 to vector<8x128xf32>
    %96 = arith.subf %95, %88 : vector<8x128xf32>
    %97 = arith.mulf %96, %94 : vector<8x128xf32>
    %98 = arith.mulf %88, %38 : vector<8x128xf32>
    %99 = arith.addf %97, %98 : vector<8x128xf32>
    %100 = arith.truncf %99 : vector<8x128xf32> to vector<8x128xbf16>
    %c0_39 = arith.constant 0 : index
    %c0_40 = arith.constant 0 : index
    %101 = vector.load %arg7[%c0_39, %c0_40] : memref<128x384xbf16, #tpu.memory_space<vmem>>, vector<128x384xbf16>
    %cst_41 = arith.constant dense<0.000000e+00> : vector<8x384xf32>
    %102 = tpu.matmul %100, %101, %cst_41 {dimension_numbers = #tpu.dot_dimension_numbers<[1], [0], [0], [1], [0, 0, 1, 1], [], []>} : vector<8x128xbf16>, vector<128x384xbf16>, vector<8x384xf32> -> vector<8x384xf32>
    %c0_42 = arith.constant 0 : index
    %c0_43 = arith.constant 0 : index
    %103 = vector.load %arg9[%c0_42, %c0_43] : memref<1x384xf32, #tpu.memory_space<vmem>>, vector<1x384xf32>
    %104 = vector.broadcast %103 : vector<1x384xf32> to vector<8x384xf32>
    %105 = arith.addf %102, %104 : vector<8x384xf32>
    %106 = arith.truncf %68 : vector<8x128xf32> to vector<8x128xbf16>
    %c0_44 = arith.constant 0 : index
    %c0_45 = arith.constant 0 : index
    %107 = vector.load %arg8[%c0_44, %c0_45] : memref<128x384xbf16, #tpu.memory_space<vmem>>, vector<128x384xbf16>
    %cst_46 = arith.constant dense<0.000000e+00> : vector<8x384xf32>
    %108 = tpu.matmul %106, %107, %cst_46 {dimension_numbers = #tpu.dot_dimension_numbers<[1], [0], [0], [1], [0, 0, 1, 1], [], []>} : vector<8x128xbf16>, vector<128x384xbf16>, vector<8x384xf32> -> vector<8x384xf32>
    %109 = vector.extract_strided_slice %105 {offsets = [0, 0], sizes = [8, 256], strides = [1, 1]} : vector<8x384xf32> to vector<8x256xf32>
    %110 = vector.extract_strided_slice %108 {offsets = [0, 0], sizes = [8, 256], strides = [1, 1]} : vector<8x384xf32> to vector<8x256xf32>
    %111 = arith.addf %109, %110 : vector<8x256xf32>
    %112 = arith.negf %111 : vector<8x256xf32>
    %113 = math.exp %112 : vector<8x256xf32>
    %cst_47 = arith.constant 1.000000e+00 : f32
    %114 = vector.broadcast %cst_47 : f32 to vector<8x256xf32>
    %115 = arith.addf %114, %113 : vector<8x256xf32>
    %116 = arith.divf %114, %115 : vector<8x256xf32>
    %117 = vector.extract_strided_slice %116 {offsets = [0, 0], sizes = [8, 128], strides = [1, 1]} : vector<8x256xf32> to vector<8x128xf32>
    %118 = vector.extract_strided_slice %116 {offsets = [0, 128], sizes = [8, 128], strides = [1, 1]} : vector<8x256xf32> to vector<8x128xf32>
    %119 = vector.extract_strided_slice %105 {offsets = [0, 256], sizes = [8, 128], strides = [1, 1]} : vector<8x384xf32> to vector<8x128xf32>
    %120 = vector.extract_strided_slice %108 {offsets = [0, 256], sizes = [8, 128], strides = [1, 1]} : vector<8x384xf32> to vector<8x128xf32>
    %121 = arith.addf %120, %5 : vector<8x128xf32>
    %122 = arith.mulf %117, %121 : vector<8x128xf32>
    %123 = arith.addf %119, %122 : vector<8x128xf32>
    %124 = math.tanh %123 : vector<8x128xf32>
    %cst_48 = arith.constant 1.000000e+00 : f32
    %125 = vector.broadcast %cst_48 : f32 to vector<8x128xf32>
    %126 = arith.subf %125, %118 : vector<8x128xf32>
    %127 = arith.mulf %126, %124 : vector<8x128xf32>
    %128 = arith.mulf %118, %68 : vector<8x128xf32>
    %129 = arith.addf %127, %128 : vector<8x128xf32>
    %c2 = arith.constant 2 : index
    %c0_49 = arith.constant 0 : index
    %c0_50 = arith.constant 0 : index
    %130 = vector.load %arg1[%c2, %c0_49, %c0_50] : memref<8x8x128xbf16, #tpu.memory_space<vmem>>, vector<1x8x128xbf16>
    %131 = vector.shape_cast %130 : vector<1x8x128xbf16> to vector<8x128xbf16>
    %c0_51 = arith.constant 0 : index
    %c0_52 = arith.constant 0 : index
    %132 = vector.load %arg3[%c0_51, %c0_52] : memref<128x384xbf16, #tpu.memory_space<vmem>>, vector<128x384xbf16>
    %cst_53 = arith.constant dense<0.000000e+00> : vector<8x384xf32>
    %133 = tpu.matmul %131, %132, %cst_53 {dimension_numbers = #tpu.dot_dimension_numbers<[1], [0], [0], [1], [0, 0, 1, 1], [], []>} : vector<8x128xbf16>, vector<128x384xbf16>, vector<8x384xf32> -> vector<8x384xf32>
    %c0_54 = arith.constant 0 : index
    %c0_55 = arith.constant 0 : index
    %134 = vector.load %arg5[%c0_54, %c0_55] : memref<1x384xf32, #tpu.memory_space<vmem>>, vector<1x384xf32>
    %135 = vector.broadcast %134 : vector<1x384xf32> to vector<8x384xf32>
    %136 = arith.addf %133, %135 : vector<8x384xf32>
    %137 = arith.truncf %99 : vector<8x128xf32> to vector<8x128xbf16>
    %c0_56 = arith.constant 0 : index
    %c0_57 = arith.constant 0 : index
    %138 = vector.load %arg4[%c0_56, %c0_57] : memref<128x384xbf16, #tpu.memory_space<vmem>>, vector<128x384xbf16>
    %cst_58 = arith.constant dense<0.000000e+00> : vector<8x384xf32>
    %139 = tpu.matmul %137, %138, %cst_58 {dimension_numbers = #tpu.dot_dimension_numbers<[1], [0], [0], [1], [0, 0, 1, 1], [], []>} : vector<8x128xbf16>, vector<128x384xbf16>, vector<8x384xf32> -> vector<8x384xf32>
    %140 = vector.extract_strided_slice %136 {offsets = [0, 0], sizes = [8, 256], strides = [1, 1]} : vector<8x384xf32> to vector<8x256xf32>
    %141 = vector.extract_strided_slice %139 {offsets = [0, 0], sizes = [8, 256], strides = [1, 1]} : vector<8x384xf32> to vector<8x256xf32>
    %142 = arith.addf %140, %141 : vector<8x256xf32>
    %143 = arith.negf %142 : vector<8x256xf32>
    %144 = math.exp %143 : vector<8x256xf32>
    %cst_59 = arith.constant 1.000000e+00 : f32
    %145 = vector.broadcast %cst_59 : f32 to vector<8x256xf32>
    %146 = arith.addf %145, %144 : vector<8x256xf32>
    %147 = arith.divf %145, %146 : vector<8x256xf32>
    %148 = vector.extract_strided_slice %147 {offsets = [0, 0], sizes = [8, 128], strides = [1, 1]} : vector<8x256xf32> to vector<8x128xf32>
    %149 = vector.extract_strided_slice %147 {offsets = [0, 128], sizes = [8, 128], strides = [1, 1]} : vector<8x256xf32> to vector<8x128xf32>
    %150 = vector.extract_strided_slice %136 {offsets = [0, 256], sizes = [8, 128], strides = [1, 1]} : vector<8x384xf32> to vector<8x128xf32>
    %151 = vector.extract_strided_slice %139 {offsets = [0, 256], sizes = [8, 128], strides = [1, 1]} : vector<8x384xf32> to vector<8x128xf32>
    %152 = arith.addf %151, %2 : vector<8x128xf32>
    %153 = arith.mulf %148, %152 : vector<8x128xf32>
    %154 = arith.addf %150, %153 : vector<8x128xf32>
    %155 = math.tanh %154 : vector<8x128xf32>
    %cst_60 = arith.constant 1.000000e+00 : f32
    %156 = vector.broadcast %cst_60 : f32 to vector<8x128xf32>
    %157 = arith.subf %156, %149 : vector<8x128xf32>
    %158 = arith.mulf %157, %155 : vector<8x128xf32>
    %159 = arith.mulf %149, %99 : vector<8x128xf32>
    %160 = arith.addf %158, %159 : vector<8x128xf32>
    %161 = arith.truncf %160 : vector<8x128xf32> to vector<8x128xbf16>
    %c0_61 = arith.constant 0 : index
    %c0_62 = arith.constant 0 : index
    %162 = vector.load %arg7[%c0_61, %c0_62] : memref<128x384xbf16, #tpu.memory_space<vmem>>, vector<128x384xbf16>
    %cst_63 = arith.constant dense<0.000000e+00> : vector<8x384xf32>
    %163 = tpu.matmul %161, %162, %cst_63 {dimension_numbers = #tpu.dot_dimension_numbers<[1], [0], [0], [1], [0, 0, 1, 1], [], []>} : vector<8x128xbf16>, vector<128x384xbf16>, vector<8x384xf32> -> vector<8x384xf32>
    %c0_64 = arith.constant 0 : index
    %c0_65 = arith.constant 0 : index
    %164 = vector.load %arg9[%c0_64, %c0_65] : memref<1x384xf32, #tpu.memory_space<vmem>>, vector<1x384xf32>
    %165 = vector.broadcast %164 : vector<1x384xf32> to vector<8x384xf32>
    %166 = arith.addf %163, %165 : vector<8x384xf32>
    %167 = arith.truncf %129 : vector<8x128xf32> to vector<8x128xbf16>
    %c0_66 = arith.constant 0 : index
    %c0_67 = arith.constant 0 : index
    %168 = vector.load %arg8[%c0_66, %c0_67] : memref<128x384xbf16, #tpu.memory_space<vmem>>, vector<128x384xbf16>
    %cst_68 = arith.constant dense<0.000000e+00> : vector<8x384xf32>
    %169 = tpu.matmul %167, %168, %cst_68 {dimension_numbers = #tpu.dot_dimension_numbers<[1], [0], [0], [1], [0, 0, 1, 1], [], []>} : vector<8x128xbf16>, vector<128x384xbf16>, vector<8x384xf32> -> vector<8x384xf32>
    %170 = vector.extract_strided_slice %166 {offsets = [0, 0], sizes = [8, 256], strides = [1, 1]} : vector<8x384xf32> to vector<8x256xf32>
    %171 = vector.extract_strided_slice %169 {offsets = [0, 0], sizes = [8, 256], strides = [1, 1]} : vector<8x384xf32> to vector<8x256xf32>
    %172 = arith.addf %170, %171 : vector<8x256xf32>
    %173 = arith.negf %172 : vector<8x256xf32>
    %174 = math.exp %173 : vector<8x256xf32>
    %cst_69 = arith.constant 1.000000e+00 : f32
    %175 = vector.broadcast %cst_69 : f32 to vector<8x256xf32>
    %176 = arith.addf %175, %174 : vector<8x256xf32>
    %177 = arith.divf %175, %176 : vector<8x256xf32>
    %178 = vector.extract_strided_slice %177 {offsets = [0, 0], sizes = [8, 128], strides = [1, 1]} : vector<8x256xf32> to vector<8x128xf32>
    %179 = vector.extract_strided_slice %177 {offsets = [0, 128], sizes = [8, 128], strides = [1, 1]} : vector<8x256xf32> to vector<8x128xf32>
    %180 = vector.extract_strided_slice %166 {offsets = [0, 256], sizes = [8, 128], strides = [1, 1]} : vector<8x384xf32> to vector<8x128xf32>
    %181 = vector.extract_strided_slice %169 {offsets = [0, 256], sizes = [8, 128], strides = [1, 1]} : vector<8x384xf32> to vector<8x128xf32>
    %182 = arith.addf %181, %5 : vector<8x128xf32>
    %183 = arith.mulf %178, %182 : vector<8x128xf32>
    %184 = arith.addf %180, %183 : vector<8x128xf32>
    %185 = math.tanh %184 : vector<8x128xf32>
    %cst_70 = arith.constant 1.000000e+00 : f32
    %186 = vector.broadcast %cst_70 : f32 to vector<8x128xf32>
    %187 = arith.subf %186, %179 : vector<8x128xf32>
    %188 = arith.mulf %187, %185 : vector<8x128xf32>
    %189 = arith.mulf %179, %129 : vector<8x128xf32>
    %190 = arith.addf %188, %189 : vector<8x128xf32>
    %c3 = arith.constant 3 : index
    %c0_71 = arith.constant 0 : index
    %c0_72 = arith.constant 0 : index
    %191 = vector.load %arg1[%c3, %c0_71, %c0_72] : memref<8x8x128xbf16, #tpu.memory_space<vmem>>, vector<1x8x128xbf16>
    %192 = vector.shape_cast %191 : vector<1x8x128xbf16> to vector<8x128xbf16>
    %c0_73 = arith.constant 0 : index
    %c0_74 = arith.constant 0 : index
    %193 = vector.load %arg3[%c0_73, %c0_74] : memref<128x384xbf16, #tpu.memory_space<vmem>>, vector<128x384xbf16>
    %cst_75 = arith.constant dense<0.000000e+00> : vector<8x384xf32>
    %194 = tpu.matmul %192, %193, %cst_75 {dimension_numbers = #tpu.dot_dimension_numbers<[1], [0], [0], [1], [0, 0, 1, 1], [], []>} : vector<8x128xbf16>, vector<128x384xbf16>, vector<8x384xf32> -> vector<8x384xf32>
    %c0_76 = arith.constant 0 : index
    %c0_77 = arith.constant 0 : index
    %195 = vector.load %arg5[%c0_76, %c0_77] : memref<1x384xf32, #tpu.memory_space<vmem>>, vector<1x384xf32>
    %196 = vector.broadcast %195 : vector<1x384xf32> to vector<8x384xf32>
    %197 = arith.addf %194, %196 : vector<8x384xf32>
    %198 = arith.truncf %160 : vector<8x128xf32> to vector<8x128xbf16>
    %c0_78 = arith.constant 0 : index
    %c0_79 = arith.constant 0 : index
    %199 = vector.load %arg4[%c0_78, %c0_79] : memref<128x384xbf16, #tpu.memory_space<vmem>>, vector<128x384xbf16>
    %cst_80 = arith.constant dense<0.000000e+00> : vector<8x384xf32>
    %200 = tpu.matmul %198, %199, %cst_80 {dimension_numbers = #tpu.dot_dimension_numbers<[1], [0], [0], [1], [0, 0, 1, 1], [], []>} : vector<8x128xbf16>, vector<128x384xbf16>, vector<8x384xf32> -> vector<8x384xf32>
    %201 = vector.extract_strided_slice %197 {offsets = [0, 0], sizes = [8, 256], strides = [1, 1]} : vector<8x384xf32> to vector<8x256xf32>
    %202 = vector.extract_strided_slice %200 {offsets = [0, 0], sizes = [8, 256], strides = [1, 1]} : vector<8x384xf32> to vector<8x256xf32>
    %203 = arith.addf %201, %202 : vector<8x256xf32>
    %204 = arith.negf %203 : vector<8x256xf32>
    %205 = math.exp %204 : vector<8x256xf32>
    %cst_81 = arith.constant 1.000000e+00 : f32
    %206 = vector.broadcast %cst_81 : f32 to vector<8x256xf32>
    %207 = arith.addf %206, %205 : vector<8x256xf32>
    %208 = arith.divf %206, %207 : vector<8x256xf32>
    %209 = vector.extract_strided_slice %208 {offsets = [0, 0], sizes = [8, 128], strides = [1, 1]} : vector<8x256xf32> to vector<8x128xf32>
    %210 = vector.extract_strided_slice %208 {offsets = [0, 128], sizes = [8, 128], strides = [1, 1]} : vector<8x256xf32> to vector<8x128xf32>
    %211 = vector.extract_strided_slice %197 {offsets = [0, 256], sizes = [8, 128], strides = [1, 1]} : vector<8x384xf32> to vector<8x128xf32>
    %212 = vector.extract_strided_slice %200 {offsets = [0, 256], sizes = [8, 128], strides = [1, 1]} : vector<8x384xf32> to vector<8x128xf32>
    %213 = arith.addf %212, %2 : vector<8x128xf32>
    %214 = arith.mulf %209, %213 : vector<8x128xf32>
    %215 = arith.addf %211, %214 : vector<8x128xf32>
    %216 = math.tanh %215 : vector<8x128xf32>
    %cst_82 = arith.constant 1.000000e+00 : f32
    %217 = vector.broadcast %cst_82 : f32 to vector<8x128xf32>
    %218 = arith.subf %217, %210 : vector<8x128xf32>
    %219 = arith.mulf %218, %216 : vector<8x128xf32>
    %220 = arith.mulf %210, %160 : vector<8x128xf32>
    %221 = arith.addf %219, %220 : vector<8x128xf32>
    %222 = arith.truncf %221 : vector<8x128xf32> to vector<8x128xbf16>
    %c0_83 = arith.constant 0 : index
    %c0_84 = arith.constant 0 : index
    %223 = vector.load %arg7[%c0_83, %c0_84] : memref<128x384xbf16, #tpu.memory_space<vmem>>, vector<128x384xbf16>
    %cst_85 = arith.constant dense<0.000000e+00> : vector<8x384xf32>
    %224 = tpu.matmul %222, %223, %cst_85 {dimension_numbers = #tpu.dot_dimension_numbers<[1], [0], [0], [1], [0, 0, 1, 1], [], []>} : vector<8x128xbf16>, vector<128x384xbf16>, vector<8x384xf32> -> vector<8x384xf32>
    %c0_86 = arith.constant 0 : index
    %c0_87 = arith.constant 0 : index
    %225 = vector.load %arg9[%c0_86, %c0_87] : memref<1x384xf32, #tpu.memory_space<vmem>>, vector<1x384xf32>
    %226 = vector.broadcast %225 : vector<1x384xf32> to vector<8x384xf32>
    %227 = arith.addf %224, %226 : vector<8x384xf32>
    %228 = arith.truncf %190 : vector<8x128xf32> to vector<8x128xbf16>
    %c0_88 = arith.constant 0 : index
    %c0_89 = arith.constant 0 : index
    %229 = vector.load %arg8[%c0_88, %c0_89] : memref<128x384xbf16, #tpu.memory_space<vmem>>, vector<128x384xbf16>
    %cst_90 = arith.constant dense<0.000000e+00> : vector<8x384xf32>
    %230 = tpu.matmul %228, %229, %cst_90 {dimension_numbers = #tpu.dot_dimension_numbers<[1], [0], [0], [1], [0, 0, 1, 1], [], []>} : vector<8x128xbf16>, vector<128x384xbf16>, vector<8x384xf32> -> vector<8x384xf32>
    %231 = vector.extract_strided_slice %227 {offsets = [0, 0], sizes = [8, 256], strides = [1, 1]} : vector<8x384xf32> to vector<8x256xf32>
    %232 = vector.extract_strided_slice %230 {offsets = [0, 0], sizes = [8, 256], strides = [1, 1]} : vector<8x384xf32> to vector<8x256xf32>
    %233 = arith.addf %231, %232 : vector<8x256xf32>
    %234 = arith.negf %233 : vector<8x256xf32>
    %235 = math.exp %234 : vector<8x256xf32>
    %cst_91 = arith.constant 1.000000e+00 : f32
    %236 = vector.broadcast %cst_91 : f32 to vector<8x256xf32>
    %237 = arith.addf %236, %235 : vector<8x256xf32>
    %238 = arith.divf %236, %237 : vector<8x256xf32>
    %239 = vector.extract_strided_slice %238 {offsets = [0, 0], sizes = [8, 128], strides = [1, 1]} : vector<8x256xf32> to vector<8x128xf32>
    %240 = vector.extract_strided_slice %238 {offsets = [0, 128], sizes = [8, 128], strides = [1, 1]} : vector<8x256xf32> to vector<8x128xf32>
    %241 = vector.extract_strided_slice %227 {offsets = [0, 256], sizes = [8, 128], strides = [1, 1]} : vector<8x384xf32> to vector<8x128xf32>
    %242 = vector.extract_strided_slice %230 {offsets = [0, 256], sizes = [8, 128], strides = [1, 1]} : vector<8x384xf32> to vector<8x128xf32>
    %243 = arith.addf %242, %5 : vector<8x128xf32>
    %244 = arith.mulf %239, %243 : vector<8x128xf32>
    %245 = arith.addf %241, %244 : vector<8x128xf32>
    %246 = math.tanh %245 : vector<8x128xf32>
    %cst_92 = arith.constant 1.000000e+00 : f32
    %247 = vector.broadcast %cst_92 : f32 to vector<8x128xf32>
    %248 = arith.subf %247, %240 : vector<8x128xf32>
    %249 = arith.mulf %248, %246 : vector<8x128xf32>
    %250 = arith.mulf %240, %190 : vector<8x128xf32>
    %251 = arith.addf %249, %250 : vector<8x128xf32>
    %c4 = arith.constant 4 : index
    %c0_93 = arith.constant 0 : index
    %c0_94 = arith.constant 0 : index
    %252 = vector.load %arg1[%c4, %c0_93, %c0_94] : memref<8x8x128xbf16, #tpu.memory_space<vmem>>, vector<1x8x128xbf16>
    %253 = vector.shape_cast %252 : vector<1x8x128xbf16> to vector<8x128xbf16>
    %c0_95 = arith.constant 0 : index
    %c0_96 = arith.constant 0 : index
    %254 = vector.load %arg3[%c0_95, %c0_96] : memref<128x384xbf16, #tpu.memory_space<vmem>>, vector<128x384xbf16>
    %cst_97 = arith.constant dense<0.000000e+00> : vector<8x384xf32>
    %255 = tpu.matmul %253, %254, %cst_97 {dimension_numbers = #tpu.dot_dimension_numbers<[1], [0], [0], [1], [0, 0, 1, 1], [], []>} : vector<8x128xbf16>, vector<128x384xbf16>, vector<8x384xf32> -> vector<8x384xf32>
    %c0_98 = arith.constant 0 : index
    %c0_99 = arith.constant 0 : index
    %256 = vector.load %arg5[%c0_98, %c0_99] : memref<1x384xf32, #tpu.memory_space<vmem>>, vector<1x384xf32>
    %257 = vector.broadcast %256 : vector<1x384xf32> to vector<8x384xf32>
    %258 = arith.addf %255, %257 : vector<8x384xf32>
    %259 = arith.truncf %221 : vector<8x128xf32> to vector<8x128xbf16>
    %c0_100 = arith.constant 0 : index
    %c0_101 = arith.constant 0 : index
    %260 = vector.load %arg4[%c0_100, %c0_101] : memref<128x384xbf16, #tpu.memory_space<vmem>>, vector<128x384xbf16>
    %cst_102 = arith.constant dense<0.000000e+00> : vector<8x384xf32>
    %261 = tpu.matmul %259, %260, %cst_102 {dimension_numbers = #tpu.dot_dimension_numbers<[1], [0], [0], [1], [0, 0, 1, 1], [], []>} : vector<8x128xbf16>, vector<128x384xbf16>, vector<8x384xf32> -> vector<8x384xf32>
    %262 = vector.extract_strided_slice %258 {offsets = [0, 0], sizes = [8, 256], strides = [1, 1]} : vector<8x384xf32> to vector<8x256xf32>
    %263 = vector.extract_strided_slice %261 {offsets = [0, 0], sizes = [8, 256], strides = [1, 1]} : vector<8x384xf32> to vector<8x256xf32>
    %264 = arith.addf %262, %263 : vector<8x256xf32>
    %265 = arith.negf %264 : vector<8x256xf32>
    %266 = math.exp %265 : vector<8x256xf32>
    %cst_103 = arith.constant 1.000000e+00 : f32
    %267 = vector.broadcast %cst_103 : f32 to vector<8x256xf32>
    %268 = arith.addf %267, %266 : vector<8x256xf32>
    %269 = arith.divf %267, %268 : vector<8x256xf32>
    %270 = vector.extract_strided_slice %269 {offsets = [0, 0], sizes = [8, 128], strides = [1, 1]} : vector<8x256xf32> to vector<8x128xf32>
    %271 = vector.extract_strided_slice %269 {offsets = [0, 128], sizes = [8, 128], strides = [1, 1]} : vector<8x256xf32> to vector<8x128xf32>
    %272 = vector.extract_strided_slice %258 {offsets = [0, 256], sizes = [8, 128], strides = [1, 1]} : vector<8x384xf32> to vector<8x128xf32>
    %273 = vector.extract_strided_slice %261 {offsets = [0, 256], sizes = [8, 128], strides = [1, 1]} : vector<8x384xf32> to vector<8x128xf32>
    %274 = arith.addf %273, %2 : vector<8x128xf32>
    %275 = arith.mulf %270, %274 : vector<8x128xf32>
    %276 = arith.addf %272, %275 : vector<8x128xf32>
    %277 = math.tanh %276 : vector<8x128xf32>
    %cst_104 = arith.constant 1.000000e+00 : f32
    %278 = vector.broadcast %cst_104 : f32 to vector<8x128xf32>
    %279 = arith.subf %278, %271 : vector<8x128xf32>
    %280 = arith.mulf %279, %277 : vector<8x128xf32>
    %281 = arith.mulf %271, %221 : vector<8x128xf32>
    %282 = arith.addf %280, %281 : vector<8x128xf32>
    %283 = arith.truncf %282 : vector<8x128xf32> to vector<8x128xbf16>
    %c0_105 = arith.constant 0 : index
    %c0_106 = arith.constant 0 : index
    %284 = vector.load %arg7[%c0_105, %c0_106] : memref<128x384xbf16, #tpu.memory_space<vmem>>, vector<128x384xbf16>
    %cst_107 = arith.constant dense<0.000000e+00> : vector<8x384xf32>
    %285 = tpu.matmul %283, %284, %cst_107 {dimension_numbers = #tpu.dot_dimension_numbers<[1], [0], [0], [1], [0, 0, 1, 1], [], []>} : vector<8x128xbf16>, vector<128x384xbf16>, vector<8x384xf32> -> vector<8x384xf32>
    %c0_108 = arith.constant 0 : index
    %c0_109 = arith.constant 0 : index
    %286 = vector.load %arg9[%c0_108, %c0_109] : memref<1x384xf32, #tpu.memory_space<vmem>>, vector<1x384xf32>
    %287 = vector.broadcast %286 : vector<1x384xf32> to vector<8x384xf32>
    %288 = arith.addf %285, %287 : vector<8x384xf32>
    %289 = arith.truncf %251 : vector<8x128xf32> to vector<8x128xbf16>
    %c0_110 = arith.constant 0 : index
    %c0_111 = arith.constant 0 : index
    %290 = vector.load %arg8[%c0_110, %c0_111] : memref<128x384xbf16, #tpu.memory_space<vmem>>, vector<128x384xbf16>
    %cst_112 = arith.constant dense<0.000000e+00> : vector<8x384xf32>
    %291 = tpu.matmul %289, %290, %cst_112 {dimension_numbers = #tpu.dot_dimension_numbers<[1], [0], [0], [1], [0, 0, 1, 1], [], []>} : vector<8x128xbf16>, vector<128x384xbf16>, vector<8x384xf32> -> vector<8x384xf32>
    %292 = vector.extract_strided_slice %288 {offsets = [0, 0], sizes = [8, 256], strides = [1, 1]} : vector<8x384xf32> to vector<8x256xf32>
    %293 = vector.extract_strided_slice %291 {offsets = [0, 0], sizes = [8, 256], strides = [1, 1]} : vector<8x384xf32> to vector<8x256xf32>
    %294 = arith.addf %292, %293 : vector<8x256xf32>
    %295 = arith.negf %294 : vector<8x256xf32>
    %296 = math.exp %295 : vector<8x256xf32>
    %cst_113 = arith.constant 1.000000e+00 : f32
    %297 = vector.broadcast %cst_113 : f32 to vector<8x256xf32>
    %298 = arith.addf %297, %296 : vector<8x256xf32>
    %299 = arith.divf %297, %298 : vector<8x256xf32>
    %300 = vector.extract_strided_slice %299 {offsets = [0, 0], sizes = [8, 128], strides = [1, 1]} : vector<8x256xf32> to vector<8x128xf32>
    %301 = vector.extract_strided_slice %299 {offsets = [0, 128], sizes = [8, 128], strides = [1, 1]} : vector<8x256xf32> to vector<8x128xf32>
    %302 = vector.extract_strided_slice %288 {offsets = [0, 256], sizes = [8, 128], strides = [1, 1]} : vector<8x384xf32> to vector<8x128xf32>
    %303 = vector.extract_strided_slice %291 {offsets = [0, 256], sizes = [8, 128], strides = [1, 1]} : vector<8x384xf32> to vector<8x128xf32>
    %304 = arith.addf %303, %5 : vector<8x128xf32>
    %305 = arith.mulf %300, %304 : vector<8x128xf32>
    %306 = arith.addf %302, %305 : vector<8x128xf32>
    %307 = math.tanh %306 : vector<8x128xf32>
    %cst_114 = arith.constant 1.000000e+00 : f32
    %308 = vector.broadcast %cst_114 : f32 to vector<8x128xf32>
    %309 = arith.subf %308, %301 : vector<8x128xf32>
    %310 = arith.mulf %309, %307 : vector<8x128xf32>
    %311 = arith.mulf %301, %251 : vector<8x128xf32>
    %312 = arith.addf %310, %311 : vector<8x128xf32>
    %c5 = arith.constant 5 : index
    %c0_115 = arith.constant 0 : index
    %c0_116 = arith.constant 0 : index
    %313 = vector.load %arg1[%c5, %c0_115, %c0_116] : memref<8x8x128xbf16, #tpu.memory_space<vmem>>, vector<1x8x128xbf16>
    %314 = vector.shape_cast %313 : vector<1x8x128xbf16> to vector<8x128xbf16>
    %c0_117 = arith.constant 0 : index
    %c0_118 = arith.constant 0 : index
    %315 = vector.load %arg3[%c0_117, %c0_118] : memref<128x384xbf16, #tpu.memory_space<vmem>>, vector<128x384xbf16>
    %cst_119 = arith.constant dense<0.000000e+00> : vector<8x384xf32>
    %316 = tpu.matmul %314, %315, %cst_119 {dimension_numbers = #tpu.dot_dimension_numbers<[1], [0], [0], [1], [0, 0, 1, 1], [], []>} : vector<8x128xbf16>, vector<128x384xbf16>, vector<8x384xf32> -> vector<8x384xf32>
    %c0_120 = arith.constant 0 : index
    %c0_121 = arith.constant 0 : index
    %317 = vector.load %arg5[%c0_120, %c0_121] : memref<1x384xf32, #tpu.memory_space<vmem>>, vector<1x384xf32>
    %318 = vector.broadcast %317 : vector<1x384xf32> to vector<8x384xf32>
    %319 = arith.addf %316, %318 : vector<8x384xf32>
    %320 = arith.truncf %282 : vector<8x128xf32> to vector<8x128xbf16>
    %c0_122 = arith.constant 0 : index
    %c0_123 = arith.constant 0 : index
    %321 = vector.load %arg4[%c0_122, %c0_123] : memref<128x384xbf16, #tpu.memory_space<vmem>>, vector<128x384xbf16>
    %cst_124 = arith.constant dense<0.000000e+00> : vector<8x384xf32>
    %322 = tpu.matmul %320, %321, %cst_124 {dimension_numbers = #tpu.dot_dimension_numbers<[1], [0], [0], [1], [0, 0, 1, 1], [], []>} : vector<8x128xbf16>, vector<128x384xbf16>, vector<8x384xf32> -> vector<8x384xf32>
    %323 = vector.extract_strided_slice %319 {offsets = [0, 0], sizes = [8, 256], strides = [1, 1]} : vector<8x384xf32> to vector<8x256xf32>
    %324 = vector.extract_strided_slice %322 {offsets = [0, 0], sizes = [8, 256], strides = [1, 1]} : vector<8x384xf32> to vector<8x256xf32>
    %325 = arith.addf %323, %324 : vector<8x256xf32>
    %326 = arith.negf %325 : vector<8x256xf32>
    %327 = math.exp %326 : vector<8x256xf32>
    %cst_125 = arith.constant 1.000000e+00 : f32
    %328 = vector.broadcast %cst_125 : f32 to vector<8x256xf32>
    %329 = arith.addf %328, %327 : vector<8x256xf32>
    %330 = arith.divf %328, %329 : vector<8x256xf32>
    %331 = vector.extract_strided_slice %330 {offsets = [0, 0], sizes = [8, 128], strides = [1, 1]} : vector<8x256xf32> to vector<8x128xf32>
    %332 = vector.extract_strided_slice %330 {offsets = [0, 128], sizes = [8, 128], strides = [1, 1]} : vector<8x256xf32> to vector<8x128xf32>
    %333 = vector.extract_strided_slice %319 {offsets = [0, 256], sizes = [8, 128], strides = [1, 1]} : vector<8x384xf32> to vector<8x128xf32>
    %334 = vector.extract_strided_slice %322 {offsets = [0, 256], sizes = [8, 128], strides = [1, 1]} : vector<8x384xf32> to vector<8x128xf32>
    %335 = arith.addf %334, %2 : vector<8x128xf32>
    %336 = arith.mulf %331, %335 : vector<8x128xf32>
    %337 = arith.addf %333, %336 : vector<8x128xf32>
    %338 = math.tanh %337 : vector<8x128xf32>
    %cst_126 = arith.constant 1.000000e+00 : f32
    %339 = vector.broadcast %cst_126 : f32 to vector<8x128xf32>
    %340 = arith.subf %339, %332 : vector<8x128xf32>
    %341 = arith.mulf %340, %338 : vector<8x128xf32>
    %342 = arith.mulf %332, %282 : vector<8x128xf32>
    %343 = arith.addf %341, %342 : vector<8x128xf32>
    %344 = arith.truncf %343 : vector<8x128xf32> to vector<8x128xbf16>
    %c0_127 = arith.constant 0 : index
    %c0_128 = arith.constant 0 : index
    %345 = vector.load %arg7[%c0_127, %c0_128] : memref<128x384xbf16, #tpu.memory_space<vmem>>, vector<128x384xbf16>
    %cst_129 = arith.constant dense<0.000000e+00> : vector<8x384xf32>
    %346 = tpu.matmul %344, %345, %cst_129 {dimension_numbers = #tpu.dot_dimension_numbers<[1], [0], [0], [1], [0, 0, 1, 1], [], []>} : vector<8x128xbf16>, vector<128x384xbf16>, vector<8x384xf32> -> vector<8x384xf32>
    %c0_130 = arith.constant 0 : index
    %c0_131 = arith.constant 0 : index
    %347 = vector.load %arg9[%c0_130, %c0_131] : memref<1x384xf32, #tpu.memory_space<vmem>>, vector<1x384xf32>
    %348 = vector.broadcast %347 : vector<1x384xf32> to vector<8x384xf32>
    %349 = arith.addf %346, %348 : vector<8x384xf32>
    %350 = arith.truncf %312 : vector<8x128xf32> to vector<8x128xbf16>
    %c0_132 = arith.constant 0 : index
    %c0_133 = arith.constant 0 : index
    %351 = vector.load %arg8[%c0_132, %c0_133] : memref<128x384xbf16, #tpu.memory_space<vmem>>, vector<128x384xbf16>
    %cst_134 = arith.constant dense<0.000000e+00> : vector<8x384xf32>
    %352 = tpu.matmul %350, %351, %cst_134 {dimension_numbers = #tpu.dot_dimension_numbers<[1], [0], [0], [1], [0, 0, 1, 1], [], []>} : vector<8x128xbf16>, vector<128x384xbf16>, vector<8x384xf32> -> vector<8x384xf32>
    %353 = vector.extract_strided_slice %349 {offsets = [0, 0], sizes = [8, 256], strides = [1, 1]} : vector<8x384xf32> to vector<8x256xf32>
    %354 = vector.extract_strided_slice %352 {offsets = [0, 0], sizes = [8, 256], strides = [1, 1]} : vector<8x384xf32> to vector<8x256xf32>
    %355 = arith.addf %353, %354 : vector<8x256xf32>
    %356 = arith.negf %355 : vector<8x256xf32>
    %357 = math.exp %356 : vector<8x256xf32>
    %cst_135 = arith.constant 1.000000e+00 : f32
    %358 = vector.broadcast %cst_135 : f32 to vector<8x256xf32>
    %359 = arith.addf %358, %357 : vector<8x256xf32>
    %360 = arith.divf %358, %359 : vector<8x256xf32>
    %361 = vector.extract_strided_slice %360 {offsets = [0, 0], sizes = [8, 128], strides = [1, 1]} : vector<8x256xf32> to vector<8x128xf32>
    %362 = vector.extract_strided_slice %360 {offsets = [0, 128], sizes = [8, 128], strides = [1, 1]} : vector<8x256xf32> to vector<8x128xf32>
    %363 = vector.extract_strided_slice %349 {offsets = [0, 256], sizes = [8, 128], strides = [1, 1]} : vector<8x384xf32> to vector<8x128xf32>
    %364 = vector.extract_strided_slice %352 {offsets = [0, 256], sizes = [8, 128], strides = [1, 1]} : vector<8x384xf32> to vector<8x128xf32>
    %365 = arith.addf %364, %5 : vector<8x128xf32>
    %366 = arith.mulf %361, %365 : vector<8x128xf32>
    %367 = arith.addf %363, %366 : vector<8x128xf32>
    %368 = math.tanh %367 : vector<8x128xf32>
    %cst_136 = arith.constant 1.000000e+00 : f32
    %369 = vector.broadcast %cst_136 : f32 to vector<8x128xf32>
    %370 = arith.subf %369, %362 : vector<8x128xf32>
    %371 = arith.mulf %370, %368 : vector<8x128xf32>
    %372 = arith.mulf %362, %312 : vector<8x128xf32>
    %373 = arith.addf %371, %372 : vector<8x128xf32>
    %c6 = arith.constant 6 : index
    %c0_137 = arith.constant 0 : index
    %c0_138 = arith.constant 0 : index
    %374 = vector.load %arg1[%c6, %c0_137, %c0_138] : memref<8x8x128xbf16, #tpu.memory_space<vmem>>, vector<1x8x128xbf16>
    %375 = vector.shape_cast %374 : vector<1x8x128xbf16> to vector<8x128xbf16>
    %c0_139 = arith.constant 0 : index
    %c0_140 = arith.constant 0 : index
    %376 = vector.load %arg3[%c0_139, %c0_140] : memref<128x384xbf16, #tpu.memory_space<vmem>>, vector<128x384xbf16>
    %cst_141 = arith.constant dense<0.000000e+00> : vector<8x384xf32>
    %377 = tpu.matmul %375, %376, %cst_141 {dimension_numbers = #tpu.dot_dimension_numbers<[1], [0], [0], [1], [0, 0, 1, 1], [], []>} : vector<8x128xbf16>, vector<128x384xbf16>, vector<8x384xf32> -> vector<8x384xf32>
    %c0_142 = arith.constant 0 : index
    %c0_143 = arith.constant 0 : index
    %378 = vector.load %arg5[%c0_142, %c0_143] : memref<1x384xf32, #tpu.memory_space<vmem>>, vector<1x384xf32>
    %379 = vector.broadcast %378 : vector<1x384xf32> to vector<8x384xf32>
    %380 = arith.addf %377, %379 : vector<8x384xf32>
    %381 = arith.truncf %343 : vector<8x128xf32> to vector<8x128xbf16>
    %c0_144 = arith.constant 0 : index
    %c0_145 = arith.constant 0 : index
    %382 = vector.load %arg4[%c0_144, %c0_145] : memref<128x384xbf16, #tpu.memory_space<vmem>>, vector<128x384xbf16>
    %cst_146 = arith.constant dense<0.000000e+00> : vector<8x384xf32>
    %383 = tpu.matmul %381, %382, %cst_146 {dimension_numbers = #tpu.dot_dimension_numbers<[1], [0], [0], [1], [0, 0, 1, 1], [], []>} : vector<8x128xbf16>, vector<128x384xbf16>, vector<8x384xf32> -> vector<8x384xf32>
    %384 = vector.extract_strided_slice %380 {offsets = [0, 0], sizes = [8, 256], strides = [1, 1]} : vector<8x384xf32> to vector<8x256xf32>
    %385 = vector.extract_strided_slice %383 {offsets = [0, 0], sizes = [8, 256], strides = [1, 1]} : vector<8x384xf32> to vector<8x256xf32>
    %386 = arith.addf %384, %385 : vector<8x256xf32>
    %387 = arith.negf %386 : vector<8x256xf32>
    %388 = math.exp %387 : vector<8x256xf32>
    %cst_147 = arith.constant 1.000000e+00 : f32
    %389 = vector.broadcast %cst_147 : f32 to vector<8x256xf32>
    %390 = arith.addf %389, %388 : vector<8x256xf32>
    %391 = arith.divf %389, %390 : vector<8x256xf32>
    %392 = vector.extract_strided_slice %391 {offsets = [0, 0], sizes = [8, 128], strides = [1, 1]} : vector<8x256xf32> to vector<8x128xf32>
    %393 = vector.extract_strided_slice %391 {offsets = [0, 128], sizes = [8, 128], strides = [1, 1]} : vector<8x256xf32> to vector<8x128xf32>
    %394 = vector.extract_strided_slice %380 {offsets = [0, 256], sizes = [8, 128], strides = [1, 1]} : vector<8x384xf32> to vector<8x128xf32>
    %395 = vector.extract_strided_slice %383 {offsets = [0, 256], sizes = [8, 128], strides = [1, 1]} : vector<8x384xf32> to vector<8x128xf32>
    %396 = arith.addf %395, %2 : vector<8x128xf32>
    %397 = arith.mulf %392, %396 : vector<8x128xf32>
    %398 = arith.addf %394, %397 : vector<8x128xf32>
    %399 = math.tanh %398 : vector<8x128xf32>
    %cst_148 = arith.constant 1.000000e+00 : f32
    %400 = vector.broadcast %cst_148 : f32 to vector<8x128xf32>
    %401 = arith.subf %400, %393 : vector<8x128xf32>
    %402 = arith.mulf %401, %399 : vector<8x128xf32>
    %403 = arith.mulf %393, %343 : vector<8x128xf32>
    %404 = arith.addf %402, %403 : vector<8x128xf32>
    %405 = arith.truncf %404 : vector<8x128xf32> to vector<8x128xbf16>
    %c0_149 = arith.constant 0 : index
    %c0_150 = arith.constant 0 : index
    %406 = vector.load %arg7[%c0_149, %c0_150] : memref<128x384xbf16, #tpu.memory_space<vmem>>, vector<128x384xbf16>
    %cst_151 = arith.constant dense<0.000000e+00> : vector<8x384xf32>
    %407 = tpu.matmul %405, %406, %cst_151 {dimension_numbers = #tpu.dot_dimension_numbers<[1], [0], [0], [1], [0, 0, 1, 1], [], []>} : vector<8x128xbf16>, vector<128x384xbf16>, vector<8x384xf32> -> vector<8x384xf32>
    %c0_152 = arith.constant 0 : index
    %c0_153 = arith.constant 0 : index
    %408 = vector.load %arg9[%c0_152, %c0_153] : memref<1x384xf32, #tpu.memory_space<vmem>>, vector<1x384xf32>
    %409 = vector.broadcast %408 : vector<1x384xf32> to vector<8x384xf32>
    %410 = arith.addf %407, %409 : vector<8x384xf32>
    %411 = arith.truncf %373 : vector<8x128xf32> to vector<8x128xbf16>
    %c0_154 = arith.constant 0 : index
    %c0_155 = arith.constant 0 : index
    %412 = vector.load %arg8[%c0_154, %c0_155] : memref<128x384xbf16, #tpu.memory_space<vmem>>, vector<128x384xbf16>
    %cst_156 = arith.constant dense<0.000000e+00> : vector<8x384xf32>
    %413 = tpu.matmul %411, %412, %cst_156 {dimension_numbers = #tpu.dot_dimension_numbers<[1], [0], [0], [1], [0, 0, 1, 1], [], []>} : vector<8x128xbf16>, vector<128x384xbf16>, vector<8x384xf32> -> vector<8x384xf32>
    %414 = vector.extract_strided_slice %410 {offsets = [0, 0], sizes = [8, 256], strides = [1, 1]} : vector<8x384xf32> to vector<8x256xf32>
    %415 = vector.extract_strided_slice %413 {offsets = [0, 0], sizes = [8, 256], strides = [1, 1]} : vector<8x384xf32> to vector<8x256xf32>
    %416 = arith.addf %414, %415 : vector<8x256xf32>
    %417 = arith.negf %416 : vector<8x256xf32>
    %418 = math.exp %417 : vector<8x256xf32>
    %cst_157 = arith.constant 1.000000e+00 : f32
    %419 = vector.broadcast %cst_157 : f32 to vector<8x256xf32>
    %420 = arith.addf %419, %418 : vector<8x256xf32>
    %421 = arith.divf %419, %420 : vector<8x256xf32>
    %422 = vector.extract_strided_slice %421 {offsets = [0, 0], sizes = [8, 128], strides = [1, 1]} : vector<8x256xf32> to vector<8x128xf32>
    %423 = vector.extract_strided_slice %421 {offsets = [0, 128], sizes = [8, 128], strides = [1, 1]} : vector<8x256xf32> to vector<8x128xf32>
    %424 = vector.extract_strided_slice %410 {offsets = [0, 256], sizes = [8, 128], strides = [1, 1]} : vector<8x384xf32> to vector<8x128xf32>
    %425 = vector.extract_strided_slice %413 {offsets = [0, 256], sizes = [8, 128], strides = [1, 1]} : vector<8x384xf32> to vector<8x128xf32>
    %426 = arith.addf %425, %5 : vector<8x128xf32>
    %427 = arith.mulf %422, %426 : vector<8x128xf32>
    %428 = arith.addf %424, %427 : vector<8x128xf32>
    %429 = math.tanh %428 : vector<8x128xf32>
    %cst_158 = arith.constant 1.000000e+00 : f32
    %430 = vector.broadcast %cst_158 : f32 to vector<8x128xf32>
    %431 = arith.subf %430, %423 : vector<8x128xf32>
    %432 = arith.mulf %431, %429 : vector<8x128xf32>
    %433 = arith.mulf %423, %373 : vector<8x128xf32>
    %434 = arith.addf %432, %433 : vector<8x128xf32>
    %c7 = arith.constant 7 : index
    %c0_159 = arith.constant 0 : index
    %c0_160 = arith.constant 0 : index
    %435 = vector.load %arg1[%c7, %c0_159, %c0_160] : memref<8x8x128xbf16, #tpu.memory_space<vmem>>, vector<1x8x128xbf16>
    %436 = vector.shape_cast %435 : vector<1x8x128xbf16> to vector<8x128xbf16>
    %c0_161 = arith.constant 0 : index
    %c0_162 = arith.constant 0 : index
    %437 = vector.load %arg3[%c0_161, %c0_162] : memref<128x384xbf16, #tpu.memory_space<vmem>>, vector<128x384xbf16>
    %cst_163 = arith.constant dense<0.000000e+00> : vector<8x384xf32>
    %438 = tpu.matmul %436, %437, %cst_163 {dimension_numbers = #tpu.dot_dimension_numbers<[1], [0], [0], [1], [0, 0, 1, 1], [], []>} : vector<8x128xbf16>, vector<128x384xbf16>, vector<8x384xf32> -> vector<8x384xf32>
    %c0_164 = arith.constant 0 : index
    %c0_165 = arith.constant 0 : index
    %439 = vector.load %arg5[%c0_164, %c0_165] : memref<1x384xf32, #tpu.memory_space<vmem>>, vector<1x384xf32>
    %440 = vector.broadcast %439 : vector<1x384xf32> to vector<8x384xf32>
    %441 = arith.addf %438, %440 : vector<8x384xf32>
    %442 = arith.truncf %404 : vector<8x128xf32> to vector<8x128xbf16>
    %c0_166 = arith.constant 0 : index
    %c0_167 = arith.constant 0 : index
    %443 = vector.load %arg4[%c0_166, %c0_167] : memref<128x384xbf16, #tpu.memory_space<vmem>>, vector<128x384xbf16>
    %cst_168 = arith.constant dense<0.000000e+00> : vector<8x384xf32>
    %444 = tpu.matmul %442, %443, %cst_168 {dimension_numbers = #tpu.dot_dimension_numbers<[1], [0], [0], [1], [0, 0, 1, 1], [], []>} : vector<8x128xbf16>, vector<128x384xbf16>, vector<8x384xf32> -> vector<8x384xf32>
    %445 = vector.extract_strided_slice %441 {offsets = [0, 0], sizes = [8, 256], strides = [1, 1]} : vector<8x384xf32> to vector<8x256xf32>
    %446 = vector.extract_strided_slice %444 {offsets = [0, 0], sizes = [8, 256], strides = [1, 1]} : vector<8x384xf32> to vector<8x256xf32>
    %447 = arith.addf %445, %446 : vector<8x256xf32>
    %448 = arith.negf %447 : vector<8x256xf32>
    %449 = math.exp %448 : vector<8x256xf32>
    %cst_169 = arith.constant 1.000000e+00 : f32
    %450 = vector.broadcast %cst_169 : f32 to vector<8x256xf32>
    %451 = arith.addf %450, %449 : vector<8x256xf32>
    %452 = arith.divf %450, %451 : vector<8x256xf32>
    %453 = vector.extract_strided_slice %452 {offsets = [0, 0], sizes = [8, 128], strides = [1, 1]} : vector<8x256xf32> to vector<8x128xf32>
    %454 = vector.extract_strided_slice %452 {offsets = [0, 128], sizes = [8, 128], strides = [1, 1]} : vector<8x256xf32> to vector<8x128xf32>
    %455 = vector.extract_strided_slice %441 {offsets = [0, 256], sizes = [8, 128], strides = [1, 1]} : vector<8x384xf32> to vector<8x128xf32>
    %456 = vector.extract_strided_slice %444 {offsets = [0, 256], sizes = [8, 128], strides = [1, 1]} : vector<8x384xf32> to vector<8x128xf32>
    %457 = arith.addf %456, %2 : vector<8x128xf32>
    %458 = arith.mulf %453, %457 : vector<8x128xf32>
    %459 = arith.addf %455, %458 : vector<8x128xf32>
    %460 = math.tanh %459 : vector<8x128xf32>
    %cst_170 = arith.constant 1.000000e+00 : f32
    %461 = vector.broadcast %cst_170 : f32 to vector<8x128xf32>
    %462 = arith.subf %461, %454 : vector<8x128xf32>
    %463 = arith.mulf %462, %460 : vector<8x128xf32>
    %464 = arith.mulf %454, %404 : vector<8x128xf32>
    %465 = arith.addf %463, %464 : vector<8x128xf32>
    %466 = arith.truncf %465 : vector<8x128xf32> to vector<8x128xbf16>
    %c0_171 = arith.constant 0 : index
    %c0_172 = arith.constant 0 : index
    %467 = vector.load %arg7[%c0_171, %c0_172] : memref<128x384xbf16, #tpu.memory_space<vmem>>, vector<128x384xbf16>
    %cst_173 = arith.constant dense<0.000000e+00> : vector<8x384xf32>
    %468 = tpu.matmul %466, %467, %cst_173 {dimension_numbers = #tpu.dot_dimension_numbers<[1], [0], [0], [1], [0, 0, 1, 1], [], []>} : vector<8x128xbf16>, vector<128x384xbf16>, vector<8x384xf32> -> vector<8x384xf32>
    %c0_174 = arith.constant 0 : index
    %c0_175 = arith.constant 0 : index
    %469 = vector.load %arg9[%c0_174, %c0_175] : memref<1x384xf32, #tpu.memory_space<vmem>>, vector<1x384xf32>
    %470 = vector.broadcast %469 : vector<1x384xf32> to vector<8x384xf32>
    %471 = arith.addf %468, %470 : vector<8x384xf32>
    %472 = arith.truncf %434 : vector<8x128xf32> to vector<8x128xbf16>
    %c0_176 = arith.constant 0 : index
    %c0_177 = arith.constant 0 : index
    %473 = vector.load %arg8[%c0_176, %c0_177] : memref<128x384xbf16, #tpu.memory_space<vmem>>, vector<128x384xbf16>
    %cst_178 = arith.constant dense<0.000000e+00> : vector<8x384xf32>
    %474 = tpu.matmul %472, %473, %cst_178 {dimension_numbers = #tpu.dot_dimension_numbers<[1], [0], [0], [1], [0, 0, 1, 1], [], []>} : vector<8x128xbf16>, vector<128x384xbf16>, vector<8x384xf32> -> vector<8x384xf32>
    %475 = vector.extract_strided_slice %471 {offsets = [0, 0], sizes = [8, 256], strides = [1, 1]} : vector<8x384xf32> to vector<8x256xf32>
    %476 = vector.extract_strided_slice %474 {offsets = [0, 0], sizes = [8, 256], strides = [1, 1]} : vector<8x384xf32> to vector<8x256xf32>
    %477 = arith.addf %475, %476 : vector<8x256xf32>
    %478 = arith.negf %477 : vector<8x256xf32>
    %479 = math.exp %478 : vector<8x256xf32>
    %cst_179 = arith.constant 1.000000e+00 : f32
    %480 = vector.broadcast %cst_179 : f32 to vector<8x256xf32>
    %481 = arith.addf %480, %479 : vector<8x256xf32>
    %482 = arith.divf %480, %481 : vector<8x256xf32>
    %483 = vector.extract_strided_slice %482 {offsets = [0, 0], sizes = [8, 128], strides = [1, 1]} : vector<8x256xf32> to vector<8x128xf32>
    %484 = vector.extract_strided_slice %482 {offsets = [0, 128], sizes = [8, 128], strides = [1, 1]} : vector<8x256xf32> to vector<8x128xf32>
    %485 = vector.extract_strided_slice %471 {offsets = [0, 256], sizes = [8, 128], strides = [1, 1]} : vector<8x384xf32> to vector<8x128xf32>
    %486 = vector.extract_strided_slice %474 {offsets = [0, 256], sizes = [8, 128], strides = [1, 1]} : vector<8x384xf32> to vector<8x128xf32>
    %487 = arith.addf %486, %5 : vector<8x128xf32>
    %488 = arith.mulf %483, %487 : vector<8x128xf32>
    %489 = arith.addf %485, %488 : vector<8x128xf32>
    %490 = math.tanh %489 : vector<8x128xf32>
    %cst_180 = arith.constant 1.000000e+00 : f32
    %491 = vector.broadcast %cst_180 : f32 to vector<8x128xf32>
    %492 = arith.subf %491, %484 : vector<8x128xf32>
    %493 = arith.mulf %492, %490 : vector<8x128xf32>
    %494 = arith.mulf %484, %434 : vector<8x128xf32>
    %495 = arith.addf %493, %494 : vector<8x128xf32>
    %c0_181 = arith.constant 0 : index
    %c0_182 = arith.constant 0 : index
    %496 = vector.load %arg2[%c0_181, %c0_182] : memref<8x128xbf16, #tpu.memory_space<vmem>>, vector<8x128xbf16>
    %c0_183 = arith.constant 0 : index
    %c0_184 = arith.constant 0 : index
    %497 = vector.load %arg11[%c0_183, %c0_184] : memref<128x512xbf16, #tpu.memory_space<vmem>>, vector<128x512xbf16>
    %cst_185 = arith.constant dense<0.000000e+00> : vector<8x512xf32>
    %498 = tpu.matmul %496, %497, %cst_185 {dimension_numbers = #tpu.dot_dimension_numbers<[1], [0], [0], [1], [0, 0, 1, 1], [], []>} : vector<8x128xbf16>, vector<128x512xbf16>, vector<8x512xf32> -> vector<8x512xf32>
    %499 = arith.truncf %495 : vector<8x128xf32> to vector<8x128xbf16>
    %c0_186 = arith.constant 0 : index
    %c0_187 = arith.constant 0 : index
    %500 = vector.load %arg12[%c0_186, %c0_187] : memref<128x512xbf16, #tpu.memory_space<vmem>>, vector<128x512xbf16>
    %cst_188 = arith.constant dense<0.000000e+00> : vector<8x512xf32>
    %501 = tpu.matmul %499, %500, %cst_188 {dimension_numbers = #tpu.dot_dimension_numbers<[1], [0], [0], [1], [0, 0, 1, 1], [], []>} : vector<8x128xbf16>, vector<128x512xbf16>, vector<8x512xf32> -> vector<8x512xf32>
    %502 = arith.addf %498, %501 : vector<8x512xf32>
    %c0_189 = arith.constant 0 : index
    %c0_190 = arith.constant 0 : index
    %503 = vector.load %arg13[%c0_189, %c0_190] : memref<1x512xf32, #tpu.memory_space<vmem>>, vector<1x512xf32>
    %504 = vector.broadcast %503 : vector<1x512xf32> to vector<8x512xf32>
    %505 = arith.addf %502, %504 : vector<8x512xf32>
    %506 = arith.truncf %505 : vector<8x512xf32> to vector<8x512xbf16>
    %c0_191 = arith.constant 0 : index
    %c0_192 = arith.constant 0 : index
    %507 = vector.load %arg14[%c0_191, %c0_192] : memref<512x256xbf16, #tpu.memory_space<vmem>>, vector<512x256xbf16>
    %cst_193 = arith.constant dense<0.000000e+00> : vector<8x256xf32>
    %508 = tpu.matmul %506, %507, %cst_193 {dimension_numbers = #tpu.dot_dimension_numbers<[1], [0], [0], [1], [0, 0, 1, 1], [], []>} : vector<8x512xbf16>, vector<512x256xbf16>, vector<8x256xf32> -> vector<8x256xf32>
    %c0_194 = arith.constant 0 : index
    %c0_195 = arith.constant 0 : index
    %509 = vector.load %arg15[%c0_194, %c0_195] : memref<1x256xf32, #tpu.memory_space<vmem>>, vector<1x256xf32>
    %510 = vector.broadcast %509 : vector<1x256xf32> to vector<8x256xf32>
    %511 = arith.addf %508, %510 : vector<8x256xf32>
    %cst_196 = arith.constant 0.000000e+00 : f32
    %512 = vector.broadcast %cst_196 : f32 to vector<8x256xf32>
    %513 = arith.maximumf %511, %512 : vector<8x256xf32>
    %514 = arith.truncf %513 : vector<8x256xf32> to vector<8x256xbf16>
    %c0_197 = arith.constant 0 : index
    %c0_198 = arith.constant 0 : index
    %515 = vector.load %arg16[%c0_197, %c0_198] : memref<256x128xbf16, #tpu.memory_space<vmem>>, vector<256x128xbf16>
    %cst_199 = arith.constant dense<0.000000e+00> : vector<8x128xf32>
    %516 = tpu.matmul %514, %515, %cst_199 {dimension_numbers = #tpu.dot_dimension_numbers<[1], [0], [0], [1], [0, 0, 1, 1], [], []>} : vector<8x256xbf16>, vector<256x128xbf16>, vector<8x128xf32> -> vector<8x128xf32>
    %c0_200 = arith.constant 0 : index
    %c0_201 = arith.constant 0 : index
    %517 = vector.load %arg17[%c0_200, %c0_201] : memref<1x128xf32, #tpu.memory_space<vmem>>, vector<1x128xf32>
    %518 = vector.broadcast %517 : vector<1x128xf32> to vector<8x128xf32>
    %519 = arith.addf %516, %518 : vector<8x128xf32>
    %cst_202 = arith.constant 0.000000e+00 : f32
    %520 = vector.broadcast %cst_202 : f32 to vector<8x128xf32>
    %521 = arith.maximumf %519, %520 : vector<8x128xf32>
    %522 = arith.truncf %521 : vector<8x128xf32> to vector<8x128xbf16>
    %c0_203 = arith.constant 0 : index
    %c0_204 = arith.constant 0 : index
    %523 = vector.load %arg18[%c0_203, %c0_204] : memref<128x128xbf16, #tpu.memory_space<vmem>>, vector<128x128xbf16>
    %cst_205 = arith.constant dense<0.000000e+00> : vector<8x128xf32>
    %524 = tpu.matmul %522, %523, %cst_205 {dimension_numbers = #tpu.dot_dimension_numbers<[1], [0], [0], [1], [0, 0, 1, 1], [], []>} : vector<8x128xbf16>, vector<128x128xbf16>, vector<8x128xf32> -> vector<8x128xf32>
    %c0_206 = arith.constant 0 : index
    %c0_207 = arith.constant 0 : index
    %525 = vector.load %arg19[%c0_206, %c0_207] : memref<1x128xf32, #tpu.memory_space<vmem>>, vector<1x128xf32>
    %526 = vector.broadcast %525 : vector<1x128xf32> to vector<8x128xf32>
    %527 = arith.addf %524, %526 : vector<8x128xf32>
    %cst_208 = arith.constant dense<0xFF800000> : vector<8xf32>
    %528 = vector.multi_reduction <maximumf>, %527, %cst_208 [1] : vector<8x128xf32> to vector<8xf32>
    %529 = vector.shape_cast %528 : vector<8xf32> to vector<8x1xf32>
    %530 = vector.broadcast %529 : vector<8x1xf32> to vector<8x128xf32>
    %531 = arith.subf %527, %530 : vector<8x128xf32>
    %532 = math.exp %531 : vector<8x128xf32>
    %cst_209 = arith.constant dense<0.000000e+00> : vector<8xf32>
    %533 = vector.multi_reduction <add>, %532, %cst_209 [1] : vector<8x128xf32> to vector<8xf32>
    %534 = vector.shape_cast %533 : vector<8xf32> to vector<8x1xf32>
    %535 = math.log %534 : vector<8x1xf32>
    %536 = arith.addf %529, %535 : vector<8x1xf32>
    %537 = vector.broadcast %536 : vector<8x1xf32> to vector<8x128xf32>
    %538 = arith.subf %527, %537 : vector<8x128xf32>
    %c0_210 = arith.constant 0 : index
    %c0_211 = arith.constant 0 : index
    %539 = vector.load %arg20[%c0_210, %c0_211] : memref<8x128xf32, #tpu.memory_space<vmem>>, vector<8x128xf32>
    tpu.vector_store %arg20[%c0_210, %c0_211], %538 {strides = array<i32>} : memref<8x128xf32, #tpu.memory_space<vmem>>, vector<8x128xf32>,
    return
  }
  func.func @transform_0(%arg0: i32) -> (i32, i32, i32) {
    %c0_i32 = arith.constant 0 : i32
    %c0_i32_0 = arith.constant 0 : i32
    %c0_i32_1 = arith.constant 0 : i32
    return %c0_i32, %arg0, %c0_i32_0 : i32, i32, i32
  }
  func.func @transform_1(%arg0: i32) -> (i32, i32) {
    %c0_i32 = arith.constant 0 : i32
    %c0_i32_0 = arith.constant 0 : i32
    return %arg0, %c0_i32 : i32, i32
  }
  func.func @transform_2(%arg0: i32) -> (i32, i32) {
    %c0_i32 = arith.constant 0 : i32
    %c0_i32_0 = arith.constant 0 : i32
    %c0_i32_1 = arith.constant 0 : i32
    return %c0_i32, %c0_i32_0 : i32, i32
  }
  func.func @transform_3(%arg0: i32) -> (i32, i32) {
    %c0_i32 = arith.constant 0 : i32
    %c0_i32_0 = arith.constant 0 : i32
    %c0_i32_1 = arith.constant 0 : i32
    return %c0_i32, %c0_i32_0 : i32, i32
  }
  func.func @transform_4(%arg0: i32) -> (i32, i32) {
    %c0_i32 = arith.constant 0 : i32
    %c0_i32_0 = arith.constant 0 : i32
    %c0_i32_1 = arith.constant 0 : i32
    return %c0_i32, %c0_i32_0 : i32, i32
  }
  func.func @transform_5(%arg0: i32) -> (i32, i32) {
    %c0_i32 = arith.constant 0 : i32
    %c0_i32_0 = arith.constant 0 : i32
    %c0_i32_1 = arith.constant 0 : i32
    return %c0_i32, %c0_i32_0 : i32, i32
  }
  func.func @transform_6(%arg0: i32) -> (i32, i32) {
    %c0_i32 = arith.constant 0 : i32
    %c0_i32_0 = arith.constant 0 : i32
    %c0_i32_1 = arith.constant 0 : i32
    return %c0_i32, %c0_i32_0 : i32, i32
  }
  func.func @transform_7(%arg0: i32) -> (i32, i32) {
    %c0_i32 = arith.constant 0 : i32
    %c0_i32_0 = arith.constant 0 : i32
    %c0_i32_1 = arith.constant 0 : i32
    return %c0_i32, %c0_i32_0 : i32, i32
  }
  func.func @transform_8(%arg0: i32) -> (i32, i32) {
    %c0_i32 = arith.constant 0 : i32
    %c0_i32_0 = arith.constant 0 : i32
    %c0_i32_1 = arith.constant 0 : i32
    return %c0_i32, %c0_i32_0 : i32, i32
  }
  func.func @transform_9(%arg0: i32) -> (i32, i32) {
    %c0_i32 = arith.constant 0 : i32
    %c0_i32_0 = arith.constant 0 : i32
    %c0_i32_1 = arith.constant 0 : i32
    return %c0_i32, %c0_i32_0 : i32, i32
  }
  func.func @transform_10(%arg0: i32) -> (i32, i32) {
    %c0_i32 = arith.constant 0 : i32
    %c0_i32_0 = arith.constant 0 : i32
    %c0_i32_1 = arith.constant 0 : i32
    return %c0_i32, %c0_i32_0 : i32, i32
  }
  func.func @transform_11(%arg0: i32) -> (i32, i32) {
    %c0_i32 = arith.constant 0 : i32
    %c0_i32_0 = arith.constant 0 : i32
    %c0_i32_1 = arith.constant 0 : i32
    return %c0_i32, %c0_i32_0 : i32, i32
  }
  func.func @transform_12(%arg0: i32) -> (i32, i32) {
    %c0_i32 = arith.constant 0 : i32
    %c0_i32_0 = arith.constant 0 : i32
    %c0_i32_1 = arith.constant 0 : i32
    return %c0_i32, %c0_i32_0 : i32, i32
  }
  func.func @transform_13(%arg0: i32) -> (i32, i32) {
    %c0_i32 = arith.constant 0 : i32
    %c0_i32_0 = arith.constant 0 : i32
    %c0_i32_1 = arith.constant 0 : i32
    return %c0_i32, %c0_i32_0 : i32, i32
  }
  func.func @transform_14(%arg0: i32) -> (i32, i32) {
    %c0_i32 = arith.constant 0 : i32
    %c0_i32_0 = arith.constant 0 : i32
    %c0_i32_1 = arith.constant 0 : i32
    return %c0_i32, %c0_i32_0 : i32, i32
  }
  func.func @transform_15(%arg0: i32) -> (i32, i32) {
    %c0_i32 = arith.constant 0 : i32
    %c0_i32_0 = arith.constant 0 : i32
    %c0_i32_1 = arith.constant 0 : i32
    return %c0_i32, %c0_i32_0 : i32, i32
  }
  func.func @transform_16(%arg0: i32) -> (i32, i32) {
    %c0_i32 = arith.constant 0 : i32
    %c0_i32_0 = arith.constant 0 : i32
    %c0_i32_1 = arith.constant 0 : i32
    return %c0_i32, %c0_i32_0 : i32, i32
  }
  func.func @transform_17(%arg0: i32) -> (i32, i32) {
    %c0_i32 = arith.constant 0 : i32
    %c0_i32_0 = arith.constant 0 : i32
    %c0_i32_1 = arith.constant 0 : i32
    return %c0_i32, %c0_i32_0 : i32, i32
  }
  func.func @transform_18(%arg0: i32) -> (i32, i32) {
    %c0_i32 = arith.constant 0 : i32
    %c0_i32_0 = arith.constant 0 : i32
    %c0_i32_1 = arith.constant 0 : i32
    return %c0_i32, %c0_i32_0 : i32, i32
  }
  func.func @transform_19(%arg0: i32) -> (i32, i32) {
    %c0_i32 = arith.constant 0 : i32
    %c0_i32_0 = arith.constant 0 : i32
    return %arg0, %c0_i32 : i32, i32
  }
}

</mosaic_0001>

<llo_original>
// kernel: _lambda_.1
$region0: #{_lambda_.1}
  #allocation0 [shape = 'u32[]', space=smem, size = 0x4, offset = 0x4, fixed_abs, tag = 'smem constant byte address 0x4 - core index']
  #allocation1 [shape = 'u32[72,128]{1,0:T(1,128)}', space=vmem, size = 0x9000, scoped, tag = 'internal scratch']
  %s0 = inlined_call_operand.vmem [shape: bf16[8,8,128], index: 0, kind: input, shape index: {}]
  %s1 = inlined_call_operand.vmem [shape: bf16[8,128], index: 1, kind: input, shape index: {}]
  %s2 = inlined_call_operand.hbm [shape: bf16[128,384], index: 2, kind: input, shape index: {}]
  %s3 = inlined_call_operand.hbm [shape: bf16[128,384], index: 3, kind: input, shape index: {}]
  %s4 = inlined_call_operand.vmem [shape: f32[1,384], index: 4, kind: input, shape index: {}]
  %s5 = inlined_call_operand.vmem [shape: f32[1,128], index: 5, kind: input, shape index: {}]
  %s6 = inlined_call_operand.hbm [shape: bf16[128,384], index: 6, kind: input, shape index: {}]
  %s7 = inlined_call_operand.hbm [shape: bf16[128,384], index: 7, kind: input, shape index: {}]
  %s8 = inlined_call_operand.vmem [shape: f32[1,384], index: 8, kind: input, shape index: {}]
  %s9 = inlined_call_operand.vmem [shape: f32[1,128], index: 9, kind: input, shape index: {}]
  %s10 = inlined_call_operand.hbm [shape: bf16[128,512], index: 10, kind: input, shape index: {}]
  %s11 = inlined_call_operand.hbm [shape: bf16[128,512], index: 11, kind: input, shape index: {}]
  %s12 = inlined_call_operand.vmem [shape: f32[1,512], index: 12, kind: input, shape index: {}]
  %s13 = inlined_call_operand.hbm [shape: bf16[512,256], index: 13, kind: input, shape index: {}]
  %s14 = inlined_call_operand.vmem [shape: f32[1,256], index: 14, kind: input, shape index: {}]
  %s15 = inlined_call_operand.hbm [shape: bf16[256,128], index: 15, kind: input, shape index: {}]
  %s16 = inlined_call_operand.vmem [shape: f32[1,128], index: 16, kind: input, shape index: {}]
  %s17 = inlined_call_operand.vmem [shape: bf16[128,128], index: 17, kind: input, shape index: {}]
  %s18 = inlined_call_operand.vmem [shape: f32[1,128], index: 18, kind: input, shape index: {}]
  %s19 = inlined_call_operand.vmem [shape: f32[8,128], index: 19, kind: output, shape index: {}]
  %s20 = sld [smem:[#allocation0]]
  $region118: #{_lambda_.1} parent=0
    _
  %s22 = ssub.s32 1, %s20
  %s23 = scalar_select 0, %s22, %s20
  $region1: #{_lambda_.1} parent=0
    #allocation2 [shape = 'u8[98304]{0}', space=vmem, size = 0x18000, scoped, tag = 'input window, operand 2, single buffered']
    #allocation3 [shape = 's32[1]{0}', space=sflag, size = 0x4, scoped, tag = 'scoped memory for _lambda_.1']
    #allocation4 [shape = 'u8[98304]{0}', space=vmem, size = 0x18000, scoped, tag = 'input window, operand 3, single buffered']
    #allocation5 [shape = 's32[1]{0}', space=sflag, size = 0x4, scoped, tag = 'scoped memory for _lambda_.1']
    #allocation6 [shape = 'u8[98304]{0}', space=vmem, size = 0x18000, scoped, tag = 'input window, operand 6, single buffered']
    #allocation7 [shape = 'u8[98304]{0}', space=vmem, size = 0x18000, scoped, tag = 'input window, operand 7, single buffered']
    #allocation8 [shape = 's32[1]{0}', space=sflag, size = 0x4, scoped, tag = 'scoped memory for _lambda_.1']
    #allocation9 [shape = 'u8[131072]{0}', space=vmem, size = 0x20000, scoped, tag = 'input window, operand 10, single buffered']
    #allocation10 [shape = 'u8[131072]{0}', space=vmem, size = 0x20000, scoped, tag = 'input window, operand 11, single buffered']
    #allocation11 [shape = 's32[1]{0}', space=sflag, size = 0x4, scoped, tag = 'scoped memory for _lambda_.1']
    #allocation12 [shape = 'u8[262144]{0}', space=vmem, size = 0x40000, scoped, tag = 'input window, operand 13, single buffered']
    #allocation13 [shape = 'u8[65536]{0}', space=vmem, size = 0x10000, scoped, tag = 'input window, operand 15, single buffered']
    #allocation14 [shape = 's32[1]{0}', space=sflag, size = 0x4, scoped, tag = 'scoped memory for _lambda_.1']
    %24 = vsyncpa [#allocation3], 0
    %25 = vsyncpa [#allocation5], 0
    %26 = vsyncpa [#allocation8], 0
    %27 = vsyncpa [#allocation11], 0
    %28 = vsyncpa [#allocation14], 0
    // Predicated region
    $region2: #{_lambda_.1} parent=1 // pred_check
      _
    $region3: #{_lambda_.1} parent=1 // pred_check_branch
      %30 = sbr.rel (0) target = $region5
    $region4: #{_lambda_.1} parent=1 // pred_region
      _
    $region5: #{_lambda_.1} parent=1 // pred_fallthru
      _
    // Predicated region
    $region6: #{_lambda_.1} parent=1 // pred_check
      _
    $region7: #{_lambda_.1} parent=1 // pred_check_branch
      %32 = sbr.rel (0) target = $region9
    $region8: #{_lambda_.1} parent=1 // pred_region
      _
    $region9: #{_lambda_.1} parent=1 // pred_fallthru
      _
    // Predicated region
    $region10: #{_lambda_.1} parent=1 // pred_check
      _
    $region11: #{_lambda_.1} parent=1 // pred_check_branch
      %34 = sbr.rel (0) target = $region13
    $region12: #{_lambda_.1} parent=1 // pred_region
      %36 = vsyncadd [#allocation3], 0
      %s37 = sshll.u32 %s2, 4
      %s38 = int_to_ptr.hbm [resolvable:$true] %s37
      %s39 = sshll.u32 [#allocation2], 4
      %s40 = int_to_ptr.vmem [resolvable:$true] %s39
      %45 = dma.hbm_to_vmem [thread:$0]  %s38, 3072, %s40, [#allocation3], 192, 192, 12
    $region13: #{_lambda_.1} parent=1 // pred_fallthru
      _
    // Predicated region
    $region14: #{_lambda_.1} parent=1 // pred_check
      _
    $region15: #{_lambda_.1} parent=1 // pred_check_branch
      %47 = sbr.rel (0) target = $region17
    $region16: #{_lambda_.1} parent=1 // pred_region
      %49 = vsyncadd [#allocation5], 0
      %s50 = sshll.u32 %s3, 4
      %s51 = int_to_ptr.hbm [resolvable:$true] %s50
      %s52 = sshll.u32 [#allocation4], 4
      %s53 = int_to_ptr.vmem [resolvable:$true] %s52
      %58 = dma.hbm_to_vmem [thread:$0]  %s51, 3072, %s53, [#allocation5], 192, 192, 12
    $region17: #{_lambda_.1} parent=1 // pred_fallthru
      _
    // Predicated region
    $region18: #{_lambda_.1} parent=1 // pred_check
      _
    $region19: #{_lambda_.1} parent=1 // pred_check_branch
      %60 = sbr.rel (0) target = $region21
    $region20: #{_lambda_.1} parent=1 // pred_region
      _
    $region21: #{_lambda_.1} parent=1 // pred_fallthru
      _
    // Predicated region
    $region22: #{_lambda_.1} parent=1 // pred_check
      _
    $region23: #{_lambda_.1} parent=1 // pred_check_branch
      %62 = sbr.rel (0) target = $region25
    $region24: #{_lambda_.1} parent=1 // pred_region
      _
    $region25: #{_lambda_.1} parent=1 // pred_fallthru
      _
    // Predicated region
    $region26: #{_lambda_.1} parent=1 // pred_check
      _
    $region27: #{_lambda_.1} parent=1 // pred_check_branch
      %64 = sbr.rel (0) target = $region29
    $region28: #{_lambda_.1} parent=1 // pred_region
      %66 = vsyncadd [#allocation5], 0
      %s67 = sshll.u32 %s6, 4
      %s68 = int_to_ptr.hbm [resolvable:$true] %s67
      %s69 = sshll.u32 [#allocation6], 4
      %s70 = int_to_ptr.vmem [resolvable:$true] %s69
      %75 = dma.hbm_to_vmem [thread:$0]  %s68, 3072, %s70, [#allocation5], 192, 192, 12
    $region29: #{_lambda_.1} parent=1 // pred_fallthru
      _
    // Predicated region
    $region30: #{_lambda_.1} parent=1 // pred_check
      _
    $region31: #{_lambda_.1} parent=1 // pred_check_branch
      %77 = sbr.rel (0) target = $region33
    $region32: #{_lambda_.1} parent=1 // pred_region
      %79 = vsyncadd [#allocation8], 0
      %s80 = sshll.u32 %s7, 4
      %s81 = int_to_ptr.hbm [resolvable:$true] %s80
      %s82 = sshll.u32 [#allocation7], 4
      %s83 = int_to_ptr.vmem [resolvable:$true] %s82
      %88 = dma.hbm_to_vmem [thread:$0]  %s81, 3072, %s83, [#allocation8], 192, 192, 12
    $region33: #{_lambda_.1} parent=1 // pred_fallthru
      _
    // Predicated region
    $region34: #{_lambda_.1} parent=1 // pred_check
      _
    $region35: #{_lambda_.1} parent=1 // pred_check_branch
      %90 = sbr.rel (0) target = $region37
    $region36: #{_lambda_.1} parent=1 // pred_region
      _
    $region37: #{_lambda_.1} parent=1 // pred_fallthru
      _
    // Predicated region
    $region38: #{_lambda_.1} parent=1 // pred_check
      _
    $region39: #{_lambda_.1} parent=1 // pred_check_branch
      %92 = sbr.rel (0) target = $region41
    $region40: #{_lambda_.1} parent=1 // pred_region
      _
    $region41: #{_lambda_.1} parent=1 // pred_fallthru
      _
    // Predicated region
    $region42: #{_lambda_.1} parent=1 // pred_check
      _
    $region43: #{_lambda_.1} parent=1 // pred_check_branch
      %94 = sbr.rel (0) target = $region45
    $region44: #{_lambda_.1} parent=1 // pred_region
      %96 = vsyncadd [#allocation8], 0
      %s97 = sshll.u32 %s10, 4
      %s98 = int_to_ptr.hbm [resolvable:$true] %s97
      %s99 = sshll.u32 [#allocation9], 4
      %s100 = int_to_ptr.vmem [resolvable:$true] %s99
      %105 = dma.hbm_to_vmem [thread:$0]  %s98, 4096, %s100, [#allocation8], 256, 256, 16
    $region45: #{_lambda_.1} parent=1 // pred_fallthru
      _
    // Predicated region
    $region46: #{_lambda_.1} parent=1 // pred_check
      _
    $region47: #{_lambda_.1} parent=1 // pred_check_branch
      %107 = sbr.rel (0) target = $region49
    $region48: #{_lambda_.1} parent=1 // pred_region
      %109 = vsyncadd [#allocation11], 0
      %s110 = sshll.u32 %s11, 4
      %s111 = int_to_ptr.hbm [resolvable:$true] %s110
      %s112 = sshll.u32 [#allocation10], 4
      %s113 = int_to_ptr.vmem [resolvable:$true] %s112
      %118 = dma.hbm_to_vmem [thread:$0]  %s111, 4096, %s113, [#allocation11], 256, 256, 16
    $region49: #{_lambda_.1} parent=1 // pred_fallthru
      _
    // Predicated region
    $region50: #{_lambda_.1} parent=1 // pred_check
      _
    $region51: #{_lambda_.1} parent=1 // pred_check_branch
      %120 = sbr.rel (0) target = $region53
    $region52: #{_lambda_.1} parent=1 // pred_region
      _
    $region53: #{_lambda_.1} parent=1 // pred_fallthru
      _
    // Predicated region
    $region54: #{_lambda_.1} parent=1 // pred_check
      _
    $region55: #{_lambda_.1} parent=1 // pred_check_branch
      %122 = sbr.rel (0) target = $region57
    $region56: #{_lambda_.1} parent=1 // pred_region
      %124 = vsyncadd [#allocation11], 0
      %s125 = sshll.u32 %s13, 4
      %s126 = int_to_ptr.hbm [resolvable:$true] %s125
      %s127 = sshll.u32 [#allocation12], 4
      %s128 = int_to_ptr.vmem [resolvable:$true] %s127
      %133 = dma.hbm_to_vmem [thread:$0]  %s126, 8192, %s128, [#allocation11], 128, 128, 8
    $region57: #{_lambda_.1} parent=1 // pred_fallthru
      _
    // Predicated region
    $region58: #{_lambda_.1} parent=1 // pred_check
      _
    $region59: #{_lambda_.1} parent=1 // pred_check_branch
      %135 = sbr.rel (0) target = $region61
    $region60: #{_lambda_.1} parent=1 // pred_region
      _
    $region61: #{_lambda_.1} parent=1 // pred_fallthru
      _
    // Predicated region
    $region62: #{_lambda_.1} parent=1 // pred_check
      _
    $region63: #{_lambda_.1} parent=1 // pred_check_branch
      %137 = sbr.rel (0) target = $region65
    $region64: #{_lambda_.1} parent=1 // pred_region
      %139 = vsyncadd [#allocation14], 0
      %s140 = sshll.u32 %s15, 4
      %s141 = int_to_ptr.hbm [resolvable:$true] %s140
      %s142 = sshll.u32 [#allocation13], 4
      %s143 = int_to_ptr.vmem [resolvable:$true] %s142
      %148 = dma.hbm_to_vmem [thread:$0]  %s141, 2048, %s143, [#allocation14], 64, 64, 4
    $region65: #{_lambda_.1} parent=1 // pred_fallthru
      _
    // Predicated region
    $region66: #{_lambda_.1} parent=1 // pred_check
      _
    $region67: #{_lambda_.1} parent=1 // pred_check_branch
      %150 = sbr.rel (0) target = $region69
    $region68: #{_lambda_.1} parent=1 // pred_region
      _
    $region69: #{_lambda_.1} parent=1 // pred_fallthru
      _
    // Predicated region
    $region70: #{_lambda_.1} parent=1 // pred_check
      _
    $region71: #{_lambda_.1} parent=1 // pred_check_branch
      %152 = sbr.rel (0) target = $region73
    $region72: #{_lambda_.1} parent=1 // pred_region
      _
    $region73: #{_lambda_.1} parent=1 // pred_fallthru
      _
    // Predicated region
    $region74: #{_lambda_.1} parent=1 // pred_check
      _
    $region75: #{_lambda_.1} parent=1 // pred_check_branch
      %154 = sbr.rel (0) target = $region77
    $region76: #{_lambda_.1} parent=1 // pred_region
      _
    $region77: #{_lambda_.1} parent=1 // pred_fallthru
      _
    // Predicated region
    $region78: #{_lambda_.1} parent=1 // pred_check
      _
    $region79: #{_lambda_.1} parent=1 // pred_check_branch
      %156 = sbr.rel (0) target = $region81
    $region80: #{_lambda_.1} parent=1 // pred_region
      %158 = dma.done [#allocation3], 3072
    $region81: #{_lambda_.1} parent=1 // pred_fallthru
      _
    // Predicated region
    $region82: #{_lambda_.1} parent=1 // pred_check
      _
    $region83: #{_lambda_.1} parent=1 // pred_check_branch
      %160 = sbr.rel (0) target = $region85
    $region84: #{_lambda_.1} parent=1 // pred_region
      %162 = dma.done [#allocation5], 3072
    $region85: #{_lambda_.1} parent=1 // pred_fallthru
      _
    // Predicated region
    $region86: #{_lambda_.1} parent=1 // pred_check
      _
    $region87: #{_lambda_.1} parent=1 // pred_check_branch
      %164 = sbr.rel (0) target = $region89
    $region88: #{_lambda_.1} parent=1 // pred_region
      %166 = dma.done [#allocation5], 3072
    $region89: #{_lambda_.1} parent=1 // pred_fallthru
      _
    // Predicated region
    $region90: #{_lambda_.1} parent=1 // pred_check
      _
    $region91: #{_lambda_.1} parent=1 // pred_check_branch
      %168 = sbr.rel (0) target = $region93
    $region92: #{_lambda_.1} parent=1 // pred_region
      %170 = dma.done [#allocation8], 3072
    $region93: #{_lambda_.1} parent=1 // pred_fallthru
      _
    // Predicated region
    $region94: #{_lambda_.1} parent=1 // pred_check
      _
    $region95: #{_lambda_.1} parent=1 // pred_check_branch
      %172 = sbr.rel (0) target = $region97
    $region96: #{_lambda_.1} parent=1 // pred_region
      %174 = dma.done [#allocation8], 4096
    $region97: #{_lambda_.1} parent=1 // pred_fallthru
      _
    // Predicated region
    $region98: #{_lambda_.1} parent=1 // pred_check
      _
    $region99: #{_lambda_.1} parent=1 // pred_check_branch
      %176 = sbr.rel (0) target = $region101
    $region100: #{_lambda_.1} parent=1 // pred_region
      %178 = dma.done [#allocation11], 4096
    $region101: #{_lambda_.1} parent=1 // pred_fallthru
      _
    // Predicated region
    $region102: #{_lambda_.1} parent=1 // pred_check
      _
    $region103: #{_lambda_.1} parent=1 // pred_check_branch
      %180 = sbr.rel (0) target = $region105
    $region104: #{_lambda_.1} parent=1 // pred_region
      %182 = dma.done [#allocation11], 8192
    $region105: #{_lambda_.1} parent=1 // pred_fallthru
      _
    // Predicated region
    $region106: #{_lambda_.1} parent=1 // pred_check
      _
    $region107: #{_lambda_.1} parent=1 // pred_check_branch
      %184 = sbr.rel (0) target = $region109
    $region108: #{_lambda_.1} parent=1 // pred_region
      %186 = dma.done [#allocation14], 2048
    $region109: #{_lambda_.1} parent=1 // pred_fallthru
      _
    %v188 = vld [vmem:[%s5] sm:$0x1]
    %v190 = vperm.slane %v188, 0
    %v192 = vld [vmem:[%s9] sm:$0x1]
    %v194 = vperm.slane %v192, 0
    %v196 = vld [vmem:[%s0] sm:$0xf]
    %v197 = vld [vmem:[#allocation2] sm:$0xff]
    %v198 = vld [vmem:[#allocation2 + $0x8] sm:$0xf]
    %v199 = vld [vmem:[#allocation2 + $0xc] sm:$0xff]
    %v200 = vld [vmem:[#allocation2 + $0x14] sm:$0xf]
    %v201 = vld [vmem:[#allocation2 + $0x18] sm:$0xff]
    %v202 = vld [vmem:[#allocation2 + $0x20] sm:$0xf]
    %v203 = vld [vmem:[#allocation2 + $0x24] sm:$0xff]
    %v204 = vld [vmem:[#allocation2 + $0x2c] sm:$0xf]
    %v205 = vld [vmem:[#allocation2 + $0x30] sm:$0xff]
    %v206 = vld [vmem:[#allocation2 + $0x38] sm:$0xf]
    %v207 = vld [vmem:[#allocation2 + $0x3c] sm:$0xff]
    %v208 = vld [vmem:[#allocation2 + $0x44] sm:$0xf]
    %v209 = vld [vmem:[#allocation2 + $0x48] sm:$0xff]
    %v210 = vld [vmem:[#allocation2 + $0x50] sm:$0xf]
    %v211 = vld [vmem:[#allocation2 + $0x54] sm:$0xff]
    %v212 = vld [vmem:[#allocation2 + $0x5c] sm:$0xf]
    %v213 = vld [vmem:[#allocation2 + $0x60] sm:$0xff]
    %v214 = vld [vmem:[#allocation2 + $0x68] sm:$0xf]
    %v215 = vld [vmem:[#allocation2 + $0x6c] sm:$0xff]
    %v216 = vld [vmem:[#allocation2 + $0x74] sm:$0xf]
    %v217 = vld [vmem:[#allocation2 + $0x78] sm:$0xff]
    %v218 = vld [vmem:[#allocation2 + $0x80] sm:$0xf]
    %v219 = vld [vmem:[#allocation2 + $0x84] sm:$0xff]
    %v220 = vld [vmem:[#allocation2 + $0x8c] sm:$0xf]
    %v221 = vld [vmem:[#allocation2 + $0x90] sm:$0xff]
    %v222 = vld [vmem:[#allocation2 + $0x98] sm:$0xf]
    %v223 = vld [vmem:[#allocation2 + $0x9c] sm:$0xff]
    %v224 = vld [vmem:[#allocation2 + $0xa4] sm:$0xf]
    %v225 = vld [vmem:[#allocation2 + $0xa8] sm:$0xff]
    %v226 = vld [vmem:[#allocation2 + $0xb0] sm:$0xf]
    %v227 = vld [vmem:[#allocation2 + $0xb4] sm:$0xff]
    %v228 = vld [vmem:[#allocation2 + $0xbc] sm:$0xf]
    %v229 = vld [vmem:[%s4] sm:$0x7]
    %v231 = vperm.slane %v229, 0
    %v232 = vperm.slane %v229, 1
    %v233 = vperm.slane %v229, 2
    %v269 = vunpack.c.l.b16 %v197
    %v270 = vunpack.c.h.b16 %v197
    %v271 = vunpack.c.l.b16 %v198
    %v272 = vunpack.c.l.b16 %v199
    %v273 = vunpack.c.h.b16 %v199
    %v274 = vunpack.c.l.b16 %v200
    %v275 = vunpack.c.l.b16 %v201
    %v276 = vunpack.c.h.b16 %v201
    %v277 = vunpack.c.l.b16 %v202
    %v278 = vunpack.c.l.b16 %v203
    %v279 = vunpack.c.h.b16 %v203
    %v280 = vunpack.c.l.b16 %v204
    %v281 = vunpack.c.l.b16 %v205
    %v282 = vunpack.c.h.b16 %v205
    %v283 = vunpack.c.l.b16 %v206
    %v284 = vunpack.c.l.b16 %v207
    %v285 = vunpack.c.h.b16 %v207
    %v286 = vunpack.c.l.b16 %v208
    %v287 = vunpack.c.l.b16 %v209
    %v288 = vunpack.c.h.b16 %v209
    %v289 = vunpack.c.l.b16 %v210
    %v290 = vunpack.c.l.b16 %v211
    %v291 = vunpack.c.h.b16 %v211
    %v292 = vunpack.c.l.b16 %v212
    %v293 = vunpack.c.l.b16 %v213
    %v294 = vunpack.c.h.b16 %v213
    %v295 = vunpack.c.l.b16 %v214
    %v296 = vunpack.c.l.b16 %v215
    %v297 = vunpack.c.h.b16 %v215
    %v298 = vunpack.c.l.b16 %v216
    %v299 = vunpack.c.l.b16 %v217
    %v300 = vunpack.c.h.b16 %v217
    %v301 = vunpack.c.l.b16 %v218
    %v302 = vunpack.c.l.b16 %v219
    %v303 = vunpack.c.h.b16 %v219
    %v304 = vunpack.c.l.b16 %v220
    %v305 = vunpack.c.l.b16 %v221
    %v306 = vunpack.c.h.b16 %v221
    %v307 = vunpack.c.l.b16 %v222
    %v308 = vunpack.c.l.b16 %v223
    %v309 = vunpack.c.h.b16 %v223
    %v310 = vunpack.c.l.b16 %v224
    %v311 = vunpack.c.l.b16 %v225
    %v312 = vunpack.c.h.b16 %v225
    %v313 = vunpack.c.l.b16 %v226
    %v314 = vunpack.c.l.b16 %v227
    %v315 = vunpack.c.h.b16 %v227
    %v316 = vunpack.c.l.b16 %v228
    %v317 = vpack.c.b16 %v272, %v269
    %v318 = vpack.c.b16 %v273, %v270
    %v319 = vpack.c.b16 %v274, %v271
    %v320 = vpack.c.b16 %v278, %v275
    %v321 = vpack.c.b16 %v279, %v276
    %v322 = vpack.c.b16 %v280, %v277
    %v323 = vpack.c.b16 %v284, %v281
    %v324 = vpack.c.b16 %v285, %v282
    %v325 = vpack.c.b16 %v286, %v283
    %v326 = vpack.c.b16 %v290, %v287
    %v327 = vpack.c.b16 %v291, %v288
    %v328 = vpack.c.b16 %v292, %v289
    %v329 = vpack.c.b16 %v296, %v293
    %v330 = vpack.c.b16 %v297, %v294
    %v331 = vpack.c.b16 %v298, %v295
    %v332 = vpack.c.b16 %v302, %v299
    %v333 = vpack.c.b16 %v303, %v300
    %v334 = vpack.c.b16 %v304, %v301
    %v335 = vpack.c.b16 %v308, %v305
    %v336 = vpack.c.b16 %v309, %v306
    %v337 = vpack.c.b16 %v310, %v307
    %v338 = vpack.c.b16 %v314, %v311
    %v339 = vpack.c.b16 %v315, %v312
    %v340 = vpack.c.b16 %v316, %v313
    %365 = vmatpush.bf16.msra.mxu0 %v338
    %366 = vmatpush.bf16.msra.mxu0 %v335
    %367 = vmatpush.bf16.msra.mxu0 %v332
    %368 = vmatpush.bf16.msra.mxu0 %v329
    %369 = vmatpush.bf16.msra.mxu0 %v326
    %370 = vmatpush.bf16.msra.mxu0 %v323
    %371 = vmatpush.bf16.msra.mxu0 %v320
    %372 = vmatpush.bf16.msra.mxu0 %v317
    %373 = vmatmul.bf16.gmra.mxu0 %v196
    %v374 = vpop.f32.mrf.mxu0
    %v375 = vadd.f32 %v231, %v374
    %v376 = vpop.f32.mrf.mxu0
    %377 = vdwg.mxu0
    %378 = vmatpush.bf16.msra.mxu0 %v339
    %379 = vmatpush.bf16.msra.mxu0 %v336
    %380 = vmatpush.bf16.msra.mxu0 %v333
    %381 = vmatpush.bf16.msra.mxu0 %v330
    %382 = vmatpush.bf16.msra.mxu0 %v327
    %383 = vmatpush.bf16.msra.mxu0 %v324
    %384 = vmatpush.bf16.msra.mxu0 %v321
    %385 = vmatpush.bf16.msra.mxu0 %v318
    %386 = vmatmul.bf16.gmra.mxu0 %v196
    %v387 = vpop.f32.mrf.mxu0
    %v388 = vadd.f32 %v232, %v387
    %v389 = vpop.f32.mrf.mxu0
    %390 = vdwg.mxu0
    %391 = vmatpush.bf16.msra.mxu0 %v340
    %392 = vmatpush.bf16.msra.mxu0 %v337
    %393 = vmatpush.bf16.msra.mxu0 %v334
    %394 = vmatpush.bf16.msra.mxu0 %v331
    %395 = vmatpush.bf16.msra.mxu0 %v328
    %396 = vmatpush.bf16.msra.mxu0 %v325
    %397 = vmatpush.bf16.msra.mxu0 %v322
    %398 = vmatpush.bf16.msra.mxu0 %v319
    %399 = vmatmul.bf16.gmra.mxu0 %v196
    %v400 = vpop.f32.mrf.mxu0
    %v401 = vadd.f32 %v233, %v400
    %v402 = vpop.f32.mrf.mxu0
    %403 = vdwg.mxu0
    %v404 = vld [vmem:[#allocation4] sm:$0xff]
    %v405 = vld [vmem:[#allocation4 + $0x8] sm:$0xf]
    %v406 = vld [vmem:[#allocation4 + $0xc] sm:$0xff]
    %v407 = vld [vmem:[#allocation4 + $0x14] sm:$0xf]
    %v408 = vld [vmem:[#allocation4 + $0x18] sm:$0xff]
    %v409 = vld [vmem:[#allocation4 + $0x20] sm:$0xf]
    %v410 = vld [vmem:[#allocation4 + $0x24] sm:$0xff]
    %v411 = vld [vmem:[#allocation4 + $0x2c] sm:$0xf]
    %v412 = vld [vmem:[#allocation4 + $0x30] sm:$0xff]
    %v413 = vld [vmem:[#allocation4 + $0x38] sm:$0xf]
    %v414 = vld [vmem:[#allocation4 + $0x3c] sm:$0xff]
    %v415 = vld [vmem:[#allocation4 + $0x44] sm:$0xf]
    %v416 = vld [vmem:[#allocation4 + $0x48] sm:$0xff]
    %v417 = vld [vmem:[#allocation4 + $0x50] sm:$0xf]
    %v418 = vld [vmem:[#allocation4 + $0x54] sm:$0xff]
    %v419 = vld [vmem:[#allocation4 + $0x5c] sm:$0xf]
    %v420 = vld [vmem:[#allocation4 + $0x60] sm:$0xff]
    %v421 = vld [vmem:[#allocation4 + $0x68] sm:$0xf]
    %v422 = vld [vmem:[#allocation4 + $0x6c] sm:$0xff]
    %v423 = vld [vmem:[#allocation4 + $0x74] sm:$0xf]
    %v424 = vld [vmem:[#allocation4 + $0x78] sm:$0xff]
    %v425 = vld [vmem:[#allocation4 + $0x80] sm:$0xf]
    %v426 = vld [vmem:[#allocation4 + $0x84] sm:$0xff]
    %v427 = vld [vmem:[#allocation4 + $0x8c] sm:$0xf]
    %v428 = vld [vmem:[#allocation4 + $0x90] sm:$0xff]
    %v429 = vld [vmem:[#allocation4 + $0x98] sm:$0xf]
    %v430 = vld [vmem:[#allocation4 + $0x9c] sm:$0xff]
    %v431 = vld [vmem:[#allocation4 + $0xa4] sm:$0xf]
    %v432 = vld [vmem:[#allocation4 + $0xa8] sm:$0xff]
    %v433 = vld [vmem:[#allocation4 + $0xb0] sm:$0xf]
    %v434 = vld [vmem:[#allocation4 + $0xb4] sm:$0xff]
    %v435 = vld [vmem:[#allocation4 + $0xbc] sm:$0xf]
    %v468 = vunpack.c.l.b16 %v404
    %v469 = vunpack.c.h.b16 %v404
    %v470 = vunpack.c.l.b16 %v405
    %v471 = vunpack.c.l.b16 %v406
    %v472 = vunpack.c.h.b16 %v406
    %v473 = vunpack.c.l.b16 %v407
    %v474 = vunpack.c.l.b16 %v408
    %v475 = vunpack.c.h.b16 %v408
    %v476 = vunpack.c.l.b16 %v409
    %v477 = vunpack.c.l.b16 %v410
    %v478 = vunpack.c.h.b16 %v410
    %v479 = vunpack.c.l.b16 %v411
    %v480 = vunpack.c.l.b16 %v412
    %v481 = vunpack.c.h.b16 %v412
    %v482 = vunpack.c.l.b16 %v413
    %v483 = vunpack.c.l.b16 %v414
    %v484 = vunpack.c.h.b16 %v414
    %v485 = vunpack.c.l.b16 %v415
    %v486 = vunpack.c.l.b16 %v416
    %v487 = vunpack.c.h.b16 %v416
    %v488 = vunpack.c.l.b16 %v417
    %v489 = vunpack.c.l.b16 %v418
    %v490 = vunpack.c.h.b16 %v418
    %v491 = vunpack.c.l.b16 %v419
    %v492 = vunpack.c.l.b16 %v420
    %v493 = vunpack.c.h.b16 %v420
    %v494 = vunpack.c.l.b16 %v421
    %v495 = vunpack.c.l.b16 %v422
    %v496 = vunpack.c.h.b16 %v422
    %v497 = vunpack.c.l.b16 %v423
    %v498 = vunpack.c.l.b16 %v424
    %v499 = vunpack.c.h.b16 %v424
    %v500 = vunpack.c.l.b16 %v425
    %v501 = vunpack.c.l.b16 %v426
    %v502 = vunpack.c.h.b16 %v426
    %v503 = vunpack.c.l.b16 %v427
    %v504 = vunpack.c.l.b16 %v428
    %v505 = vunpack.c.h.b16 %v428
    %v506 = vunpack.c.l.b16 %v429
    %v507 = vunpack.c.l.b16 %v430
    %v508 = vunpack.c.h.b16 %v430
    %v509 = vunpack.c.l.b16 %v431
    %v510 = vunpack.c.l.b16 %v432
    %v511 = vunpack.c.h.b16 %v432
    %v512 = vunpack.c.l.b16 %v433
    %v513 = vunpack.c.l.b16 %v434
    %v514 = vunpack.c.h.b16 %v434
    %v515 = vunpack.c.l.b16 %v435
    %v516 = vpack.c.b16 %v471, %v468
    %v517 = vpack.c.b16 %v472, %v469
    %v518 = vpack.c.b16 %v473, %v470
    %v519 = vpack.c.b16 %v477, %v474
    %v520 = vpack.c.b16 %v478, %v475
    %v521 = vpack.c.b16 %v479, %v476
    %v522 = vpack.c.b16 %v483, %v480
    %v523 = vpack.c.b16 %v484, %v481
    %v524 = vpack.c.b16 %v485, %v482
    %v525 = vpack.c.b16 %v489, %v486
    %v526 = vpack.c.b16 %v490, %v487
    %v527 = vpack.c.b16 %v491, %v488
    %v528 = vpack.c.b16 %v495, %v492
    %v529 = vpack.c.b16 %v496, %v493
    %v530 = vpack.c.b16 %v497, %v494
    %v531 = vpack.c.b16 %v501, %v498
    %v532 = vpack.c.b16 %v502, %v499
    %v533 = vpack.c.b16 %v503, %v500
    %v534 = vpack.c.b16 %v507, %v504
    %v535 = vpack.c.b16 %v508, %v505
    %v536 = vpack.c.b16 %v509, %v506
    %v537 = vpack.c.b16 %v513, %v510
    %v538 = vpack.c.b16 %v514, %v511
    %v539 = vpack.c.b16 %v515, %v512
    %564 = vmatpush.bf16.msra.mxu0 %v537
    %565 = vmatpush.bf16.msra.mxu0 %v534
    %566 = vmatpush.bf16.msra.mxu0 %v531
    %567 = vmatpush.bf16.msra.mxu0 %v528
    %568 = vmatpush.bf16.msra.mxu0 %v525
    %569 = vmatpush.bf16.msra.mxu0 %v522
    %570 = vmatpush.bf16.msra.mxu0 %v519
    %571 = vmatpush.bf16.msra.mxu0 %v516
    %572 = vmatmul.bf16.gmra.mxu0 0
    %v573 = vpop.f32.mrf.mxu0
    %v574 = vadd.f32 0.0, %v573
    %v575 = vpop.f32.mrf.mxu0
    %576 = vdwg.mxu0
    %577 = vmatpush.bf16.msra.mxu0 %v538
    %578 = vmatpush.bf16.msra.mxu0 %v535
    %579 = vmatpush.bf16.msra.mxu0 %v532
    %580 = vmatpush.bf16.msra.mxu0 %v529
    %581 = vmatpush.bf16.msra.mxu0 %v526
    %582 = vmatpush.bf16.msra.mxu0 %v523
    %583 = vmatpush.bf16.msra.mxu0 %v520
    %584 = vmatpush.bf16.msra.mxu0 %v517
    %585 = vmatmul.bf16.gmra.mxu0 0
    %v586 = vpop.f32.mrf.mxu0
    %v587 = vadd.f32 0.0, %v586
    %v588 = vpop.f32.mrf.mxu0
    %589 = vdwg.mxu0
    %590 = vmatpush.bf16.msra.mxu0 %v539
    %591 = vmatpush.bf16.msra.mxu0 %v536
    %592 = vmatpush.bf16.msra.mxu0 %v533
    %593 = vmatpush.bf16.msra.mxu0 %v530
    %594 = vmatpush.bf16.msra.mxu0 %v527
    %595 = vmatpush.bf16.msra.mxu0 %v524
    %596 = vmatpush.bf16.msra.mxu0 %v521
    %597 = vmatpush.bf16.msra.mxu0 %v518
    %598 = vmatmul.bf16.gmra.mxu0 0
    %v599 = vpop.f32.mrf.mxu0
    %v600 = vadd.f32 0.0, %v599
    %v601 = vpop.f32.mrf.mxu0
    %602 = vdwg.mxu0
    %v603 = vadd.f32 %v375, %v574
    %v604 = vadd.f32 %v388, %v587
    %v605 = vxor.u32 %v603, 2147483648
    %v606 = vxor.u32 %v604, 2147483648
    %v607 = vmul.f32 %v605, 1.442695
    %v608 = vpow.pop %v607
    %v609 = vmul.f32 %v606, 1.442695
    %v610 = vpow.pop %v609
    %v611 = vadd.f32 %v608, 1.0
    %v612 = vadd.f32 %v610, 1.0
    %v613 = vrcp.pop %v611
    %v614 = vmul.f32 %v611, %v613
    %v615 = vsub.f32 1.0, %v614
    %v616 = vmul.f32 %v613, %v615
    %v617 = vadd.f32 %v613, %v616
    %vm618 = vweird.f32 %v611
    %vm619 = vweird.f32 %v613
    %vm620 = vmor %vm618, %vm619
    %v621 = vsel %vm620, %v613, %v617
    %v622 = vand.u32 2147483647, %v611
    %vm623 = vcmp.eq.f32.partialorder %v622, 8.507059e+37
    %v624 = vand.u32 %v611, 2147483648
    %v625 = vor.u32 1.1754944e-38, %v624
    %v626 = vsel %vm623, %v625, %v621
    %v627 = vmul.f32 1.0, %v626
    %v628 = vrcp.pop %v612
    %v629 = vmul.f32 %v612, %v628
    %v630 = vsub.f32 1.0, %v629
    %v631 = vmul.f32 %v628, %v630
    %v632 = vadd.f32 %v628, %v631
    %vm633 = vweird.f32 %v612
    %vm634 = vweird.f32 %v628
    %vm635 = vmor %vm633, %vm634
    %v636 = vsel %vm635, %v628, %v632
    %v637 = vand.u32 2147483647, %v612
    %vm638 = vcmp.eq.f32.partialorder %v637, 8.507059e+37
    %v639 = vand.u32 %v612, 2147483648
    %v640 = vor.u32 1.1754944e-38, %v639
    %v641 = vsel %vm638, %v640, %v636
    %v642 = vmul.f32 1.0, %v641
    %v643 = vadd.f32 %v600, %v190
    %v644 = vmul.f32 %v627, %v643
    %v645 = vadd.f32 %v401, %v644
    %v646 = vtanh.pop %v645
    %v647 = vsub.f32 1.0, %v642
    %v648 = vmul.f32 %v647, %v646
    %v649 = vmul.f32 %v642, 0.0
    %v650 = vadd.f32 %v648, %v649
    %v651 = vpack.c.bf16 %v650, %v650
    %v652 = vld [vmem:[#allocation6] sm:$0xff]
    %v653 = vld [vmem:[#allocation6 + $0x8] sm:$0xf]
    %v654 = vld [vmem:[#allocation6 + $0xc] sm:$0xff]
    %v655 = vld [vmem:[#allocation6 + $0x14] sm:$0xf]
    %v656 = vld [vmem:[#allocation6 + $0x18] sm:$0xff]
    %v657 = vld [vmem:[#allocation6 + $0x20] sm:$0xf]
    %v658 = vld [vmem:[#allocation6 + $0x24] sm:$0xff]
    %v659 = vld [vmem:[#allocation6 + $0x2c] sm:$0xf]
    %v660 = vld [vmem:[#allocation6 + $0x30] sm:$0xff]
    %v661 = vld [vmem:[#allocation6 + $0x38] sm:$0xf]
    %v662 = vld [vmem:[#allocation6 + $0x3c] sm:$0xff]
    %v663 = vld [vmem:[#allocation6 + $0x44] sm:$0xf]
    %v664 = vld [vmem:[#allocation6 + $0x48] sm:$0xff]
    %v665 = vld [vmem:[#allocation6 + $0x50] sm:$0xf]
    %v666 = vld [vmem:[#allocation6 + $0x54] sm:$0xff]
    %v667 = vld [vmem:[#allocation6 + $0x5c] sm:$0xf]
    %v668 = vld [vmem:[#allocation6 + $0x60] sm:$0xff]
    %v669 = vld [vmem:[#allocation6 + $0x68] sm:$0xf]
    %v670 = vld [vmem:[#allocation6 + $0x6c] sm:$0xff]
    %v671 = vld [vmem:[#allocation6 + $0x74] sm:$0xf]
    %v672 = vld [vmem:[#allocation6 + $0x78] sm:$0xff]
    %v673 = vld [vmem:[#allocation6 + $0x80] sm:$0xf]
    %v674 = vld [vmem:[#allocation6 + $0x84] sm:$0xff]
    %v675 = vld [vmem:[#allocation6 + $0x8c] sm:$0xf]
    %v676 = vld [vmem:[#allocation6 + $0x90] sm:$0xff]
    %v677 = vld [vmem:[#allocation6 + $0x98] sm:$0xf]
    %v678 = vld [vmem:[#allocation6 + $0x9c] sm:$0xff]
    %v679 = vld [vmem:[#allocation6 + $0xa4] sm:$0xf]
    %v680 = vld [vmem:[#allocation6 + $0xa8] sm:$0xff]
    %v681 = vld [vmem:[#allocation6 + $0xb0] sm:$0xf]
    %v682 = vld [vmem:[#allocation6 + $0xb4] sm:$0xff]
    %v683 = vld [vmem:[#allocation6 + $0xbc] sm:$0xf]
    %v684 = vld [vmem:[%s8] sm:$0x7]
    %v686 = vperm.slane %v684, 0
    %v687 = vperm.slane %v684, 1
    %v688 = vperm.slane %v684, 2
    %v724 = vunpack.c.l.b16 %v652
    %v725 = vunpack.c.h.b16 %v652
    %v726 = vunpack.c.l.b16 %v653
    %v727 = vunpack.c.l.b16 %v654
    %v728 = vunpack.c.h.b16 %v654
    %v729 = vunpack.c.l.b16 %v655
    %v730 = vunpack.c.l.b16 %v656
    %v731 = vunpack.c.h.b16 %v656
    %v732 = vunpack.c.l.b16 %v657
    %v733 = vunpack.c.l.b16 %v658
    %v734 = vunpack.c.h.b16 %v658
    %v735 = vunpack.c.l.b16 %v659
    %v736 = vunpack.c.l.b16 %v660
    %v737 = vunpack.c.h.b16 %v660
    %v738 = vunpack.c.l.b16 %v661
    %v739 = vunpack.c.l.b16 %v662
    %v740 = vunpack.c.h.b16 %v662
    %v741 = vunpack.c.l.b16 %v663
    %v742 = vunpack.c.l.b16 %v664
    %v743 = vunpack.c.h.b16 %v664
    %v744 = vunpack.c.l.b16 %v665
    %v745 = vunpack.c.l.b16 %v666
    %v746 = vunpack.c.h.b16 %v666
    %v747 = vunpack.c.l.b16 %v667
    %v748 = vunpack.c.l.b16 %v668
    %v749 = vunpack.c.h.b16 %v668
    %v750 = vunpack.c.l.b16 %v669
    %v751 = vunpack.c.l.b16 %v670
    %v752 = vunpack.c.h.b16 %v670
    %v753 = vunpack.c.l.b16 %v671
    %v754 = vunpack.c.l.b16 %v672
    %v755 = vunpack.c.h.b16 %v672
    %v756 = vunpack.c.l.b16 %v673
    %v757 = vunpack.c.l.b16 %v674
    %v758 = vunpack.c.h.b16 %v674
    %v759 = vunpack.c.l.b16 %v675
    %v760 = vunpack.c.l.b16 %v676
    %v761 = vunpack.c.h.b16 %v676
    %v762 = vunpack.c.l.b16 %v677
    %v763 = vunpack.c.l.b16 %v678
    %v764 = vunpack.c.h.b16 %v678
    %v765 = vunpack.c.l.b16 %v679
    %v766 = vunpack.c.l.b16 %v680
    %v767 = vunpack.c.h.b16 %v680
    %v768 = vunpack.c.l.b16 %v681
    %v769 = vunpack.c.l.b16 %v682
    %v770 = vunpack.c.h.b16 %v682
    %v771 = vunpack.c.l.b16 %v683
    %v772 = vpack.c.b16 %v727, %v724
    %v773 = vpack.c.b16 %v728, %v725
    %v774 = vpack.c.b16 %v729, %v726
    %v775 = vpack.c.b16 %v733, %v730
    %v776 = vpack.c.b16 %v734, %v731
    %v777 = vpack.c.b16 %v735, %v732
    %v778 = vpack.c.b16 %v739, %v736
    %v779 = vpack.c.b16 %v740, %v737
    %v780 = vpack.c.b16 %v741, %v738
    %v781 = vpack.c.b16 %v745, %v742
    %v782 = vpack.c.b16 %v746, %v743
    %v783 = vpack.c.b16 %v747, %v744
    %v784 = vpack.c.b16 %v751, %v748
    %v785 = vpack.c.b16 %v752, %v749
    %v786 = vpack.c.b16 %v753, %v750
    %v787 = vpack.c.b16 %v757, %v754
    %v788 = vpack.c.b16 %v758, %v755
    %v789 = vpack.c.b16 %v759, %v756
    %v790 = vpack.c.b16 %v763, %v760
    %v791 = vpack.c.b16 %v764, %v761
    %v792 = vpack.c.b16 %v765, %v762
    %v793 = vpack.c.b16 %v769, %v766
    %v794 = vpack.c.b16 %v770, %v767
    %v795 = vpack.c.b16 %v771, %v768
    %820 = vmatpush.bf16.msra.mxu0 %v793
    %821 = vmatpush.bf16.msra.mxu0 %v790
    %822 = vmatpush.bf16.msra.mxu0 %v787
    %823 = vmatpush.bf16.msra.mxu0 %v784
    %824 = vmatpush.bf16.msra.mxu0 %v781
    %825 = vmatpush.bf16.msra.mxu0 %v778
    %826 = vmatpush.bf16.msra.mxu0 %v775
    %827 = vmatpush.bf16.msra.mxu0 %v772
    %828 = vmatmul.bf16.gmra.mxu0 %v651
    %v829 = vpop.f32.mrf.mxu0
    %v830 = vadd.f32 %v686, %v829
    %v831 = vpop.f32.mrf.mxu0
    %832 = vdwg.mxu0
    %833 = vmatpush.bf16.msra.mxu0 %v794
    %834 = vmatpush.bf16.msra.mxu0 %v791
    %835 = vmatpush.bf16.msra.mxu0 %v788
    %836 = vmatpush.bf16.msra.mxu0 %v785
    %837 = vmatpush.bf16.msra.mxu0 %v782
    %838 = vmatpush.bf16.msra.mxu0 %v779
    %839 = vmatpush.bf16.msra.mxu0 %v776
    %840 = vmatpush.bf16.msra.mxu0 %v773
    %841 = vmatmul.bf16.gmra.mxu0 %v651
    %v842 = vpop.f32.mrf.mxu0
    %v843 = vadd.f32 %v687, %v842
    %v844 = vpop.f32.mrf.mxu0
    %845 = vdwg.mxu0
    %846 = vmatpush.bf16.msra.mxu0 %v795
    %847 = vmatpush.bf16.msra.mxu0 %v792
    %848 = vmatpush.bf16.msra.mxu0 %v789
    %849 = vmatpush.bf16.msra.mxu0 %v786
    %850 = vmatpush.bf16.msra.mxu0 %v783
    %851 = vmatpush.bf16.msra.mxu0 %v780
    %852 = vmatpush.bf16.msra.mxu0 %v777
    %853 = vmatpush.bf16.msra.mxu0 %v774
    %854 = vmatmul.bf16.gmra.mxu0 %v651
    %v855 = vpop.f32.mrf.mxu0
    %v856 = vadd.f32 %v688, %v855
    %v857 = vpop.f32.mrf.mxu0
    %858 = vdwg.mxu0
    %v859 = vld [vmem:[#allocation7] sm:$0xff]
    %v860 = vld [vmem:[#allocation7 + $0x8] sm:$0xf]
    %v861 = vld [vmem:[#allocation7 + $0xc] sm:$0xff]
    %v862 = vld [vmem:[#allocation7 + $0x14] sm:$0xf]
    %v863 = vld [vmem:[#allocation7 + $0x18] sm:$0xff]
    %v864 = vld [vmem:[#allocation7 + $0x20] sm:$0xf]
    %v865 = vld [vmem:[#allocation7 + $0x24] sm:$0xff]
    %v866 = vld [vmem:[#allocation7 + $0x2c] sm:$0xf]
    %v867 = vld [vmem:[#allocation7 + $0x30] sm:$0xff]
    %v868 = vld [vmem:[#allocation7 + $0x38] sm:$0xf]
    %v869 = vld [vmem:[#allocation7 + $0x3c] sm:$0xff]
    %v870 = vld [vmem:[#allocation7 + $0x44] sm:$0xf]
    %v871 = vld [vmem:[#allocation7 + $0x48] sm:$0xff]
    %v872 = vld [vmem:[#allocation7 + $0x50] sm:$0xf]
    %v873 = vld [vmem:[#allocation7 + $0x54] sm:$0xff]
    %v874 = vld [vmem:[#allocation7 + $0x5c] sm:$0xf]
    %v875 = vld [vmem:[#allocation7 + $0x60] sm:$0xff]
    %v876 = vld [vmem:[#allocation7 + $0x68] sm:$0xf]
    %v877 = vld [vmem:[#allocation7 + $0x6c] sm:$0xff]
    %v878 = vld [vmem:[#allocation7 + $0x74] sm:$0xf]
    %v879 = vld [vmem:[#allocation7 + $0x78] sm:$0xff]
    %v880 = vld [vmem:[#allocation7 + $0x80] sm:$0xf]
    %v881 = vld [vmem:[#allocation7 + $0x84] sm:$0xff]
    %v882 = vld [vmem:[#allocation7 + $0x8c] sm:$0xf]
    %v883 = vld [vmem:[#allocation7 + $0x90] sm:$0xff]
    %v884 = vld [vmem:[#allocation7 + $0x98] sm:$0xf]
    %v885 = vld [vmem:[#allocation7 + $0x9c] sm:$0xff]
    %v886 = vld [vmem:[#allocation7 + $0xa4] sm:$0xf]
    %v887 = vld [vmem:[#allocation7 + $0xa8] sm:$0xff]
    %v888 = vld [vmem:[#allocation7 + $0xb0] sm:$0xf]
    %v889 = vld [vmem:[#allocation7 + $0xb4] sm:$0xff]
    %v890 = vld [vmem:[#allocation7 + $0xbc] sm:$0xf]
    %v923 = vunpack.c.l.b16 %v859
    %v924 = vunpack.c.h.b16 %v859
    %v925 = vunpack.c.l.b16 %v860
    %v926 = vunpack.c.l.b16 %v861
    %v927 = vunpack.c.h.b16 %v861
    %v928 = vunpack.c.l.b16 %v862
    %v929 = vunpack.c.l.b16 %v863
    %v930 = vunpack.c.h.b16 %v863
    %v931 = vunpack.c.l.b16 %v864
    %v932 = vunpack.c.l.b16 %v865
    %v933 = vunpack.c.h.b16 %v865
    %v934 = vunpack.c.l.b16 %v866
    %v935 = vunpack.c.l.b16 %v867
    %v936 = vunpack.c.h.b16 %v867
    %v937 = vunpack.c.l.b16 %v868
    %v938 = vunpack.c.l.b16 %v869
    %v939 = vunpack.c.h.b16 %v869
    %v940 = vunpack.c.l.b16 %v870
    %v941 = vunpack.c.l.b16 %v871
    %v942 = vunpack.c.h.b16 %v871
    %v943 = vunpack.c.l.b16 %v872
    %v944 = vunpack.c.l.b16 %v873
    %v945 = vunpack.c.h.b16 %v873
    %v946 = vunpack.c.l.b16 %v874
    %v947 = vunpack.c.l.b16 %v875
    %v948 = vunpack.c.h.b16 %v875
    %v949 = vunpack.c.l.b16 %v876
    %v950 = vunpack.c.l.b16 %v877
    %v951 = vunpack.c.h.b16 %v877
    %v952 = vunpack.c.l.b16 %v878
    %v953 = vunpack.c.l.b16 %v879
    %v954 = vunpack.c.h.b16 %v879
    %v955 = vunpack.c.l.b16 %v880
    %v956 = vunpack.c.l.b16 %v881
    %v957 = vunpack.c.h.b16 %v881
    %v958 = vunpack.c.l.b16 %v882
    %v959 = vunpack.c.l.b16 %v883
    %v960 = vunpack.c.h.b16 %v883
    %v961 = vunpack.c.l.b16 %v884
    %v962 = vunpack.c.l.b16 %v885
    %v963 = vunpack.c.h.b16 %v885
    %v964 = vunpack.c.l.b16 %v886
    %v965 = vunpack.c.l.b16 %v887
    %v966 = vunpack.c.h.b16 %v887
    %v967 = vunpack.c.l.b16 %v888
    %v968 = vunpack.c.l.b16 %v889
    %v969 = vunpack.c.h.b16 %v889
    %v970 = vunpack.c.l.b16 %v890
    %v971 = vpack.c.b16 %v926, %v923
    %v972 = vpack.c.b16 %v927, %v924
    %v973 = vpack.c.b16 %v928, %v925
    %v974 = vpack.c.b16 %v932, %v929
    %v975 = vpack.c.b16 %v933, %v930
    %v976 = vpack.c.b16 %v934, %v931
    %v977 = vpack.c.b16 %v938, %v935
    %v978 = vpack.c.b16 %v939, %v936
    %v979 = vpack.c.b16 %v940, %v937
    %v980 = vpack.c.b16 %v944, %v941
    %v981 = vpack.c.b16 %v945, %v942
    %v982 = vpack.c.b16 %v946, %v943
    %v983 = vpack.c.b16 %v950, %v947
    %v984 = vpack.c.b16 %v951, %v948
    %v985 = vpack.c.b16 %v952, %v949
    %v986 = vpack.c.b16 %v956, %v953
    %v987 = vpack.c.b16 %v957, %v954
    %v988 = vpack.c.b16 %v958, %v955
    %v989 = vpack.c.b16 %v962, %v959
    %v990 = vpack.c.b16 %v963, %v960
    %v991 = vpack.c.b16 %v964, %v961
    %v992 = vpack.c.b16 %v968, %v965
    %v993 = vpack.c.b16 %v969, %v966
    %v994 = vpack.c.b16 %v970, %v967
    %1019 = vmatpush.bf16.msra.mxu0 %v992
    %1020 = vmatpush.bf16.msra.mxu0 %v989
    %1021 = vmatpush.bf16.msra.mxu0 %v986
    %1022 = vmatpush.bf16.msra.mxu0 %v983
    %1023 = vmatpush.bf16.msra.mxu0 %v980
    %1024 = vmatpush.bf16.msra.mxu0 %v977
    %1025 = vmatpush.bf16.msra.mxu0 %v974
    %1026 = vmatpush.bf16.msra.mxu0 %v971
    %1027 = vmatmul.bf16.gmra.mxu0 0
    %v1028 = vpop.f32.mrf.mxu0
    %v1029 = vadd.f32 0.0, %v1028
    %v1030 = vpop.f32.mrf.mxu0
    %1031 = vdwg.mxu0
    %1032 = vmatpush.bf16.msra.mxu0 %v993
    %1033 = vmatpush.bf16.msra.mxu0 %v990
    %1034 = vmatpush.bf16.msra.mxu0 %v987
    %1035 = vmatpush.bf16.msra.mxu0 %v984
    %1036 = vmatpush.bf16.msra.mxu0 %v981
    %1037 = vmatpush.bf16.msra.mxu0 %v978
    %1038 = vmatpush.bf16.msra.mxu0 %v975
    %1039 = vmatpush.bf16.msra.mxu0 %v972
    %1040 = vmatmul.bf16.gmra.mxu0 0
    %v1041 = vpop.f32.mrf.mxu0
    %v1042 = vadd.f32 0.0, %v1041
    %v1043 = vpop.f32.mrf.mxu0
    %1044 = vdwg.mxu0
    %1045 = vmatpush.bf16.msra.mxu0 %v994
    %1046 = vmatpush.bf16.msra.mxu0 %v991
    %1047 = vmatpush.bf16.msra.mxu0 %v988
    %1048 = vmatpush.bf16.msra.mxu0 %v985
    %1049 = vmatpush.bf16.msra.mxu0 %v982
    %1050 = vmatpush.bf16.msra.mxu0 %v979
    %1051 = vmatpush.bf16.msra.mxu0 %v976
    %1052 = vmatpush.bf16.msra.mxu0 %v973
    %1053 = vmatmul.bf16.gmra.mxu0 0
    %v1054 = vpop.f32.mrf.mxu0
    %v1055 = vadd.f32 0.0, %v1054
    %v1056 = vpop.f32.mrf.mxu0
    %1057 = vdwg.mxu0
    %v1058 = vadd.f32 %v830, %v1029
    %v1059 = vadd.f32 %v843, %v1042
    %v1060 = vxor.u32 %v1058, 2147483648
    %v1061 = vxor.u32 %v1059, 2147483648
    %v1062 = vmul.f32 %v1060, 1.442695
    %v1063 = vpow.pop %v1062
    %v1064 = vmul.f32 %v1061, 1.442695
    %v1065 = vpow.pop %v1064
    %v1066 = vadd.f32 %v1063, 1.0
    %v1067 = vadd.f32 %v1065, 1.0
    %v1068 = vrcp.pop %v1066
    %v1069 = vmul.f32 %v1066, %v1068
    %v1070 = vsub.f32 1.0, %v1069
    %v1071 = vmul.f32 %v1068, %v1070
    %v1072 = vadd.f32 %v1068, %v1071
    %vm1073 = vweird.f32 %v1066
    %vm1074 = vweird.f32 %v1068
    %vm1075 = vmor %vm1073, %vm1074
    %v1076 = vsel %vm1075, %v1068, %v1072
    %v1077 = vand.u32 2147483647, %v1066
    %vm1078 = vcmp.eq.f32.partialorder %v1077, 8.507059e+37
    %v1079 = vand.u32 %v1066, 2147483648
    %v1080 = vor.u32 1.1754944e-38, %v1079
    %v1081 = vsel %vm1078, %v1080, %v1076
    %v1082 = vmul.f32 1.0, %v1081
    %v1083 = vrcp.pop %v1067
    %v1084 = vmul.f32 %v1067, %v1083
    %v1085 = vsub.f32 1.0, %v1084
    %v1086 = vmul.f32 %v1083, %v1085
    %v1087 = vadd.f32 %v1083, %v1086
    %vm1088 = vweird.f32 %v1067
    %vm1089 = vweird.f32 %v1083
    %vm1090 = vmor %vm1088, %vm1089
    %v1091 = vsel %vm1090, %v1083, %v1087
    %v1092 = vand.u32 2147483647, %v1067
    %vm1093 = vcmp.eq.f32.partialorder %v1092, 8.507059e+37
    %v1094 = vand.u32 %v1067, 2147483648
    %v1095 = vor.u32 1.1754944e-38, %v1094
    %v1096 = vsel %vm1093, %v1095, %v1091
    %v1097 = vmul.f32 1.0, %v1096
    %v1098 = vadd.f32 %v1055, %v194
    %v1099 = vmul.f32 %v1082, %v1098
    %v1100 = vadd.f32 %v856, %v1099
    %v1101 = vtanh.pop %v1100
    %v1102 = vsub.f32 1.0, %v1097
    %v1103 = vmul.f32 %v1102, %v1101
    %v1104 = vmul.f32 %v1097, 0.0
    %v1105 = vadd.f32 %v1103, %v1104
    %s1106 = scalar_lea.vmem %s0, 4
    %v1107 = vld [vmem:[%s1106] sm:$0xf]
    %1108 = vmatpush.bf16.msra.mxu0 %v338
    %1109 = vmatpush.bf16.msra.mxu0 %v335
    %1110 = vmatpush.bf16.msra.mxu0 %v332
    %1111 = vmatpush.bf16.msra.mxu0 %v329
    %1112 = vmatpush.bf16.msra.mxu0 %v326
    %1113 = vmatpush.bf16.msra.mxu0 %v323
    %1114 = vmatpush.bf16.msra.mxu0 %v320
    %1115 = vmatpush.bf16.msra.mxu0 %v317
    %1116 = vmatmul.bf16.gmra.mxu0 %v1107
    %v1117 = vpop.f32.mrf.mxu0
    %v1118 = vadd.f32 %v231, %v1117
    %v1119 = vpop.f32.mrf.mxu0
    %1120 = vdwg.mxu0
    %1121 = vmatpush.bf16.msra.mxu0 %v339
    %1122 = vmatpush.bf16.msra.mxu0 %v336
    %1123 = vmatpush.bf16.msra.mxu0 %v333
    %1124 = vmatpush.bf16.msra.mxu0 %v330
    %1125 = vmatpush.bf16.msra.mxu0 %v327
    %1126 = vmatpush.bf16.msra.mxu0 %v324
    %1127 = vmatpush.bf16.msra.mxu0 %v321
    %1128 = vmatpush.bf16.msra.mxu0 %v318
    %1129 = vmatmul.bf16.gmra.mxu0 %v1107
    %v1130 = vpop.f32.mrf.mxu0
    %v1131 = vadd.f32 %v232, %v1130
    %v1132 = vpop.f32.mrf.mxu0
    %1133 = vdwg.mxu0
    %1134 = vmatpush.bf16.msra.mxu0 %v340
    %1135 = vmatpush.bf16.msra.mxu0 %v337
    %1136 = vmatpush.bf16.msra.mxu0 %v334
    %1137 = vmatpush.bf16.msra.mxu0 %v331
    %1138 = vmatpush.bf16.msra.mxu0 %v328
    %1139 = vmatpush.bf16.msra.mxu0 %v325
    %1140 = vmatpush.bf16.msra.mxu0 %v322
    %1141 = vmatpush.bf16.msra.mxu0 %v319
    %1142 = vmatmul.bf16.gmra.mxu0 %v1107
    %v1143 = vpop.f32.mrf.mxu0
    %v1144 = vadd.f32 %v233, %v1143
    %v1145 = vpop.f32.mrf.mxu0
    %1146 = vdwg.mxu0
    %1147 = vmatpush.bf16.msra.mxu0 %v537
    %1148 = vmatpush.bf16.msra.mxu0 %v534
    %1149 = vmatpush.bf16.msra.mxu0 %v531
    %1150 = vmatpush.bf16.msra.mxu0 %v528
    %1151 = vmatpush.bf16.msra.mxu0 %v525
    %1152 = vmatpush.bf16.msra.mxu0 %v522
    %1153 = vmatpush.bf16.msra.mxu0 %v519
    %1154 = vmatpush.bf16.msra.mxu0 %v516
    %1155 = vmatmul.bf16.gmra.mxu0 %v651
    %v1156 = vpop.f32.mrf.mxu0
    %v1157 = vadd.f32 0.0, %v1156
    %v1158 = vpop.f32.mrf.mxu0
    %1159 = vdwg.mxu0
    %1160 = vmatpush.bf16.msra.mxu0 %v538
    %1161 = vmatpush.bf16.msra.mxu0 %v535
    %1162 = vmatpush.bf16.msra.mxu0 %v532
    %1163 = vmatpush.bf16.msra.mxu0 %v529
    %1164 = vmatpush.bf16.msra.mxu0 %v526
    %1165 = vmatpush.bf16.msra.mxu0 %v523
    %1166 = vmatpush.bf16.msra.mxu0 %v520
    %1167 = vmatpush.bf16.msra.mxu0 %v517
    %1168 = vmatmul.bf16.gmra.mxu0 %v651
    %v1169 = vpop.f32.mrf.mxu0
    %v1170 = vadd.f32 0.0, %v1169
    %v1171 = vpop.f32.mrf.mxu0
    %1172 = vdwg.mxu0
    %1173 = vmatpush.bf16.msra.mxu0 %v539
    %1174 = vmatpush.bf16.msra.mxu0 %v536
    %1175 = vmatpush.bf16.msra.mxu0 %v533
    %1176 = vmatpush.bf16.msra.mxu0 %v530
    %1177 = vmatpush.bf16.msra.mxu0 %v527
    %1178 = vmatpush.bf16.msra.mxu0 %v524
    %1179 = vmatpush.bf16.msra.mxu0 %v521
    %1180 = vmatpush.bf16.msra.mxu0 %v518
    %1181 = vmatmul.bf16.gmra.mxu0 %v651
    %v1182 = vpop.f32.mrf.mxu0
    %v1183 = vadd.f32 0.0, %v1182
    %v1184 = vpop.f32.mrf.mxu0
    %1185 = vdwg.mxu0
    %v1186 = vadd.f32 %v1118, %v1157
    %v1187 = vadd.f32 %v1131, %v1170
    %v1188 = vxor.u32 %v1186, 2147483648
    %v1189 = vxor.u32 %v1187, 2147483648
    %v1190 = vmul.f32 %v1188, 1.442695
    %v1191 = vpow.pop %v1190
    %v1192 = vmul.f32 %v1189, 1.442695
    %v1193 = vpow.pop %v1192
    %v1194 = vadd.f32 %v1191, 1.0
    %v1195 = vadd.f32 %v1193, 1.0
    %v1196 = vrcp.pop %v1194
    %v1197 = vmul.f32 %v1194, %v1196
    %v1198 = vsub.f32 1.0, %v1197
    %v1199 = vmul.f32 %v1196, %v1198
    %v1200 = vadd.f32 %v1196, %v1199
    %vm1201 = vweird.f32 %v1194
    %vm1202 = vweird.f32 %v1196
    %vm1203 = vmor %vm1201, %vm1202
    %v1204 = vsel %vm1203, %v1196, %v1200
    %v1205 = vand.u32 2147483647, %v1194
    %vm1206 = vcmp.eq.f32.partialorder %v1205, 8.507059e+37
    %v1207 = vand.u32 %v1194, 2147483648
    %v1208 = vor.u32 1.1754944e-38, %v1207
    %v1209 = vsel %vm1206, %v1208, %v1204
    %v1210 = vmul.f32 1.0, %v1209
    %v1211 = vrcp.pop %v1195
    %v1212 = vmul.f32 %v1195, %v1211
    %v1213 = vsub.f32 1.0, %v1212
    %v1214 = vmul.f32 %v1211, %v1213
    %v1215 = vadd.f32 %v1211, %v1214
    %vm1216 = vweird.f32 %v1195
    %vm1217 = vweird.f32 %v1211
    %vm1218 = vmor %vm1216, %vm1217
    %v1219 = vsel %vm1218, %v1211, %v1215
    %v1220 = vand.u32 2147483647, %v1195
    %vm1221 = vcmp.eq.f32.partialorder %v1220, 8.507059e+37
    %v1222 = vand.u32 %v1195, 2147483648
    %v1223 = vor.u32 1.1754944e-38, %v1222
    %v1224 = vsel %vm1221, %v1223, %v1219
    %v1225 = vmul.f32 1.0, %v1224
    %v1226 = vadd.f32 %v1183, %v190
    %v1227 = vmul.f32 %v1210, %v1226
    %v1228 = vadd.f32 %v1144, %v1227
    %v1229 = vtanh.pop %v1228
    %v1230 = vsub.f32 1.0, %v1225
    %v1231 = vmul.f32 %v1230, %v1229
    %v1232 = vmul.f32 %v1225, %v650
    %v1233 = vadd.f32 %v1231, %v1232
    %v1234 = vpack.c.bf16 %v1233, %v1233
    %1235 = vmatpush.bf16.msra.mxu0 %v793
    %1236 = vmatpush.bf16.msra.mxu0 %v790
    %1237 = vmatpush.bf16.msra.mxu0 %v787
    %1238 = vmatpush.bf16.msra.mxu0 %v784
    %1239 = vmatpush.bf16.msra.mxu0 %v781
    %1240 = vmatpush.bf16.msra.mxu0 %v778
    %1241 = vmatpush.bf16.msra.mxu0 %v775
    %1242 = vmatpush.bf16.msra.mxu0 %v772
    %1243 = vmatmul.bf16.gmra.mxu0 %v1234
    %v1244 = vpop.f32.mrf.mxu0
    %v1245 = vadd.f32 %v686, %v1244
    %v1246 = vpop.f32.mrf.mxu0
    %1247 = vdwg.mxu0
    %1248 = vmatpush.bf16.msra.mxu0 %v794
    %1249 = vmatpush.bf16.msra.mxu0 %v791
    %1250 = vmatpush.bf16.msra.mxu0 %v788
    %1251 = vmatpush.bf16.msra.mxu0 %v785
    %1252 = vmatpush.bf16.msra.mxu0 %v782
    %1253 = vmatpush.bf16.msra.mxu0 %v779
    %1254 = vmatpush.bf16.msra.mxu0 %v776
    %1255 = vmatpush.bf16.msra.mxu0 %v773
    %1256 = vmatmul.bf16.gmra.mxu0 %v1234
    %v1257 = vpop.f32.mrf.mxu0
    %v1258 = vadd.f32 %v687, %v1257
    %v1259 = vpop.f32.mrf.mxu0
    %1260 = vdwg.mxu0
    %1261 = vmatpush.bf16.msra.mxu0 %v795
    %1262 = vmatpush.bf16.msra.mxu0 %v792
    %1263 = vmatpush.bf16.msra.mxu0 %v789
    %1264 = vmatpush.bf16.msra.mxu0 %v786
    %1265 = vmatpush.bf16.msra.mxu0 %v783
    %1266 = vmatpush.bf16.msra.mxu0 %v780
    %1267 = vmatpush.bf16.msra.mxu0 %v777
    %1268 = vmatpush.bf16.msra.mxu0 %v774
    %1269 = vmatmul.bf16.gmra.mxu0 %v1234
    %v1270 = vpop.f32.mrf.mxu0
    %v1271 = vadd.f32 %v688, %v1270
    %v1272 = vpop.f32.mrf.mxu0
    %1273 = vdwg.mxu0
    %v1274 = vpack.c.bf16 %v1105, %v1105
    %1275 = vmatpush.bf16.msra.mxu0 %v992
    %1276 = vmatpush.bf16.msra.mxu0 %v989
    %1277 = vmatpush.bf16.msra.mxu0 %v986
    %1278 = vmatpush.bf16.msra.mxu0 %v983
    %1279 = vmatpush.bf16.msra.mxu0 %v980
    %1280 = vmatpush.bf16.msra.mxu0 %v977
    %1281 = vmatpush.bf16.msra.mxu0 %v974
    %1282 = vmatpush.bf16.msra.mxu0 %v971
    %1283 = vmatmul.bf16.gmra.mxu0 %v1274
    %v1284 = vpop.f32.mrf.mxu0
    %v1285 = vadd.f32 0.0, %v1284
    %v1286 = vpop.f32.mrf.mxu0
    %1287 = vdwg.mxu0
    %1288 = vmatpush.bf16.msra.mxu0 %v993
    %1289 = vmatpush.bf16.msra.mxu0 %v990
    %1290 = vmatpush.bf16.msra.mxu0 %v987
    %1291 = vmatpush.bf16.msra.mxu0 %v984
    %1292 = vmatpush.bf16.msra.mxu0 %v981
    %1293 = vmatpush.bf16.msra.mxu0 %v978
    %1294 = vmatpush.bf16.msra.mxu0 %v975
    %1295 = vmatpush.bf16.msra.mxu0 %v972
    %1296 = vmatmul.bf16.gmra.mxu0 %v1274
    %v1297 = vpop.f32.mrf.mxu0
    %v1298 = vadd.f32 0.0, %v1297
    %v1299 = vpop.f32.mrf.mxu0
    %1300 = vdwg.mxu0
    %1301 = vmatpush.bf16.msra.mxu0 %v994
    %1302 = vmatpush.bf16.msra.mxu0 %v991
    %1303 = vmatpush.bf16.msra.mxu0 %v988
    %1304 = vmatpush.bf16.msra.mxu0 %v985
    %1305 = vmatpush.bf16.msra.mxu0 %v982
    %1306 = vmatpush.bf16.msra.mxu0 %v979
    %1307 = vmatpush.bf16.msra.mxu0 %v976
    %1308 = vmatpush.bf16.msra.mxu0 %v973
    %1309 = vmatmul.bf16.gmra.mxu0 %v1274
    %v1310 = vpop.f32.mrf.mxu0
    %v1311 = vadd.f32 0.0, %v1310
    %v1312 = vpop.f32.mrf.mxu0
    %1313 = vdwg.mxu0
    %v1314 = vadd.f32 %v1245, %v1285
    %v1315 = vadd.f32 %v1258, %v1298
    %v1316 = vxor.u32 %v1314, 2147483648
    %v1317 = vxor.u32 %v1315, 2147483648
    %v1318 = vmul.f32 %v1316, 1.442695
    %v1319 = vpow.pop %v1318
    %v1320 = vmul.f32 %v1317, 1.442695
    %v1321 = vpow.pop %v1320
    %v1322 = vadd.f32 %v1319, 1.0
    %v1323 = vadd.f32 %v1321, 1.0
    %v1324 = vrcp.pop %v1322
    %v1325 = vmul.f32 %v1322, %v1324
    %v1326 = vsub.f32 1.0, %v1325
    %v1327 = vmul.f32 %v1324, %v1326
    %v1328 = vadd.f32 %v1324, %v1327
    %vm1329 = vweird.f32 %v1322
    %vm1330 = vweird.f32 %v1324
    %vm1331 = vmor %vm1329, %vm1330
    %v1332 = vsel %vm1331, %v1324, %v1328
    %v1333 = vand.u32 2147483647, %v1322
    %vm1334 = vcmp.eq.f32.partialorder %v1333, 8.507059e+37
    %v1335 = vand.u32 %v1322, 2147483648
    %v1336 = vor.u32 1.1754944e-38, %v1335
    %v1337 = vsel %vm1334, %v1336, %v1332
    %v1338 = vmul.f32 1.0, %v1337
    %v1339 = vrcp.pop %v1323
    %v1340 = vmul.f32 %v1323, %v1339
    %v1341 = vsub.f32 1.0, %v1340
    %v1342 = vmul.f32 %v1339, %v1341
    %v1343 = vadd.f32 %v1339, %v1342
    %vm1344 = vweird.f32 %v1323
    %vm1345 = vweird.f32 %v1339
    %vm1346 = vmor %vm1344, %vm1345
    %v1347 = vsel %vm1346, %v1339, %v1343
    %v1348 = vand.u32 2147483647, %v1323
    %vm1349 = vcmp.eq.f32.partialorder %v1348, 8.507059e+37
    %v1350 = vand.u32 %v1323, 2147483648
    %v1351 = vor.u32 1.1754944e-38, %v1350
    %v1352 = vsel %vm1349, %v1351, %v1347
    %v1353 = vmul.f32 1.0, %v1352
    %v1354 = vadd.f32 %v1311, %v194
    %v1355 = vmul.f32 %v1338, %v1354
    %v1356 = vadd.f32 %v1271, %v1355
    %v1357 = vtanh.pop %v1356
    %v1358 = vsub.f32 1.0, %v1353
    %v1359 = vmul.f32 %v1358, %v1357
    %v1360 = vmul.f32 %v1353, %v1105
    %v1361 = vadd.f32 %v1359, %v1360
    %s1362 = scalar_lea.vmem %s0, 8
    %v1363 = vld [vmem:[%s1362] sm:$0xf]
    %1364 = vmatpush.bf16.msra.mxu0 %v338
    %1365 = vmatpush.bf16.msra.mxu0 %v335
    %1366 = vmatpush.bf16.msra.mxu0 %v332
    %1367 = vmatpush.bf16.msra.mxu0 %v329
    %1368 = vmatpush.bf16.msra.mxu0 %v326
    %1369 = vmatpush.bf16.msra.mxu0 %v323
    %1370 = vmatpush.bf16.msra.mxu0 %v320
    %1371 = vmatpush.bf16.msra.mxu0 %v317
    %1372 = vmatmul.bf16.gmra.mxu0 %v1363
    %v1373 = vpop.f32.mrf.mxu0
    %v1374 = vadd.f32 %v231, %v1373
    %v1375 = vpop.f32.mrf.mxu0
    %1376 = vdwg.mxu0
    %1377 = vmatpush.bf16.msra.mxu0 %v339
    %1378 = vmatpush.bf16.msra.mxu0 %v336
    %1379 = vmatpush.bf16.msra.mxu0 %v333
    %1380 = vmatpush.bf16.msra.mxu0 %v330
    %1381 = vmatpush.bf16.msra.mxu0 %v327
    %1382 = vmatpush.bf16.msra.mxu0 %v324
    %1383 = vmatpush.bf16.msra.mxu0 %v321
    %1384 = vmatpush.bf16.msra.mxu0 %v318
    %1385 = vmatmul.bf16.gmra.mxu0 %v1363
    %v1386 = vpop.f32.mrf.mxu0
    %v1387 = vadd.f32 %v232, %v1386
    %v1388 = vpop.f32.mrf.mxu0
    %1389 = vdwg.mxu0
    %1390 = vmatpush.bf16.msra.mxu0 %v340
    %1391 = vmatpush.bf16.msra.mxu0 %v337
    %1392 = vmatpush.bf16.msra.mxu0 %v334
    %1393 = vmatpush.bf16.msra.mxu0 %v331
    %1394 = vmatpush.bf16.msra.mxu0 %v328
    %1395 = vmatpush.bf16.msra.mxu0 %v325
    %1396 = vmatpush.bf16.msra.mxu0 %v322
    %1397 = vmatpush.bf16.msra.mxu0 %v319
    %1398 = vmatmul.bf16.gmra.mxu0 %v1363
    %v1399 = vpop.f32.mrf.mxu0
    %v1400 = vadd.f32 %v233, %v1399
    %v1401 = vpop.f32.mrf.mxu0
    %1402 = vdwg.mxu0
    %1403 = vmatpush.bf16.msra.mxu0 %v537
    %1404 = vmatpush.bf16.msra.mxu0 %v534
    %1405 = vmatpush.bf16.msra.mxu0 %v531
    %1406 = vmatpush.bf16.msra.mxu0 %v528
    %1407 = vmatpush.bf16.msra.mxu0 %v525
    %1408 = vmatpush.bf16.msra.mxu0 %v522
    %1409 = vmatpush.bf16.msra.mxu0 %v519
    %1410 = vmatpush.bf16.msra.mxu0 %v516
    %1411 = vmatmul.bf16.gmra.mxu0 %v1234
    %v1412 = vpop.f32.mrf.mxu0
    %v1413 = vadd.f32 0.0, %v1412
    %v1414 = vpop.f32.mrf.mxu0
    %1415 = vdwg.mxu0
    %1416 = vmatpush.bf16.msra.mxu0 %v538
    %1417 = vmatpush.bf16.msra.mxu0 %v535
    %1418 = vmatpush.bf16.msra.mxu0 %v532
    %1419 = vmatpush.bf16.msra.mxu0 %v529
    %1420 = vmatpush.bf16.msra.mxu0 %v526
    %1421 = vmatpush.bf16.msra.mxu0 %v523
    %1422 = vmatpush.bf16.msra.mxu0 %v520
    %1423 = vmatpush.bf16.msra.mxu0 %v517
    %1424 = vmatmul.bf16.gmra.mxu0 %v1234
    %v1425 = vpop.f32.mrf.mxu0
    %v1426 = vadd.f32 0.0, %v1425
    %v1427 = vpop.f32.mrf.mxu0
    %1428 = vdwg.mxu0
    %1429 = vmatpush.bf16.msra.mxu0 %v539
    %1430 = vmatpush.bf16.msra.mxu0 %v536
    %1431 = vmatpush.bf16.msra.mxu0 %v533
    %1432 = vmatpush.bf16.msra.mxu0 %v530
    %1433 = vmatpush.bf16.msra.mxu0 %v527
    %1434 = vmatpush.bf16.msra.mxu0 %v524
    %1435 = vmatpush.bf16.msra.mxu0 %v521
    %1436 = vmatpush.bf16.msra.mxu0 %v518
    %1437 = vmatmul.bf16.gmra.mxu0 %v1234
    %v1438 = vpop.f32.mrf.mxu0
    %v1439 = vadd.f32 0.0, %v1438
    %v1440 = vpop.f32.mrf.mxu0
    %1441 = vdwg.mxu0
    %v1442 = vadd.f32 %v1374, %v1413
    %v1443 = vadd.f32 %v1387, %v1426
    %v1444 = vxor.u32 %v1442, 2147483648
    %v1445 = vxor.u32 %v1443, 2147483648
    %v1446 = vmul.f32 %v1444, 1.442695
    %v1447 = vpow.pop %v1446
    %v1448 = vmul.f32 %v1445, 1.442695
    %v1449 = vpow.pop %v1448
    %v1450 = vadd.f32 %v1447, 1.0
    %v1451 = vadd.f32 %v1449, 1.0
    %v1452 = vrcp.pop %v1450
    %v1453 = vmul.f32 %v1450, %v1452
    %v1454 = vsub.f32 1.0, %v1453
    %v1455 = vmul.f32 %v1452, %v1454
    %v1456 = vadd.f32 %v1452, %v1455
    %vm1457 = vweird.f32 %v1450
    %vm1458 = vweird.f32 %v1452
    %vm1459 = vmor %vm1457, %vm1458
    %v1460 = vsel %vm1459, %v1452, %v1456
    %v1461 = vand.u32 2147483647, %v1450
    %vm1462 = vcmp.eq.f32.partialorder %v1461, 8.507059e+37
    %v1463 = vand.u32 %v1450, 2147483648
    %v1464 = vor.u32 1.1754944e-38, %v1463
    %v1465 = vsel %vm1462, %v1464, %v1460
    %v1466 = vmul.f32 1.0, %v1465
    %v1467 = vrcp.pop %v1451
    %v1468 = vmul.f32 %v1451, %v1467
    %v1469 = vsub.f32 1.0, %v1468
    %v1470 = vmul.f32 %v1467, %v1469
    %v1471 = vadd.f32 %v1467, %v1470
    %vm1472 = vweird.f32 %v1451
    %vm1473 = vweird.f32 %v1467
    %vm1474 = vmor %vm1472, %vm1473
    %v1475 = vsel %vm1474, %v1467, %v1471
    %v1476 = vand.u32 2147483647, %v1451
    %vm1477 = vcmp.eq.f32.partialorder %v1476, 8.507059e+37
    %v1478 = vand.u32 %v1451, 2147483648
    %v1479 = vor.u32 1.1754944e-38, %v1478
    %v1480 = vsel %vm1477, %v1479, %v1475
    %v1481 = vmul.f32 1.0, %v1480
    %v1482 = vadd.f32 %v1439, %v190
    %v1483 = vmul.f32 %v1466, %v1482
    %v1484 = vadd.f32 %v1400, %v1483
    %v1485 = vtanh.pop %v1484
    %v1486 = vsub.f32 1.0, %v1481
    %v1487 = vmul.f32 %v1486, %v1485
    %v1488 = vmul.f32 %v1481, %v1233
    %v1489 = vadd.f32 %v1487, %v1488
    %v1490 = vpack.c.bf16 %v1489, %v1489
    %1491 = vmatpush.bf16.msra.mxu0 %v793
    %1492 = vmatpush.bf16.msra.mxu0 %v790
    %1493 = vmatpush.bf16.msra.mxu0 %v787
    %1494 = vmatpush.bf16.msra.mxu0 %v784
    %1495 = vmatpush.bf16.msra.mxu0 %v781
    %1496 = vmatpush.bf16.msra.mxu0 %v778
    %1497 = vmatpush.bf16.msra.mxu0 %v775
    %1498 = vmatpush.bf16.msra.mxu0 %v772
    %1499 = vmatmul.bf16.gmra.mxu0 %v1490
    %v1500 = vpop.f32.mrf.mxu0
    %v1501 = vadd.f32 %v686, %v1500
    %v1502 = vpop.f32.mrf.mxu0
    %1503 = vdwg.mxu0
    %1504 = vmatpush.bf16.msra.mxu0 %v794
    %1505 = vmatpush.bf16.msra.mxu0 %v791
    %1506 = vmatpush.bf16.msra.mxu0 %v788
    %1507 = vmatpush.bf16.msra.mxu0 %v785
    %1508 = vmatpush.bf16.msra.mxu0 %v782
    %1509 = vmatpush.bf16.msra.mxu0 %v779
    %1510 = vmatpush.bf16.msra.mxu0 %v776
    %1511 = vmatpush.bf16.msra.mxu0 %v773
    %1512 = vmatmul.bf16.gmra.mxu0 %v1490
    %v1513 = vpop.f32.mrf.mxu0
    %v1514 = vadd.f32 %v687, %v1513
    %v1515 = vpop.f32.mrf.mxu0
    %1516 = vdwg.mxu0
    %1517 = vmatpush.bf16.msra.mxu0 %v795
    %1518 = vmatpush.bf16.msra.mxu0 %v792
    %1519 = vmatpush.bf16.msra.mxu0 %v789
    %1520 = vmatpush.bf16.msra.mxu0 %v786
    %1521 = vmatpush.bf16.msra.mxu0 %v783
    %1522 = vmatpush.bf16.msra.mxu0 %v780
    %1523 = vmatpush.bf16.msra.mxu0 %v777
    %1524 = vmatpush.bf16.msra.mxu0 %v774
    %1525 = vmatmul.bf16.gmra.mxu0 %v1490
    %v1526 = vpop.f32.mrf.mxu0
    %v1527 = vadd.f32 %v688, %v1526
    %v1528 = vpop.f32.mrf.mxu0
    %1529 = vdwg.mxu0
    %v1530 = vpack.c.bf16 %v1361, %v1361
    %1531 = vmatpush.bf16.msra.mxu0 %v992
    %1532 = vmatpush.bf16.msra.mxu0 %v989
    %1533 = vmatpush.bf16.msra.mxu0 %v986
    %1534 = vmatpush.bf16.msra.mxu0 %v983
    %1535 = vmatpush.bf16.msra.mxu0 %v980
    %1536 = vmatpush.bf16.msra.mxu0 %v977
    %1537 = vmatpush.bf16.msra.mxu0 %v974
    %1538 = vmatpush.bf16.msra.mxu0 %v971
    %1539 = vmatmul.bf16.gmra.mxu0 %v1530
    %v1540 = vpop.f32.mrf.mxu0
    %v1541 = vadd.f32 0.0, %v1540
    %v1542 = vpop.f32.mrf.mxu0
    %1543 = vdwg.mxu0
    %1544 = vmatpush.bf16.msra.mxu0 %v993
    %1545 = vmatpush.bf16.msra.mxu0 %v990
    %1546 = vmatpush.bf16.msra.mxu0 %v987
    %1547 = vmatpush.bf16.msra.mxu0 %v984
    %1548 = vmatpush.bf16.msra.mxu0 %v981
    %1549 = vmatpush.bf16.msra.mxu0 %v978
    %1550 = vmatpush.bf16.msra.mxu0 %v975
    %1551 = vmatpush.bf16.msra.mxu0 %v972
    %1552 = vmatmul.bf16.gmra.mxu0 %v1530
    %v1553 = vpop.f32.mrf.mxu0
    %v1554 = vadd.f32 0.0, %v1553
    %v1555 = vpop.f32.mrf.mxu0
    %1556 = vdwg.mxu0
    %1557 = vmatpush.bf16.msra.mxu0 %v994
    %1558 = vmatpush.bf16.msra.mxu0 %v991
    %1559 = vmatpush.bf16.msra.mxu0 %v988
    %1560 = vmatpush.bf16.msra.mxu0 %v985
    %1561 = vmatpush.bf16.msra.mxu0 %v982
    %1562 = vmatpush.bf16.msra.mxu0 %v979
    %1563 = vmatpush.bf16.msra.mxu0 %v976
    %1564 = vmatpush.bf16.msra.mxu0 %v973
    %1565 = vmatmul.bf16.gmra.mxu0 %v1530
    %v1566 = vpop.f32.mrf.mxu0
    %v1567 = vadd.f32 0.0, %v1566
    %v1568 = vpop.f32.mrf.mxu0
    %1569 = vdwg.mxu0
    %v1570 = vadd.f32 %v1501, %v1541
    %v1571 = vadd.f32 %v1514, %v1554
    %v1572 = vxor.u32 %v1570, 2147483648
    %v1573 = vxor.u32 %v1571, 2147483648
    %v1574 = vmul.f32 %v1572, 1.442695
    %v1575 = vpow.pop %v1574
    %v1576 = vmul.f32 %v1573, 1.442695
    %v1577 = vpow.pop %v1576
    %v1578 = vadd.f32 %v1575, 1.0
    %v1579 = vadd.f32 %v1577, 1.0
    %v1580 = vrcp.pop %v1578
    %v1581 = vmul.f32 %v1578, %v1580
    %v1582 = vsub.f32 1.0, %v1581
    %v1583 = vmul.f32 %v1580, %v1582
    %v1584 = vadd.f32 %v1580, %v1583
    %vm1585 = vweird.f32 %v1578
    %vm1586 = vweird.f32 %v1580
    %vm1587 = vmor %vm1585, %vm1586
    %v1588 = vsel %vm1587, %v1580, %v1584
    %v1589 = vand.u32 2147483647, %v1578
    %vm1590 = vcmp.eq.f32.partialorder %v1589, 8.507059e+37
    %v1591 = vand.u32 %v1578, 2147483648
    %v1592 = vor.u32 1.1754944e-38, %v1591
    %v1593 = vsel %vm1590, %v1592, %v1588
    %v1594 = vmul.f32 1.0, %v1593
    %v1595 = vrcp.pop %v1579
    %v1596 = vmul.f32 %v1579, %v1595
    %v1597 = vsub.f32 1.0, %v1596
    %v1598 = vmul.f32 %v1595, %v1597
    %v1599 = vadd.f32 %v1595, %v1598
    %vm1600 = vweird.f32 %v1579
    %vm1601 = vweird.f32 %v1595
    %vm1602 = vmor %vm1600, %vm1601
    %v1603 = vsel %vm1602, %v1595, %v1599
    %v1604 = vand.u32 2147483647, %v1579
    %vm1605 = vcmp.eq.f32.partialorder %v1604, 8.507059e+37
    %v1606 = vand.u32 %v1579, 2147483648
    %v1607 = vor.u32 1.1754944e-38, %v1606
    %v1608 = vsel %vm1605, %v1607, %v1603
    %v1609 = vmul.f32 1.0, %v1608
    %v1610 = vadd.f32 %v1567, %v194
    %v1611 = vmul.f32 %v1594, %v1610
    %v1612 = vadd.f32 %v1527, %v1611
    %v1613 = vtanh.pop %v1612
    %v1614 = vsub.f32 1.0, %v1609
    %v1615 = vmul.f32 %v1614, %v1613
    %v1616 = vmul.f32 %v1609, %v1361
    %v1617 = vadd.f32 %v1615, %v1616
    %s1618 = scalar_lea.vmem %s0, 12
    %v1619 = vld [vmem:[%s1618] sm:$0xf]
    %1620 = vmatpush.bf16.msra.mxu0 %v338
    %1621 = vmatpush.bf16.msra.mxu0 %v335
    %1622 = vmatpush.bf16.msra.mxu0 %v332
    %1623 = vmatpush.bf16.msra.mxu0 %v329
    %1624 = vmatpush.bf16.msra.mxu0 %v326
    %1625 = vmatpush.bf16.msra.mxu0 %v323
    %1626 = vmatpush.bf16.msra.mxu0 %v320
    %1627 = vmatpush.bf16.msra.mxu0 %v317
    %1628 = vmatmul.bf16.gmra.mxu0 %v1619
    %v1629 = vpop.f32.mrf.mxu0
    %v1630 = vadd.f32 %v231, %v1629
    %v1631 = vpop.f32.mrf.mxu0
    %1632 = vdwg.mxu0
    %1633 = vmatpush.bf16.msra.mxu0 %v339
    %1634 = vmatpush.bf16.msra.mxu0 %v336
    %1635 = vmatpush.bf16.msra.mxu0 %v333
    %1636 = vmatpush.bf16.msra.mxu0 %v330
    %1637 = vmatpush.bf16.msra.mxu0 %v327
    %1638 = vmatpush.bf16.msra.mxu0 %v324
    %1639 = vmatpush.bf16.msra.mxu0 %v321
    %1640 = vmatpush.bf16.msra.mxu0 %v318
    %1641 = vmatmul.bf16.gmra.mxu0 %v1619
    %v1642 = vpop.f32.mrf.mxu0
    %v1643 = vadd.f32 %v232, %v1642
    %v1644 = vpop.f32.mrf.mxu0
    %1645 = vdwg.mxu0
    %1646 = vmatpush.bf16.msra.mxu0 %v340
    %1647 = vmatpush.bf16.msra.mxu0 %v337
    %1648 = vmatpush.bf16.msra.mxu0 %v334
    %1649 = vmatpush.bf16.msra.mxu0 %v331
    %1650 = vmatpush.bf16.msra.mxu0 %v328
    %1651 = vmatpush.bf16.msra.mxu0 %v325
    %1652 = vmatpush.bf16.msra.mxu0 %v322
    %1653 = vmatpush.bf16.msra.mxu0 %v319
    %1654 = vmatmul.bf16.gmra.mxu0 %v1619
    %v1655 = vpop.f32.mrf.mxu0
    %v1656 = vadd.f32 %v233, %v1655
    %v1657 = vpop.f32.mrf.mxu0
    %1658 = vdwg.mxu0
    %1659 = vmatpush.bf16.msra.mxu0 %v537
    %1660 = vmatpush.bf16.msra.mxu0 %v534
    %1661 = vmatpush.bf16.msra.mxu0 %v531
    %1662 = vmatpush.bf16.msra.mxu0 %v528
    %1663 = vmatpush.bf16.msra.mxu0 %v525
    %1664 = vmatpush.bf16.msra.mxu0 %v522
    %1665 = vmatpush.bf16.msra.mxu0 %v519
    %1666 = vmatpush.bf16.msra.mxu0 %v516
    %1667 = vmatmul.bf16.gmra.mxu0 %v1490
    %v1668 = vpop.f32.mrf.mxu0
    %v1669 = vadd.f32 0.0, %v1668
    %v1670 = vpop.f32.mrf.mxu0
    %1671 = vdwg.mxu0
    %1672 = vmatpush.bf16.msra.mxu0 %v538
    %1673 = vmatpush.bf16.msra.mxu0 %v535
    %1674 = vmatpush.bf16.msra.mxu0 %v532
    %1675 = vmatpush.bf16.msra.mxu0 %v529
    %1676 = vmatpush.bf16.msra.mxu0 %v526
    %1677 = vmatpush.bf16.msra.mxu0 %v523
    %1678 = vmatpush.bf16.msra.mxu0 %v520
    %1679 = vmatpush.bf16.msra.mxu0 %v517
    %1680 = vmatmul.bf16.gmra.mxu0 %v1490
    %v1681 = vpop.f32.mrf.mxu0
    %v1682 = vadd.f32 0.0, %v1681
    %v1683 = vpop.f32.mrf.mxu0
    %1684 = vdwg.mxu0
    %1685 = vmatpush.bf16.msra.mxu0 %v539
    %1686 = vmatpush.bf16.msra.mxu0 %v536
    %1687 = vmatpush.bf16.msra.mxu0 %v533
    %1688 = vmatpush.bf16.msra.mxu0 %v530
    %1689 = vmatpush.bf16.msra.mxu0 %v527
    %1690 = vmatpush.bf16.msra.mxu0 %v524
    %1691 = vmatpush.bf16.msra.mxu0 %v521
    %1692 = vmatpush.bf16.msra.mxu0 %v518
    %1693 = vmatmul.bf16.gmra.mxu0 %v1490
    %v1694 = vpop.f32.mrf.mxu0
    %v1695 = vadd.f32 0.0, %v1694
    %v1696 = vpop.f32.mrf.mxu0
    %1697 = vdwg.mxu0
    %v1698 = vadd.f32 %v1630, %v1669
    %v1699 = vadd.f32 %v1643, %v1682
    %v1700 = vxor.u32 %v1698, 2147483648
    %v1701 = vxor.u32 %v1699, 2147483648
    %v1702 = vmul.f32 %v1700, 1.442695
    %v1703 = vpow.pop %v1702
    %v1704 = vmul.f32 %v1701, 1.442695
    %v1705 = vpow.pop %v1704
    %v1706 = vadd.f32 %v1703, 1.0
    %v1707 = vadd.f32 %v1705, 1.0
    %v1708 = vrcp.pop %v1706
    %v1709 = vmul.f32 %v1706, %v1708
    %v1710 = vsub.f32 1.0, %v1709
    %v1711 = vmul.f32 %v1708, %v1710
    %v1712 = vadd.f32 %v1708, %v1711
    %vm1713 = vweird.f32 %v1706
    %vm1714 = vweird.f32 %v1708
    %vm1715 = vmor %vm1713, %vm1714
    %v1716 = vsel %vm1715, %v1708, %v1712
    %v1717 = vand.u32 2147483647, %v1706
    %vm1718 = vcmp.eq.f32.partialorder %v1717, 8.507059e+37
    %v1719 = vand.u32 %v1706, 2147483648
    %v1720 = vor.u32 1.1754944e-38, %v1719
    %v1721 = vsel %vm1718, %v1720, %v1716
    %v1722 = vmul.f32 1.0, %v1721
    %v1723 = vrcp.pop %v1707
    %v1724 = vmul.f32 %v1707, %v1723
    %v1725 = vsub.f32 1.0, %v1724
    %v1726 = vmul.f32 %v1723, %v1725
    %v1727 = vadd.f32 %v1723, %v1726
    %vm1728 = vweird.f32 %v1707
    %vm1729 = vweird.f32 %v1723
    %vm1730 = vmor %vm1728, %vm1729
    %v1731 = vsel %vm1730, %v1723, %v1727
    %v1732 = vand.u32 2147483647, %v1707
    %vm1733 = vcmp.eq.f32.partialorder %v1732, 8.507059e+37
    %v1734 = vand.u32 %v1707, 2147483648
    %v1735 = vor.u32 1.1754944e-38, %v1734
    %v1736 = vsel %vm1733, %v1735, %v1731
    %v1737 = vmul.f32 1.0, %v1736
    %v1738 = vadd.f32 %v1695, %v190
    %v1739 = vmul.f32 %v1722, %v1738
    %v1740 = vadd.f32 %v1656, %v1739
    %v1741 = vtanh.pop %v1740
    %v1742 = vsub.f32 1.0, %v1737
    %v1743 = vmul.f32 %v1742, %v1741
    %v1744 = vmul.f32 %v1737, %v1489
    %v1745 = vadd.f32 %v1743, %v1744
    %v1746 = vpack.c.bf16 %v1745, %v1745
    %1747 = vmatpush.bf16.msra.mxu0 %v793
    %1748 = vmatpush.bf16.msra.mxu0 %v790
    %1749 = vmatpush.bf16.msra.mxu0 %v787
    %1750 = vmatpush.bf16.msra.mxu0 %v784
    %1751 = vmatpush.bf16.msra.mxu0 %v781
    %1752 = vmatpush.bf16.msra.mxu0 %v778
    %1753 = vmatpush.bf16.msra.mxu0 %v775
    %1754 = vmatpush.bf16.msra.mxu0 %v772
    %1755 = vmatmul.bf16.gmra.mxu0 %v1746
    %v1756 = vpop.f32.mrf.mxu0
    %v1757 = vadd.f32 %v686, %v1756
    %v1758 = vpop.f32.mrf.mxu0
    %1759 = vdwg.mxu0
    %1760 = vmatpush.bf16.msra.mxu0 %v794
    %1761 = vmatpush.bf16.msra.mxu0 %v791
    %1762 = vmatpush.bf16.msra.mxu0 %v788
    %1763 = vmatpush.bf16.msra.mxu0 %v785
    %1764 = vmatpush.bf16.msra.mxu0 %v782
    %1765 = vmatpush.bf16.msra.mxu0 %v779
    %1766 = vmatpush.bf16.msra.mxu0 %v776
    %1767 = vmatpush.bf16.msra.mxu0 %v773
    %1768 = vmatmul.bf16.gmra.mxu0 %v1746
    %v1769 = vpop.f32.mrf.mxu0
    %v1770 = vadd.f32 %v687, %v1769
    %v1771 = vpop.f32.mrf.mxu0
    %1772 = vdwg.mxu0
    %1773 = vmatpush.bf16.msra.mxu0 %v795
    %1774 = vmatpush.bf16.msra.mxu0 %v792
    %1775 = vmatpush.bf16.msra.mxu0 %v789
    %1776 = vmatpush.bf16.msra.mxu0 %v786
    %1777 = vmatpush.bf16.msra.mxu0 %v783
    %1778 = vmatpush.bf16.msra.mxu0 %v780
    %1779 = vmatpush.bf16.msra.mxu0 %v777
    %1780 = vmatpush.bf16.msra.mxu0 %v774
    %1781 = vmatmul.bf16.gmra.mxu0 %v1746
    %v1782 = vpop.f32.mrf.mxu0
    %v1783 = vadd.f32 %v688, %v1782
    %v1784 = vpop.f32.mrf.mxu0
    %1785 = vdwg.mxu0
    %v1786 = vpack.c.bf16 %v1617, %v1617
    %1787 = vmatpush.bf16.msra.mxu0 %v992
    %1788 = vmatpush.bf16.msra.mxu0 %v989
    %1789 = vmatpush.bf16.msra.mxu0 %v986
    %1790 = vmatpush.bf16.msra.mxu0 %v983
    %1791 = vmatpush.bf16.msra.mxu0 %v980
    %1792 = vmatpush.bf16.msra.mxu0 %v977
    %1793 = vmatpush.bf16.msra.mxu0 %v974
    %1794 = vmatpush.bf16.msra.mxu0 %v971
    %1795 = vmatmul.bf16.gmra.mxu0 %v1786
    %v1796 = vpop.f32.mrf.mxu0
    %v1797 = vadd.f32 0.0, %v1796
    %v1798 = vpop.f32.mrf.mxu0
    %1799 = vdwg.mxu0
    %1800 = vmatpush.bf16.msra.mxu0 %v993
    %1801 = vmatpush.bf16.msra.mxu0 %v990
    %1802 = vmatpush.bf16.msra.mxu0 %v987
    %1803 = vmatpush.bf16.msra.mxu0 %v984
    %1804 = vmatpush.bf16.msra.mxu0 %v981
    %1805 = vmatpush.bf16.msra.mxu0 %v978
    %1806 = vmatpush.bf16.msra.mxu0 %v975
    %1807 = vmatpush.bf16.msra.mxu0 %v972
    %1808 = vmatmul.bf16.gmra.mxu0 %v1786
    %v1809 = vpop.f32.mrf.mxu0
    %v1810 = vadd.f32 0.0, %v1809
    %v1811 = vpop.f32.mrf.mxu0
    %1812 = vdwg.mxu0
    %1813 = vmatpush.bf16.msra.mxu0 %v994
    %1814 = vmatpush.bf16.msra.mxu0 %v991
    %1815 = vmatpush.bf16.msra.mxu0 %v988
    %1816 = vmatpush.bf16.msra.mxu0 %v985
    %1817 = vmatpush.bf16.msra.mxu0 %v982
    %1818 = vmatpush.bf16.msra.mxu0 %v979
    %1819 = vmatpush.bf16.msra.mxu0 %v976
    %1820 = vmatpush.bf16.msra.mxu0 %v973
    %1821 = vmatmul.bf16.gmra.mxu0 %v1786
    %v1822 = vpop.f32.mrf.mxu0
    %v1823 = vadd.f32 0.0, %v1822
    %v1824 = vpop.f32.mrf.mxu0
    %1825 = vdwg.mxu0
    %v1826 = vadd.f32 %v1757, %v1797
    %v1827 = vadd.f32 %v1770, %v1810
    %v1828 = vxor.u32 %v1826, 2147483648
    %v1829 = vxor.u32 %v1827, 2147483648
    %v1830 = vmul.f32 %v1828, 1.442695
    %v1831 = vpow.pop %v1830
    %v1832 = vmul.f32 %v1829, 1.442695
    %v1833 = vpow.pop %v1832
    %v1834 = vadd.f32 %v1831, 1.0
    %v1835 = vadd.f32 %v1833, 1.0
    %v1836 = vrcp.pop %v1834
    %v1837 = vmul.f32 %v1834, %v1836
    %v1838 = vsub.f32 1.0, %v1837
    %v1839 = vmul.f32 %v1836, %v1838
    %v1840 = vadd.f32 %v1836, %v1839
    %vm1841 = vweird.f32 %v1834
    %vm1842 = vweird.f32 %v1836
    %vm1843 = vmor %vm1841, %vm1842
    %v1844 = vsel %vm1843, %v1836, %v1840
    %v1845 = vand.u32 2147483647, %v1834
    %vm1846 = vcmp.eq.f32.partialorder %v1845, 8.507059e+37
    %v1847 = vand.u32 %v1834, 2147483648
    %v1848 = vor.u32 1.1754944e-38, %v1847
    %v1849 = vsel %vm1846, %v1848, %v1844
    %v1850 = vmul.f32 1.0, %v1849
    %v1851 = vrcp.pop %v1835
    %v1852 = vmul.f32 %v1835, %v1851
    %v1853 = vsub.f32 1.0, %v1852
    %v1854 = vmul.f32 %v1851, %v1853
    %v1855 = vadd.f32 %v1851, %v1854
    %vm1856 = vweird.f32 %v1835
    %vm1857 = vweird.f32 %v1851
    %vm1858 = vmor %vm1856, %vm1857
    %v1859 = vsel %vm1858, %v1851, %v1855
    %v1860 = vand.u32 2147483647, %v1835
    %vm1861 = vcmp.eq.f32.partialorder %v1860, 8.507059e+37
    %v1862 = vand.u32 %v1835, 2147483648
    %v1863 = vor.u32 1.1754944e-38, %v1862
    %v1864 = vsel %vm1861, %v1863, %v1859
    %v1865 = vmul.f32 1.0, %v1864
    %v1866 = vadd.f32 %v1823, %v194
    %v1867 = vmul.f32 %v1850, %v1866
    %v1868 = vadd.f32 %v1783, %v1867
    %v1869 = vtanh.pop %v1868
    %v1870 = vsub.f32 1.0, %v1865
    %v1871 = vmul.f32 %v1870, %v1869
    %v1872 = vmul.f32 %v1865, %v1617
    %v1873 = vadd.f32 %v1871, %v1872
    %s1874 = scalar_lea.vmem %s0, 16
    %v1875 = vld [vmem:[%s1874] sm:$0xf]
    %1876 = vmatpush.bf16.msra.mxu0 %v338
    %1877 = vmatpush.bf16.msra.mxu0 %v335
    %1878 = vmatpush.bf16.msra.mxu0 %v332
    %1879 = vmatpush.bf16.msra.mxu0 %v329
    %1880 = vmatpush.bf16.msra.mxu0 %v326
    %1881 = vmatpush.bf16.msra.mxu0 %v323
    %1882 = vmatpush.bf16.msra.mxu0 %v320
    %1883 = vmatpush.bf16.msra.mxu0 %v317
    %1884 = vmatmul.bf16.gmra.mxu0 %v1875
    %v1885 = vpop.f32.mrf.mxu0
    %v1886 = vadd.f32 %v231, %v1885
    %v1887 = vpop.f32.mrf.mxu0
    %1888 = vdwg.mxu0
    %1889 = vmatpush.bf16.msra.mxu0 %v339
    %1890 = vmatpush.bf16.msra.mxu0 %v336
    %1891 = vmatpush.bf16.msra.mxu0 %v333
    %1892 = vmatpush.bf16.msra.mxu0 %v330
    %1893 = vmatpush.bf16.msra.mxu0 %v327
    %1894 = vmatpush.bf16.msra.mxu0 %v324
    %1895 = vmatpush.bf16.msra.mxu0 %v321
    %1896 = vmatpush.bf16.msra.mxu0 %v318
    %1897 = vmatmul.bf16.gmra.mxu0 %v1875
    %v1898 = vpop.f32.mrf.mxu0
    %v1899 = vadd.f32 %v232, %v1898
    %v1900 = vpop.f32.mrf.mxu0
    %1901 = vdwg.mxu0
    %1902 = vmatpush.bf16.msra.mxu0 %v340
    %1903 = vmatpush.bf16.msra.mxu0 %v337
    %1904 = vmatpush.bf16.msra.mxu0 %v334
    %1905 = vmatpush.bf16.msra.mxu0 %v331
    %1906 = vmatpush.bf16.msra.mxu0 %v328
    %1907 = vmatpush.bf16.msra.mxu0 %v325
    %1908 = vmatpush.bf16.msra.mxu0 %v322
    %1909 = vmatpush.bf16.msra.mxu0 %v319
    %1910 = vmatmul.bf16.gmra.mxu0 %v1875
    %v1911 = vpop.f32.mrf.mxu0
    %v1912 = vadd.f32 %v233, %v1911
    %v1913 = vpop.f32.mrf.mxu0
    %1914 = vdwg.mxu0
    %1915 = vmatpush.bf16.msra.mxu0 %v537
    %1916 = vmatpush.bf16.msra.mxu0 %v534
    %1917 = vmatpush.bf16.msra.mxu0 %v531
    %1918 = vmatpush.bf16.msra.mxu0 %v528
    %1919 = vmatpush.bf16.msra.mxu0 %v525
    %1920 = vmatpush.bf16.msra.mxu0 %v522
    %1921 = vmatpush.bf16.msra.mxu0 %v519
    %1922 = vmatpush.bf16.msra.mxu0 %v516
    %1923 = vmatmul.bf16.gmra.mxu0 %v1746
    %v1924 = vpop.f32.mrf.mxu0
    %v1925 = vadd.f32 0.0, %v1924
    %v1926 = vpop.f32.mrf.mxu0
    %1927 = vdwg.mxu0
    %1928 = vmatpush.bf16.msra.mxu0 %v538
    %1929 = vmatpush.bf16.msra.mxu0 %v535
    %1930 = vmatpush.bf16.msra.mxu0 %v532
    %1931 = vmatpush.bf16.msra.mxu0 %v529
    %1932 = vmatpush.bf16.msra.mxu0 %v526
    %1933 = vmatpush.bf16.msra.mxu0 %v523
    %1934 = vmatpush.bf16.msra.mxu0 %v520
    %1935 = vmatpush.bf16.msra.mxu0 %v517
    %1936 = vmatmul.bf16.gmra.mxu0 %v1746
    %v1937 = vpop.f32.mrf.mxu0
    %v1938 = vadd.f32 0.0, %v1937
    %v1939 = vpop.f32.mrf.mxu0
    %1940 = vdwg.mxu0
    %1941 = vmatpush.bf16.msra.mxu0 %v539
    %1942 = vmatpush.bf16.msra.mxu0 %v536
    %1943 = vmatpush.bf16.msra.mxu0 %v533
    %1944 = vmatpush.bf16.msra.mxu0 %v530
    %1945 = vmatpush.bf16.msra.mxu0 %v527
    %1946 = vmatpush.bf16.msra.mxu0 %v524
    %1947 = vmatpush.bf16.msra.mxu0 %v521
    %1948 = vmatpush.bf16.msra.mxu0 %v518
    %1949 = vmatmul.bf16.gmra.mxu0 %v1746
    %v1950 = vpop.f32.mrf.mxu0
    %v1951 = vadd.f32 0.0, %v1950
    %v1952 = vpop.f32.mrf.mxu0
    %1953 = vdwg.mxu0
    %v1954 = vadd.f32 %v1886, %v1925
    %v1955 = vadd.f32 %v1899, %v1938
    %v1956 = vxor.u32 %v1954, 2147483648
    %v1957 = vxor.u32 %v1955, 2147483648
    %v1958 = vmul.f32 %v1956, 1.442695
    %v1959 = vpow.pop %v1958
    %v1960 = vmul.f32 %v1957, 1.442695
    %v1961 = vpow.pop %v1960
    %v1962 = vadd.f32 %v1959, 1.0
    %v1963 = vadd.f32 %v1961, 1.0
    %v1964 = vrcp.pop %v1962
    %v1965 = vmul.f32 %v1962, %v1964
    %v1966 = vsub.f32 1.0, %v1965
    %v1967 = vmul.f32 %v1964, %v1966
    %v1968 = vadd.f32 %v1964, %v1967
    %vm1969 = vweird.f32 %v1962
    %vm1970 = vweird.f32 %v1964
    %vm1971 = vmor %vm1969, %vm1970
    %v1972 = vsel %vm1971, %v1964, %v1968
    %v1973 = vand.u32 2147483647, %v1962
    %vm1974 = vcmp.eq.f32.partialorder %v1973, 8.507059e+37
    %v1975 = vand.u32 %v1962, 2147483648
    %v1976 = vor.u32 1.1754944e-38, %v1975
    %v1977 = vsel %vm1974, %v1976, %v1972
    %v1978 = vmul.f32 1.0, %v1977
    %v1979 = vrcp.pop %v1963
    %v1980 = vmul.f32 %v1963, %v1979
    %v1981 = vsub.f32 1.0, %v1980
    %v1982 = vmul.f32 %v1979, %v1981
    %v1983 = vadd.f32 %v1979, %v1982
    %vm1984 = vweird.f32 %v1963
    %vm1985 = vweird.f32 %v1979
    %vm1986 = vmor %vm1984, %vm1985
    %v1987 = vsel %vm1986, %v1979, %v1983
    %v1988 = vand.u32 2147483647, %v1963
    %vm1989 = vcmp.eq.f32.partialorder %v1988, 8.507059e+37
    %v1990 = vand.u32 %v1963, 2147483648
    %v1991 = vor.u32 1.1754944e-38, %v1990
    %v1992 = vsel %vm1989, %v1991, %v1987
    %v1993 = vmul.f32 1.0, %v1992
    %v1994 = vadd.f32 %v1951, %v190
    %v1995 = vmul.f32 %v1978, %v1994
    %v1996 = vadd.f32 %v1912, %v1995
    %v1997 = vtanh.pop %v1996
    %v1998 = vsub.f32 1.0, %v1993
    %v1999 = vmul.f32 %v1998, %v1997
    %v2000 = vmul.f32 %v1993, %v1745
    %v2001 = vadd.f32 %v1999, %v2000
    %v2002 = vpack.c.bf16 %v2001, %v2001
    %2003 = vmatpush.bf16.msra.mxu0 %v793
    %2004 = vmatpush.bf16.msra.mxu0 %v790
    %2005 = vmatpush.bf16.msra.mxu0 %v787
    %2006 = vmatpush.bf16.msra.mxu0 %v784
    %2007 = vmatpush.bf16.msra.mxu0 %v781
    %2008 = vmatpush.bf16.msra.mxu0 %v778
    %2009 = vmatpush.bf16.msra.mxu0 %v775
    %2010 = vmatpush.bf16.msra.mxu0 %v772
    %2011 = vmatmul.bf16.gmra.mxu0 %v2002
    %v2012 = vpop.f32.mrf.mxu0
    %v2013 = vadd.f32 %v686, %v2012
    %v2014 = vpop.f32.mrf.mxu0
    %2015 = vdwg.mxu0
    %2016 = vmatpush.bf16.msra.mxu0 %v794
    %2017 = vmatpush.bf16.msra.mxu0 %v791
    %2018 = vmatpush.bf16.msra.mxu0 %v788
    %2019 = vmatpush.bf16.msra.mxu0 %v785
    %2020 = vmatpush.bf16.msra.mxu0 %v782
    %2021 = vmatpush.bf16.msra.mxu0 %v779
    %2022 = vmatpush.bf16.msra.mxu0 %v776
    %2023 = vmatpush.bf16.msra.mxu0 %v773
    %2024 = vmatmul.bf16.gmra.mxu0 %v2002
    %v2025 = vpop.f32.mrf.mxu0
    %v2026 = vadd.f32 %v687, %v2025
    %v2027 = vpop.f32.mrf.mxu0
    %2028 = vdwg.mxu0
    %2029 = vmatpush.bf16.msra.mxu0 %v795
    %2030 = vmatpush.bf16.msra.mxu0 %v792
    %2031 = vmatpush.bf16.msra.mxu0 %v789
    %2032 = vmatpush.bf16.msra.mxu0 %v786
    %2033 = vmatpush.bf16.msra.mxu0 %v783
    %2034 = vmatpush.bf16.msra.mxu0 %v780
    %2035 = vmatpush.bf16.msra.mxu0 %v777
    %2036 = vmatpush.bf16.msra.mxu0 %v774
    %2037 = vmatmul.bf16.gmra.mxu0 %v2002
    %v2038 = vpop.f32.mrf.mxu0
    %v2039 = vadd.f32 %v688, %v2038
    %v2040 = vpop.f32.mrf.mxu0
    %2041 = vdwg.mxu0
    %v2042 = vpack.c.bf16 %v1873, %v1873
    %2043 = vmatpush.bf16.msra.mxu0 %v992
    %2044 = vmatpush.bf16.msra.mxu0 %v989
    %2045 = vmatpush.bf16.msra.mxu0 %v986
    %2046 = vmatpush.bf16.msra.mxu0 %v983
    %2047 = vmatpush.bf16.msra.mxu0 %v980
    %2048 = vmatpush.bf16.msra.mxu0 %v977
    %2049 = vmatpush.bf16.msra.mxu0 %v974
    %2050 = vmatpush.bf16.msra.mxu0 %v971
    %2051 = vmatmul.bf16.gmra.mxu0 %v2042
    %v2052 = vpop.f32.mrf.mxu0
    %v2053 = vadd.f32 0.0, %v2052
    %v2054 = vpop.f32.mrf.mxu0
    %2055 = vdwg.mxu0
    %2056 = vmatpush.bf16.msra.mxu0 %v993
    %2057 = vmatpush.bf16.msra.mxu0 %v990
    %2058 = vmatpush.bf16.msra.mxu0 %v987
    %2059 = vmatpush.bf16.msra.mxu0 %v984
    %2060 = vmatpush.bf16.msra.mxu0 %v981
    %2061 = vmatpush.bf16.msra.mxu0 %v978
    %2062 = vmatpush.bf16.msra.mxu0 %v975
    %2063 = vmatpush.bf16.msra.mxu0 %v972
    %2064 = vmatmul.bf16.gmra.mxu0 %v2042
    %v2065 = vpop.f32.mrf.mxu0
    %v2066 = vadd.f32 0.0, %v2065
    %v2067 = vpop.f32.mrf.mxu0
    %2068 = vdwg.mxu0
    %2069 = vmatpush.bf16.msra.mxu0 %v994
    %2070 = vmatpush.bf16.msra.mxu0 %v991
    %2071 = vmatpush.bf16.msra.mxu0 %v988
    %2072 = vmatpush.bf16.msra.mxu0 %v985
    %2073 = vmatpush.bf16.msra.mxu0 %v982
    %2074 = vmatpush.bf16.msra.mxu0 %v979
    %2075 = vmatpush.bf16.msra.mxu0 %v976
    %2076 = vmatpush.bf16.msra.mxu0 %v973
    %2077 = vmatmul.bf16.gmra.mxu0 %v2042
    %v2078 = vpop.f32.mrf.mxu0
    %v2079 = vadd.f32 0.0, %v2078
    %v2080 = vpop.f32.mrf.mxu0
    %2081 = vdwg.mxu0
    %v2082 = vadd.f32 %v2013, %v2053
    %v2083 = vadd.f32 %v2026, %v2066
    %v2084 = vxor.u32 %v2082, 2147483648
    %v2085 = vxor.u32 %v2083, 2147483648
    %v2086 = vmul.f32 %v2084, 1.442695
    %v2087 = vpow.pop %v2086
    %v2088 = vmul.f32 %v2085, 1.442695
    %v2089 = vpow.pop %v2088
    %v2090 = vadd.f32 %v2087, 1.0
    %v2091 = vadd.f32 %v2089, 1.0
    %v2092 = vrcp.pop %v2090
    %v2093 = vmul.f32 %v2090, %v2092
    %v2094 = vsub.f32 1.0, %v2093
    %v2095 = vmul.f32 %v2092, %v2094
    %v2096 = vadd.f32 %v2092, %v2095
    %vm2097 = vweird.f32 %v2090
    %vm2098 = vweird.f32 %v2092
    %vm2099 = vmor %vm2097, %vm2098
    %v2100 = vsel %vm2099, %v2092, %v2096
    %v2101 = vand.u32 2147483647, %v2090
    %vm2102 = vcmp.eq.f32.partialorder %v2101, 8.507059e+37
    %v2103 = vand.u32 %v2090, 2147483648
    %v2104 = vor.u32 1.1754944e-38, %v2103
    %v2105 = vsel %vm2102, %v2104, %v2100
    %v2106 = vmul.f32 1.0, %v2105
    %v2107 = vrcp.pop %v2091
    %v2108 = vmul.f32 %v2091, %v2107
    %v2109 = vsub.f32 1.0, %v2108
    %v2110 = vmul.f32 %v2107, %v2109
    %v2111 = vadd.f32 %v2107, %v2110
    %vm2112 = vweird.f32 %v2091
    %vm2113 = vweird.f32 %v2107
    %vm2114 = vmor %vm2112, %vm2113
    %v2115 = vsel %vm2114, %v2107, %v2111
    %v2116 = vand.u32 2147483647, %v2091
    %vm2117 = vcmp.eq.f32.partialorder %v2116, 8.507059e+37
    %v2118 = vand.u32 %v2091, 2147483648
    %v2119 = vor.u32 1.1754944e-38, %v2118
    %v2120 = vsel %vm2117, %v2119, %v2115
    %v2121 = vmul.f32 1.0, %v2120
    %v2122 = vadd.f32 %v2079, %v194
    %v2123 = vmul.f32 %v2106, %v2122
    %v2124 = vadd.f32 %v2039, %v2123
    %v2125 = vtanh.pop %v2124
    %v2126 = vsub.f32 1.0, %v2121
    %v2127 = vmul.f32 %v2126, %v2125
    %v2128 = vmul.f32 %v2121, %v1873
    %v2129 = vadd.f32 %v2127, %v2128
    %s2130 = scalar_lea.vmem %s0, 20
    %v2131 = vld [vmem:[%s2130] sm:$0xf]
    %2132 = vmatpush.bf16.msra.mxu0 %v338
    %2133 = vmatpush.bf16.msra.mxu0 %v335
    %2134 = vmatpush.bf16.msra.mxu0 %v332
    %2135 = vmatpush.bf16.msra.mxu0 %v329
    %2136 = vmatpush.bf16.msra.mxu0 %v326
    %2137 = vmatpush.bf16.msra.mxu0 %v323
    %2138 = vmatpush.bf16.msra.mxu0 %v320
    %2139 = vmatpush.bf16.msra.mxu0 %v317
    %2140 = vmatmul.bf16.gmra.mxu0 %v2131
    %v2141 = vpop.f32.mrf.mxu0
    %v2142 = vadd.f32 %v231, %v2141
    %v2143 = vpop.f32.mrf.mxu0
    %2144 = vdwg.mxu0
    %2145 = vmatpush.bf16.msra.mxu0 %v339
    %2146 = vmatpush.bf16.msra.mxu0 %v336
    %2147 = vmatpush.bf16.msra.mxu0 %v333
    %2148 = vmatpush.bf16.msra.mxu0 %v330
    %2149 = vmatpush.bf16.msra.mxu0 %v327
    %2150 = vmatpush.bf16.msra.mxu0 %v324
    %2151 = vmatpush.bf16.msra.mxu0 %v321
    %2152 = vmatpush.bf16.msra.mxu0 %v318
    %2153 = vmatmul.bf16.gmra.mxu0 %v2131
    %v2154 = vpop.f32.mrf.mxu0
    %v2155 = vadd.f32 %v232, %v2154
    %v2156 = vpop.f32.mrf.mxu0
    %2157 = vdwg.mxu0
    %2158 = vmatpush.bf16.msra.mxu0 %v340
    %2159 = vmatpush.bf16.msra.mxu0 %v337
    %2160 = vmatpush.bf16.msra.mxu0 %v334
    %2161 = vmatpush.bf16.msra.mxu0 %v331
    %2162 = vmatpush.bf16.msra.mxu0 %v328
    %2163 = vmatpush.bf16.msra.mxu0 %v325
    %2164 = vmatpush.bf16.msra.mxu0 %v322
    %2165 = vmatpush.bf16.msra.mxu0 %v319
    %2166 = vmatmul.bf16.gmra.mxu0 %v2131
    %v2167 = vpop.f32.mrf.mxu0
    %v2168 = vadd.f32 %v233, %v2167
    %v2169 = vpop.f32.mrf.mxu0
    %2170 = vdwg.mxu0
    %2171 = vmatpush.bf16.msra.mxu0 %v537
    %2172 = vmatpush.bf16.msra.mxu0 %v534
    %2173 = vmatpush.bf16.msra.mxu0 %v531
    %2174 = vmatpush.bf16.msra.mxu0 %v528
    %2175 = vmatpush.bf16.msra.mxu0 %v525
    %2176 = vmatpush.bf16.msra.mxu0 %v522
    %2177 = vmatpush.bf16.msra.mxu0 %v519
    %2178 = vmatpush.bf16.msra.mxu0 %v516
    %2179 = vmatmul.bf16.gmra.mxu0 %v2002
    %v2180 = vpop.f32.mrf.mxu0
    %v2181 = vadd.f32 0.0, %v2180
    %v2182 = vpop.f32.mrf.mxu0
    %2183 = vdwg.mxu0
    %2184 = vmatpush.bf16.msra.mxu0 %v538
    %2185 = vmatpush.bf16.msra.mxu0 %v535
    %2186 = vmatpush.bf16.msra.mxu0 %v532
    %2187 = vmatpush.bf16.msra.mxu0 %v529
    %2188 = vmatpush.bf16.msra.mxu0 %v526
    %2189 = vmatpush.bf16.msra.mxu0 %v523
    %2190 = vmatpush.bf16.msra.mxu0 %v520
    %2191 = vmatpush.bf16.msra.mxu0 %v517
    %2192 = vmatmul.bf16.gmra.mxu0 %v2002
    %v2193 = vpop.f32.mrf.mxu0
    %v2194 = vadd.f32 0.0, %v2193
    %v2195 = vpop.f32.mrf.mxu0
    %2196 = vdwg.mxu0
    %2197 = vmatpush.bf16.msra.mxu0 %v539
    %2198 = vmatpush.bf16.msra.mxu0 %v536
    %2199 = vmatpush.bf16.msra.mxu0 %v533
    %2200 = vmatpush.bf16.msra.mxu0 %v530
    %2201 = vmatpush.bf16.msra.mxu0 %v527
    %2202 = vmatpush.bf16.msra.mxu0 %v524
    %2203 = vmatpush.bf16.msra.mxu0 %v521
    %2204 = vmatpush.bf16.msra.mxu0 %v518
    %2205 = vmatmul.bf16.gmra.mxu0 %v2002
    %v2206 = vpop.f32.mrf.mxu0
    %v2207 = vadd.f32 0.0, %v2206
    %v2208 = vpop.f32.mrf.mxu0
    %2209 = vdwg.mxu0
    %v2210 = vadd.f32 %v2142, %v2181
    %v2211 = vadd.f32 %v2155, %v2194
    %v2212 = vxor.u32 %v2210, 2147483648
    %v2213 = vxor.u32 %v2211, 2147483648
    %v2214 = vmul.f32 %v2212, 1.442695
    %v2215 = vpow.pop %v2214
    %v2216 = vmul.f32 %v2213, 1.442695
    %v2217 = vpow.pop %v2216
    %v2218 = vadd.f32 %v2215, 1.0
    %v2219 = vadd.f32 %v2217, 1.0
    %v2220 = vrcp.pop %v2218
    %v2221 = vmul.f32 %v2218, %v2220
    %v2222 = vsub.f32 1.0, %v2221
    %v2223 = vmul.f32 %v2220, %v2222
    %v2224 = vadd.f32 %v2220, %v2223
    %vm2225 = vweird.f32 %v2218
    %vm2226 = vweird.f32 %v2220
    %vm2227 = vmor %vm2225, %vm2226
    %v2228 = vsel %vm2227, %v2220, %v2224
    %v2229 = vand.u32 2147483647, %v2218
    %vm2230 = vcmp.eq.f32.partialorder %v2229, 8.507059e+37
    %v2231 = vand.u32 %v2218, 2147483648
    %v2232 = vor.u32 1.1754944e-38, %v2231
    %v2233 = vsel %vm2230, %v2232, %v2228
    %v2234 = vmul.f32 1.0, %v2233
    %v2235 = vrcp.pop %v2219
    %v2236 = vmul.f32 %v2219, %v2235
    %v2237 = vsub.f32 1.0, %v2236
    %v2238 = vmul.f32 %v2235, %v2237
    %v2239 = vadd.f32 %v2235, %v2238
    %vm2240 = vweird.f32 %v2219
    %vm2241 = vweird.f32 %v2235
    %vm2242 = vmor %vm2240, %vm2241
    %v2243 = vsel %vm2242, %v2235, %v2239
    %v2244 = vand.u32 2147483647, %v2219
    %vm2245 = vcmp.eq.f32.partialorder %v2244, 8.507059e+37
    %v2246 = vand.u32 %v2219, 2147483648
    %v2247 = vor.u32 1.1754944e-38, %v2246
    %v2248 = vsel %vm2245, %v2247, %v2243
    %v2249 = vmul.f32 1.0, %v2248
    %v2250 = vadd.f32 %v2207, %v190
    %v2251 = vmul.f32 %v2234, %v2250
    %v2252 = vadd.f32 %v2168, %v2251
    %v2253 = vtanh.pop %v2252
    %v2254 = vsub.f32 1.0, %v2249
    %v2255 = vmul.f32 %v2254, %v2253
    %v2256 = vmul.f32 %v2249, %v2001
    %v2257 = vadd.f32 %v2255, %v2256
    %v2258 = vpack.c.bf16 %v2257, %v2257
    %2259 = vmatpush.bf16.msra.mxu0 %v793
    %2260 = vmatpush.bf16.msra.mxu0 %v790
    %2261 = vmatpush.bf16.msra.mxu0 %v787
    %2262 = vmatpush.bf16.msra.mxu0 %v784
    %2263 = vmatpush.bf16.msra.mxu0 %v781
    %2264 = vmatpush.bf16.msra.mxu0 %v778
    %2265 = vmatpush.bf16.msra.mxu0 %v775
    %2266 = vmatpush.bf16.msra.mxu0 %v772
    %2267 = vmatmul.bf16.gmra.mxu0 %v2258
    %v2268 = vpop.f32.mrf.mxu0
    %v2269 = vadd.f32 %v686, %v2268
    %v2270 = vpop.f32.mrf.mxu0
    %2271 = vdwg.mxu0
    %2272 = vmatpush.bf16.msra.mxu0 %v794
    %2273 = vmatpush.bf16.msra.mxu0 %v791
    %2274 = vmatpush.bf16.msra.mxu0 %v788
    %2275 = vmatpush.bf16.msra.mxu0 %v785
    %2276 = vmatpush.bf16.msra.mxu0 %v782
    %2277 = vmatpush.bf16.msra.mxu0 %v779
    %2278 = vmatpush.bf16.msra.mxu0 %v776
    %2279 = vmatpush.bf16.msra.mxu0 %v773
    %2280 = vmatmul.bf16.gmra.mxu0 %v2258
    %v2281 = vpop.f32.mrf.mxu0
    %v2282 = vadd.f32 %v687, %v2281
    %v2283 = vpop.f32.mrf.mxu0
    %2284 = vdwg.mxu0
    %2285 = vmatpush.bf16.msra.mxu0 %v795
    %2286 = vmatpush.bf16.msra.mxu0 %v792
    %2287 = vmatpush.bf16.msra.mxu0 %v789
    %2288 = vmatpush.bf16.msra.mxu0 %v786
    %2289 = vmatpush.bf16.msra.mxu0 %v783
    %2290 = vmatpush.bf16.msra.mxu0 %v780
    %2291 = vmatpush.bf16.msra.mxu0 %v777
    %2292 = vmatpush.bf16.msra.mxu0 %v774
    %2293 = vmatmul.bf16.gmra.mxu0 %v2258
    %v2294 = vpop.f32.mrf.mxu0
    %v2295 = vadd.f32 %v688, %v2294
    %v2296 = vpop.f32.mrf.mxu0
    %2297 = vdwg.mxu0
    %v2298 = vpack.c.bf16 %v2129, %v2129
    %2299 = vmatpush.bf16.msra.mxu0 %v992
    %2300 = vmatpush.bf16.msra.mxu0 %v989
    %2301 = vmatpush.bf16.msra.mxu0 %v986
    %2302 = vmatpush.bf16.msra.mxu0 %v983
    %2303 = vmatpush.bf16.msra.mxu0 %v980
    %2304 = vmatpush.bf16.msra.mxu0 %v977
    %2305 = vmatpush.bf16.msra.mxu0 %v974
    %2306 = vmatpush.bf16.msra.mxu0 %v971
    %2307 = vmatmul.bf16.gmra.mxu0 %v2298
    %v2308 = vpop.f32.mrf.mxu0
    %v2309 = vadd.f32 0.0, %v2308
    %v2310 = vpop.f32.mrf.mxu0
    %2311 = vdwg.mxu0
    %2312 = vmatpush.bf16.msra.mxu0 %v993
    %2313 = vmatpush.bf16.msra.mxu0 %v990
    %2314 = vmatpush.bf16.msra.mxu0 %v987
    %2315 = vmatpush.bf16.msra.mxu0 %v984
    %2316 = vmatpush.bf16.msra.mxu0 %v981
    %2317 = vmatpush.bf16.msra.mxu0 %v978
    %2318 = vmatpush.bf16.msra.mxu0 %v975
    %2319 = vmatpush.bf16.msra.mxu0 %v972
    %2320 = vmatmul.bf16.gmra.mxu0 %v2298
    %v2321 = vpop.f32.mrf.mxu0
    %v2322 = vadd.f32 0.0, %v2321
    %v2323 = vpop.f32.mrf.mxu0
    %2324 = vdwg.mxu0
    %2325 = vmatpush.bf16.msra.mxu0 %v994
    %2326 = vmatpush.bf16.msra.mxu0 %v991
    %2327 = vmatpush.bf16.msra.mxu0 %v988
    %2328 = vmatpush.bf16.msra.mxu0 %v985
    %2329 = vmatpush.bf16.msra.mxu0 %v982
    %2330 = vmatpush.bf16.msra.mxu0 %v979
    %2331 = vmatpush.bf16.msra.mxu0 %v976
    %2332 = vmatpush.bf16.msra.mxu0 %v973
    %2333 = vmatmul.bf16.gmra.mxu0 %v2298
    %v2334 = vpop.f32.mrf.mxu0
    %v2335 = vadd.f32 0.0, %v2334
    %v2336 = vpop.f32.mrf.mxu0
    %2337 = vdwg.mxu0
    %v2338 = vadd.f32 %v2269, %v2309
    %v2339 = vadd.f32 %v2282, %v2322
    %v2340 = vxor.u32 %v2338, 2147483648
    %v2341 = vxor.u32 %v2339, 2147483648
    %v2342 = vmul.f32 %v2340, 1.442695
    %v2343 = vpow.pop %v2342
    %v2344 = vmul.f32 %v2341, 1.442695
    %v2345 = vpow.pop %v2344
    %v2346 = vadd.f32 %v2343, 1.0
    %v2347 = vadd.f32 %v2345, 1.0
    %v2348 = vrcp.pop %v2346
    %v2349 = vmul.f32 %v2346, %v2348
    %v2350 = vsub.f32 1.0, %v2349
    %v2351 = vmul.f32 %v2348, %v2350
    %v2352 = vadd.f32 %v2348, %v2351
    %vm2353 = vweird.f32 %v2346
    %vm2354 = vweird.f32 %v2348
    %vm2355 = vmor %vm2353, %vm2354
    %v2356 = vsel %vm2355, %v2348, %v2352
    %v2357 = vand.u32 2147483647, %v2346
    %vm2358 = vcmp.eq.f32.partialorder %v2357, 8.507059e+37
    %v2359 = vand.u32 %v2346, 2147483648
    %v2360 = vor.u32 1.1754944e-38, %v2359
    %v2361 = vsel %vm2358, %v2360, %v2356
    %v2362 = vmul.f32 1.0, %v2361
    %v2363 = vrcp.pop %v2347
    %v2364 = vmul.f32 %v2347, %v2363
    %v2365 = vsub.f32 1.0, %v2364
    %v2366 = vmul.f32 %v2363, %v2365
    %v2367 = vadd.f32 %v2363, %v2366
    %vm2368 = vweird.f32 %v2347
    %vm2369 = vweird.f32 %v2363
    %vm2370 = vmor %vm2368, %vm2369
    %v2371 = vsel %vm2370, %v2363, %v2367
    %v2372 = vand.u32 2147483647, %v2347
    %vm2373 = vcmp.eq.f32.partialorder %v2372, 8.507059e+37
    %v2374 = vand.u32 %v2347, 2147483648
    %v2375 = vor.u32 1.1754944e-38, %v2374
    %v2376 = vsel %vm2373, %v2375, %v2371
    %v2377 = vmul.f32 1.0, %v2376
    %v2378 = vadd.f32 %v2335, %v194
    %v2379 = vmul.f32 %v2362, %v2378
    %v2380 = vadd.f32 %v2295, %v2379
    %v2381 = vtanh.pop %v2380
    %v2382 = vsub.f32 1.0, %v2377
    %v2383 = vmul.f32 %v2382, %v2381
    %v2384 = vmul.f32 %v2377, %v2129
    %v2385 = vadd.f32 %v2383, %v2384
    %s2386 = scalar_lea.vmem %s0, 24
    %v2387 = vld [vmem:[%s2386] sm:$0xf]
    %2388 = vmatpush.bf16.msra.mxu0 %v338
    %2389 = vmatpush.bf16.msra.mxu0 %v335
    %2390 = vmatpush.bf16.msra.mxu0 %v332
    %2391 = vmatpush.bf16.msra.mxu0 %v329
    %2392 = vmatpush.bf16.msra.mxu0 %v326
    %2393 = vmatpush.bf16.msra.mxu0 %v323
    %2394 = vmatpush.bf16.msra.mxu0 %v320
    %2395 = vmatpush.bf16.msra.mxu0 %v317
    %2396 = vmatmul.bf16.gmra.mxu0 %v2387
    %v2397 = vpop.f32.mrf.mxu0
    %v2398 = vadd.f32 %v231, %v2397
    %v2399 = vpop.f32.mrf.mxu0
    %2400 = vdwg.mxu0
    %2401 = vmatpush.bf16.msra.mxu0 %v339
    %2402 = vmatpush.bf16.msra.mxu0 %v336
    %2403 = vmatpush.bf16.msra.mxu0 %v333
    %2404 = vmatpush.bf16.msra.mxu0 %v330
    %2405 = vmatpush.bf16.msra.mxu0 %v327
    %2406 = vmatpush.bf16.msra.mxu0 %v324
    %2407 = vmatpush.bf16.msra.mxu0 %v321
    %2408 = vmatpush.bf16.msra.mxu0 %v318
    %2409 = vmatmul.bf16.gmra.mxu0 %v2387
    %v2410 = vpop.f32.mrf.mxu0
    %v2411 = vadd.f32 %v232, %v2410
    %v2412 = vpop.f32.mrf.mxu0
    %2413 = vdwg.mxu0
    %2414 = vmatpush.bf16.msra.mxu0 %v340
    %2415 = vmatpush.bf16.msra.mxu0 %v337
    %2416 = vmatpush.bf16.msra.mxu0 %v334
    %2417 = vmatpush.bf16.msra.mxu0 %v331
    %2418 = vmatpush.bf16.msra.mxu0 %v328
    %2419 = vmatpush.bf16.msra.mxu0 %v325
    %2420 = vmatpush.bf16.msra.mxu0 %v322
    %2421 = vmatpush.bf16.msra.mxu0 %v319
    %2422 = vmatmul.bf16.gmra.mxu0 %v2387
    %v2423 = vpop.f32.mrf.mxu0
    %v2424 = vadd.f32 %v233, %v2423
    %v2425 = vpop.f32.mrf.mxu0
    %2426 = vdwg.mxu0
    %2427 = vmatpush.bf16.msra.mxu0 %v537
    %2428 = vmatpush.bf16.msra.mxu0 %v534
    %2429 = vmatpush.bf16.msra.mxu0 %v531
    %2430 = vmatpush.bf16.msra.mxu0 %v528
    %2431 = vmatpush.bf16.msra.mxu0 %v525
    %2432 = vmatpush.bf16.msra.mxu0 %v522
    %2433 = vmatpush.bf16.msra.mxu0 %v519
    %2434 = vmatpush.bf16.msra.mxu0 %v516
    %2435 = vmatmul.bf16.gmra.mxu0 %v2258
    %v2436 = vpop.f32.mrf.mxu0
    %v2437 = vadd.f32 0.0, %v2436
    %v2438 = vpop.f32.mrf.mxu0
    %2439 = vdwg.mxu0
    %2440 = vmatpush.bf16.msra.mxu0 %v538
    %2441 = vmatpush.bf16.msra.mxu0 %v535
    %2442 = vmatpush.bf16.msra.mxu0 %v532
    %2443 = vmatpush.bf16.msra.mxu0 %v529
    %2444 = vmatpush.bf16.msra.mxu0 %v526
    %2445 = vmatpush.bf16.msra.mxu0 %v523
    %2446 = vmatpush.bf16.msra.mxu0 %v520
    %2447 = vmatpush.bf16.msra.mxu0 %v517
    %2448 = vmatmul.bf16.gmra.mxu0 %v2258
    %v2449 = vpop.f32.mrf.mxu0
    %v2450 = vadd.f32 0.0, %v2449
    %v2451 = vpop.f32.mrf.mxu0
    %2452 = vdwg.mxu0
    %2453 = vmatpush.bf16.msra.mxu0 %v539
    %2454 = vmatpush.bf16.msra.mxu0 %v536
    %2455 = vmatpush.bf16.msra.mxu0 %v533
    %2456 = vmatpush.bf16.msra.mxu0 %v530
    %2457 = vmatpush.bf16.msra.mxu0 %v527
    %2458 = vmatpush.bf16.msra.mxu0 %v524
    %2459 = vmatpush.bf16.msra.mxu0 %v521
    %2460 = vmatpush.bf16.msra.mxu0 %v518
    %2461 = vmatmul.bf16.gmra.mxu0 %v2258
    %v2462 = vpop.f32.mrf.mxu0
    %v2463 = vadd.f32 0.0, %v2462
    %v2464 = vpop.f32.mrf.mxu0
    %2465 = vdwg.mxu0
    %v2466 = vadd.f32 %v2398, %v2437
    %v2467 = vadd.f32 %v2411, %v2450
    %v2468 = vxor.u32 %v2466, 2147483648
    %v2469 = vxor.u32 %v2467, 2147483648
    %v2470 = vmul.f32 %v2468, 1.442695
    %v2471 = vpow.pop %v2470
    %v2472 = vmul.f32 %v2469, 1.442695
    %v2473 = vpow.pop %v2472
    %v2474 = vadd.f32 %v2471, 1.0
    %v2475 = vadd.f32 %v2473, 1.0
    %v2476 = vrcp.pop %v2474
    %v2477 = vmul.f32 %v2474, %v2476
    %v2478 = vsub.f32 1.0, %v2477
    %v2479 = vmul.f32 %v2476, %v2478
    %v2480 = vadd.f32 %v2476, %v2479
    %vm2481 = vweird.f32 %v2474
    %vm2482 = vweird.f32 %v2476
    %vm2483 = vmor %vm2481, %vm2482
    %v2484 = vsel %vm2483, %v2476, %v2480
    %v2485 = vand.u32 2147483647, %v2474
    %vm2486 = vcmp.eq.f32.partialorder %v2485, 8.507059e+37
    %v2487 = vand.u32 %v2474, 2147483648
    %v2488 = vor.u32 1.1754944e-38, %v2487
    %v2489 = vsel %vm2486, %v2488, %v2484
    %v2490 = vmul.f32 1.0, %v2489
    %v2491 = vrcp.pop %v2475
    %v2492 = vmul.f32 %v2475, %v2491
    %v2493 = vsub.f32 1.0, %v2492
    %v2494 = vmul.f32 %v2491, %v2493
    %v2495 = vadd.f32 %v2491, %v2494
    %vm2496 = vweird.f32 %v2475
    %vm2497 = vweird.f32 %v2491
    %vm2498 = vmor %vm2496, %vm2497
    %v2499 = vsel %vm2498, %v2491, %v2495
    %v2500 = vand.u32 2147483647, %v2475
    %vm2501 = vcmp.eq.f32.partialorder %v2500, 8.507059e+37
    %v2502 = vand.u32 %v2475, 2147483648
    %v2503 = vor.u32 1.1754944e-38, %v2502
    %v2504 = vsel %vm2501, %v2503, %v2499
    %v2505 = vmul.f32 1.0, %v2504
    %v2506 = vadd.f32 %v2463, %v190
    %v2507 = vmul.f32 %v2490, %v2506
    %v2508 = vadd.f32 %v2424, %v2507
    %v2509 = vtanh.pop %v2508
    %v2510 = vsub.f32 1.0, %v2505
    %v2511 = vmul.f32 %v2510, %v2509
    %v2512 = vmul.f32 %v2505, %v2257
    %v2513 = vadd.f32 %v2511, %v2512
    %v2514 = vpack.c.bf16 %v2513, %v2513
    %2515 = vmatpush.bf16.msra.mxu0 %v793
    %2516 = vmatpush.bf16.msra.mxu0 %v790
    %2517 = vmatpush.bf16.msra.mxu0 %v787
    %2518 = vmatpush.bf16.msra.mxu0 %v784
    %2519 = vmatpush.bf16.msra.mxu0 %v781
    %2520 = vmatpush.bf16.msra.mxu0 %v778
    %2521 = vmatpush.bf16.msra.mxu0 %v775
    %2522 = vmatpush.bf16.msra.mxu0 %v772
    %2523 = vmatmul.bf16.gmra.mxu0 %v2514
    %v2524 = vpop.f32.mrf.mxu0
    %v2525 = vadd.f32 %v686, %v2524
    %v2526 = vpop.f32.mrf.mxu0
    %2527 = vdwg.mxu0
    %2528 = vmatpush.bf16.msra.mxu0 %v794
    %2529 = vmatpush.bf16.msra.mxu0 %v791
    %2530 = vmatpush.bf16.msra.mxu0 %v788
    %2531 = vmatpush.bf16.msra.mxu0 %v785
    %2532 = vmatpush.bf16.msra.mxu0 %v782
    %2533 = vmatpush.bf16.msra.mxu0 %v779
    %2534 = vmatpush.bf16.msra.mxu0 %v776
    %2535 = vmatpush.bf16.msra.mxu0 %v773
    %2536 = vmatmul.bf16.gmra.mxu0 %v2514
    %v2537 = vpop.f32.mrf.mxu0
    %v2538 = vadd.f32 %v687, %v2537
    %v2539 = vpop.f32.mrf.mxu0
    %2540 = vdwg.mxu0
    %2541 = vmatpush.bf16.msra.mxu0 %v795
    %2542 = vmatpush.bf16.msra.mxu0 %v792
    %2543 = vmatpush.bf16.msra.mxu0 %v789
    %2544 = vmatpush.bf16.msra.mxu0 %v786
    %2545 = vmatpush.bf16.msra.mxu0 %v783
    %2546 = vmatpush.bf16.msra.mxu0 %v780
    %2547 = vmatpush.bf16.msra.mxu0 %v777
    %2548 = vmatpush.bf16.msra.mxu0 %v774
    %2549 = vmatmul.bf16.gmra.mxu0 %v2514
    %v2550 = vpop.f32.mrf.mxu0
    %v2551 = vadd.f32 %v688, %v2550
    %v2552 = vpop.f32.mrf.mxu0
    %2553 = vdwg.mxu0
    %v2554 = vpack.c.bf16 %v2385, %v2385
    %2555 = vmatpush.bf16.msra.mxu0 %v992
    %2556 = vmatpush.bf16.msra.mxu0 %v989
    %2557 = vmatpush.bf16.msra.mxu0 %v986
    %2558 = vmatpush.bf16.msra.mxu0 %v983
    %2559 = vmatpush.bf16.msra.mxu0 %v980
    %2560 = vmatpush.bf16.msra.mxu0 %v977
    %2561 = vmatpush.bf16.msra.mxu0 %v974
    %2562 = vmatpush.bf16.msra.mxu0 %v971
    %2563 = vmatmul.bf16.gmra.mxu0 %v2554
    %v2564 = vpop.f32.mrf.mxu0
    %v2565 = vadd.f32 0.0, %v2564
    %v2566 = vpop.f32.mrf.mxu0
    %2567 = vdwg.mxu0
    %2568 = vmatpush.bf16.msra.mxu0 %v993
    %2569 = vmatpush.bf16.msra.mxu0 %v990
    %2570 = vmatpush.bf16.msra.mxu0 %v987
    %2571 = vmatpush.bf16.msra.mxu0 %v984
    %2572 = vmatpush.bf16.msra.mxu0 %v981
    %2573 = vmatpush.bf16.msra.mxu0 %v978
    %2574 = vmatpush.bf16.msra.mxu0 %v975
    %2575 = vmatpush.bf16.msra.mxu0 %v972
    %2576 = vmatmul.bf16.gmra.mxu0 %v2554
    %v2577 = vpop.f32.mrf.mxu0
    %v2578 = vadd.f32 0.0, %v2577
    %v2579 = vpop.f32.mrf.mxu0
    %2580 = vdwg.mxu0
    %2581 = vmatpush.bf16.msra.mxu0 %v994
    %2582 = vmatpush.bf16.msra.mxu0 %v991
    %2583 = vmatpush.bf16.msra.mxu0 %v988
    %2584 = vmatpush.bf16.msra.mxu0 %v985
    %2585 = vmatpush.bf16.msra.mxu0 %v982
    %2586 = vmatpush.bf16.msra.mxu0 %v979
    %2587 = vmatpush.bf16.msra.mxu0 %v976
    %2588 = vmatpush.bf16.msra.mxu0 %v973
    %2589 = vmatmul.bf16.gmra.mxu0 %v2554
    %v2590 = vpop.f32.mrf.mxu0
    %v2591 = vadd.f32 0.0, %v2590
    %v2592 = vpop.f32.mrf.mxu0
    %2593 = vdwg.mxu0
    %v2594 = vadd.f32 %v2525, %v2565
    %v2595 = vadd.f32 %v2538, %v2578
    %v2596 = vxor.u32 %v2594, 2147483648
    %v2597 = vxor.u32 %v2595, 2147483648
    %v2598 = vmul.f32 %v2596, 1.442695
    %v2599 = vpow.pop %v2598
    %v2600 = vmul.f32 %v2597, 1.442695
    %v2601 = vpow.pop %v2600
    %v2602 = vadd.f32 %v2599, 1.0
    %v2603 = vadd.f32 %v2601, 1.0
    %v2604 = vrcp.pop %v2602
    %v2605 = vmul.f32 %v2602, %v2604
    %v2606 = vsub.f32 1.0, %v2605
    %v2607 = vmul.f32 %v2604, %v2606
    %v2608 = vadd.f32 %v2604, %v2607
    %vm2609 = vweird.f32 %v2602
    %vm2610 = vweird.f32 %v2604
    %vm2611 = vmor %vm2609, %vm2610
    %v2612 = vsel %vm2611, %v2604, %v2608
    %v2613 = vand.u32 2147483647, %v2602
    %vm2614 = vcmp.eq.f32.partialorder %v2613, 8.507059e+37
    %v2615 = vand.u32 %v2602, 2147483648
    %v2616 = vor.u32 1.1754944e-38, %v2615
    %v2617 = vsel %vm2614, %v2616, %v2612
    %v2618 = vmul.f32 1.0, %v2617
    %v2619 = vrcp.pop %v2603
    %v2620 = vmul.f32 %v2603, %v2619
    %v2621 = vsub.f32 1.0, %v2620
    %v2622 = vmul.f32 %v2619, %v2621
    %v2623 = vadd.f32 %v2619, %v2622
    %vm2624 = vweird.f32 %v2603
    %vm2625 = vweird.f32 %v2619
    %vm2626 = vmor %vm2624, %vm2625
    %v2627 = vsel %vm2626, %v2619, %v2623
    %v2628 = vand.u32 2147483647, %v2603
    %vm2629 = vcmp.eq.f32.partialorder %v2628, 8.507059e+37
    %v2630 = vand.u32 %v2603, 2147483648
    %v2631 = vor.u32 1.1754944e-38, %v2630
    %v2632 = vsel %vm2629, %v2631, %v2627
    %v2633 = vmul.f32 1.0, %v2632
    %v2634 = vadd.f32 %v2591, %v194
    %v2635 = vmul.f32 %v2618, %v2634
    %v2636 = vadd.f32 %v2551, %v2635
    %v2637 = vtanh.pop %v2636
    %v2638 = vsub.f32 1.0, %v2633
    %v2639 = vmul.f32 %v2638, %v2637
    %v2640 = vmul.f32 %v2633, %v2385
    %v2641 = vadd.f32 %v2639, %v2640
    %s2642 = scalar_lea.vmem %s0, 28
    %v2643 = vld [vmem:[%s2642] sm:$0xf]
    %2644 = vmatpush.bf16.msra.mxu0 %v338
    %2645 = vmatpush.bf16.msra.mxu0 %v335
    %2646 = vmatpush.bf16.msra.mxu0 %v332
    %2647 = vmatpush.bf16.msra.mxu0 %v329
    %2648 = vmatpush.bf16.msra.mxu0 %v326
    %2649 = vmatpush.bf16.msra.mxu0 %v323
    %2650 = vmatpush.bf16.msra.mxu0 %v320
    %2651 = vmatpush.bf16.msra.mxu0 %v317
    %2652 = vmatmul.bf16.gmra.mxu0 %v2643
    %v2653 = vpop.f32.mrf.mxu0
    %v2654 = vadd.f32 %v231, %v2653
    %v2655 = vpop.f32.mrf.mxu0
    %2656 = vdwg.mxu0
    %2657 = vmatpush.bf16.msra.mxu0 %v339
    %2658 = vmatpush.bf16.msra.mxu0 %v336
    %2659 = vmatpush.bf16.msra.mxu0 %v333
    %2660 = vmatpush.bf16.msra.mxu0 %v330
    %2661 = vmatpush.bf16.msra.mxu0 %v327
    %2662 = vmatpush.bf16.msra.mxu0 %v324
    %2663 = vmatpush.bf16.msra.mxu0 %v321
    %2664 = vmatpush.bf16.msra.mxu0 %v318
    %2665 = vmatmul.bf16.gmra.mxu0 %v2643
    %v2666 = vpop.f32.mrf.mxu0
    %v2667 = vadd.f32 %v232, %v2666
    %v2668 = vpop.f32.mrf.mxu0
    %2669 = vdwg.mxu0
    %2670 = vmatpush.bf16.msra.mxu0 %v340
    %2671 = vmatpush.bf16.msra.mxu0 %v337
    %2672 = vmatpush.bf16.msra.mxu0 %v334
    %2673 = vmatpush.bf16.msra.mxu0 %v331
    %2674 = vmatpush.bf16.msra.mxu0 %v328
    %2675 = vmatpush.bf16.msra.mxu0 %v325
    %2676 = vmatpush.bf16.msra.mxu0 %v322
    %2677 = vmatpush.bf16.msra.mxu0 %v319
    %2678 = vmatmul.bf16.gmra.mxu0 %v2643
    %v2679 = vpop.f32.mrf.mxu0
    %v2680 = vadd.f32 %v233, %v2679
    %v2681 = vpop.f32.mrf.mxu0
    %2682 = vdwg.mxu0
    %2683 = vmatpush.bf16.msra.mxu0 %v537
    %2684 = vmatpush.bf16.msra.mxu0 %v534
    %2685 = vmatpush.bf16.msra.mxu0 %v531
    %2686 = vmatpush.bf16.msra.mxu0 %v528
    %2687 = vmatpush.bf16.msra.mxu0 %v525
    %2688 = vmatpush.bf16.msra.mxu0 %v522
    %2689 = vmatpush.bf16.msra.mxu0 %v519
    %2690 = vmatpush.bf16.msra.mxu0 %v516
    %2691 = vmatmul.bf16.gmra.mxu0 %v2514
    %v2692 = vpop.f32.mrf.mxu0
    %v2693 = vadd.f32 0.0, %v2692
    %v2694 = vpop.f32.mrf.mxu0
    %2695 = vdwg.mxu0
    %2696 = vmatpush.bf16.msra.mxu0 %v538
    %2697 = vmatpush.bf16.msra.mxu0 %v535
    %2698 = vmatpush.bf16.msra.mxu0 %v532
    %2699 = vmatpush.bf16.msra.mxu0 %v529
    %2700 = vmatpush.bf16.msra.mxu0 %v526
    %2701 = vmatpush.bf16.msra.mxu0 %v523
    %2702 = vmatpush.bf16.msra.mxu0 %v520
    %2703 = vmatpush.bf16.msra.mxu0 %v517
    %2704 = vmatmul.bf16.gmra.mxu0 %v2514
    %v2705 = vpop.f32.mrf.mxu0
    %v2706 = vadd.f32 0.0, %v2705
    %v2707 = vpop.f32.mrf.mxu0
    %2708 = vdwg.mxu0
    %2709 = vmatpush.bf16.msra.mxu0 %v539
    %2710 = vmatpush.bf16.msra.mxu0 %v536
    %2711 = vmatpush.bf16.msra.mxu0 %v533
    %2712 = vmatpush.bf16.msra.mxu0 %v530
    %2713 = vmatpush.bf16.msra.mxu0 %v527
    %2714 = vmatpush.bf16.msra.mxu0 %v524
    %2715 = vmatpush.bf16.msra.mxu0 %v521
    %2716 = vmatpush.bf16.msra.mxu0 %v518
    %2717 = vmatmul.bf16.gmra.mxu0 %v2514
    %v2718 = vpop.f32.mrf.mxu0
    %v2719 = vadd.f32 0.0, %v2718
    %v2720 = vpop.f32.mrf.mxu0
    %2721 = vdwg.mxu0
    %v2722 = vadd.f32 %v2654, %v2693
    %v2723 = vadd.f32 %v2667, %v2706
    %v2724 = vxor.u32 %v2722, 2147483648
    %v2725 = vxor.u32 %v2723, 2147483648
    %v2726 = vmul.f32 %v2724, 1.442695
    %v2727 = vpow.pop %v2726
    %v2728 = vmul.f32 %v2725, 1.442695
    %v2729 = vpow.pop %v2728
    %v2730 = vadd.f32 %v2727, 1.0
    %v2731 = vadd.f32 %v2729, 1.0
    %v2732 = vrcp.pop %v2730
    %v2733 = vmul.f32 %v2730, %v2732
    %v2734 = vsub.f32 1.0, %v2733
    %v2735 = vmul.f32 %v2732, %v2734
    %v2736 = vadd.f32 %v2732, %v2735
    %vm2737 = vweird.f32 %v2730
    %vm2738 = vweird.f32 %v2732
    %vm2739 = vmor %vm2737, %vm2738
    %v2740 = vsel %vm2739, %v2732, %v2736
    %v2741 = vand.u32 2147483647, %v2730
    %vm2742 = vcmp.eq.f32.partialorder %v2741, 8.507059e+37
    %v2743 = vand.u32 %v2730, 2147483648
    %v2744 = vor.u32 1.1754944e-38, %v2743
    %v2745 = vsel %vm2742, %v2744, %v2740
    %v2746 = vmul.f32 1.0, %v2745
    %v2747 = vrcp.pop %v2731
    %v2748 = vmul.f32 %v2731, %v2747
    %v2749 = vsub.f32 1.0, %v2748
    %v2750 = vmul.f32 %v2747, %v2749
    %v2751 = vadd.f32 %v2747, %v2750
    %vm2752 = vweird.f32 %v2731
    %vm2753 = vweird.f32 %v2747
    %vm2754 = vmor %vm2752, %vm2753
    %v2755 = vsel %vm2754, %v2747, %v2751
    %v2756 = vand.u32 2147483647, %v2731
    %vm2757 = vcmp.eq.f32.partialorder %v2756, 8.507059e+37
    %v2758 = vand.u32 %v2731, 2147483648
    %v2759 = vor.u32 1.1754944e-38, %v2758
    %v2760 = vsel %vm2757, %v2759, %v2755
    %v2761 = vmul.f32 1.0, %v2760
    %v2762 = vadd.f32 %v2719, %v190
    %v2763 = vmul.f32 %v2746, %v2762
    %v2764 = vadd.f32 %v2680, %v2763
    %v2765 = vtanh.pop %v2764
    %v2766 = vsub.f32 1.0, %v2761
    %v2767 = vmul.f32 %v2766, %v2765
    %v2768 = vmul.f32 %v2761, %v2513
    %v2769 = vadd.f32 %v2767, %v2768
    %v2770 = vpack.c.bf16 %v2769, %v2769
    %2771 = vmatpush.bf16.msra.mxu0 %v793
    %2772 = vmatpush.bf16.msra.mxu0 %v790
    %2773 = vmatpush.bf16.msra.mxu0 %v787
    %2774 = vmatpush.bf16.msra.mxu0 %v784
    %2775 = vmatpush.bf16.msra.mxu0 %v781
    %2776 = vmatpush.bf16.msra.mxu0 %v778
    %2777 = vmatpush.bf16.msra.mxu0 %v775
    %2778 = vmatpush.bf16.msra.mxu0 %v772
    %2779 = vmatmul.bf16.gmra.mxu0 %v2770
    %v2780 = vpop.f32.mrf.mxu0
    %v2781 = vadd.f32 %v686, %v2780
    %v2782 = vpop.f32.mrf.mxu0
    %2783 = vdwg.mxu0
    %2784 = vmatpush.bf16.msra.mxu0 %v794
    %2785 = vmatpush.bf16.msra.mxu0 %v791
    %2786 = vmatpush.bf16.msra.mxu0 %v788
    %2787 = vmatpush.bf16.msra.mxu0 %v785
    %2788 = vmatpush.bf16.msra.mxu0 %v782
    %2789 = vmatpush.bf16.msra.mxu0 %v779
    %2790 = vmatpush.bf16.msra.mxu0 %v776
    %2791 = vmatpush.bf16.msra.mxu0 %v773
    %2792 = vmatmul.bf16.gmra.mxu0 %v2770
    %v2793 = vpop.f32.mrf.mxu0
    %v2794 = vadd.f32 %v687, %v2793
    %v2795 = vpop.f32.mrf.mxu0
    %2796 = vdwg.mxu0
    %2797 = vmatpush.bf16.msra.mxu0 %v795
    %2798 = vmatpush.bf16.msra.mxu0 %v792
    %2799 = vmatpush.bf16.msra.mxu0 %v789
    %2800 = vmatpush.bf16.msra.mxu0 %v786
    %2801 = vmatpush.bf16.msra.mxu0 %v783
    %2802 = vmatpush.bf16.msra.mxu0 %v780
    %2803 = vmatpush.bf16.msra.mxu0 %v777
    %2804 = vmatpush.bf16.msra.mxu0 %v774
    %2805 = vmatmul.bf16.gmra.mxu0 %v2770
    %v2806 = vpop.f32.mrf.mxu0
    %v2807 = vadd.f32 %v688, %v2806
    %v2808 = vpop.f32.mrf.mxu0
    %2809 = vdwg.mxu0
    %v2810 = vpack.c.bf16 %v2641, %v2641
    %2811 = vmatpush.bf16.msra.mxu0 %v992
    %2812 = vmatpush.bf16.msra.mxu0 %v989
    %2813 = vmatpush.bf16.msra.mxu0 %v986
    %2814 = vmatpush.bf16.msra.mxu0 %v983
    %2815 = vmatpush.bf16.msra.mxu0 %v980
    %2816 = vmatpush.bf16.msra.mxu0 %v977
    %2817 = vmatpush.bf16.msra.mxu0 %v974
    %2818 = vmatpush.bf16.msra.mxu0 %v971
    %2819 = vmatmul.bf16.gmra.mxu0 %v2810
    %v2820 = vpop.f32.mrf.mxu0
    %v2821 = vadd.f32 0.0, %v2820
    %v2822 = vpop.f32.mrf.mxu0
    %2823 = vdwg.mxu0
    %2824 = vmatpush.bf16.msra.mxu0 %v993
    %2825 = vmatpush.bf16.msra.mxu0 %v990
    %2826 = vmatpush.bf16.msra.mxu0 %v987
    %2827 = vmatpush.bf16.msra.mxu0 %v984
    %2828 = vmatpush.bf16.msra.mxu0 %v981
    %2829 = vmatpush.bf16.msra.mxu0 %v978
    %2830 = vmatpush.bf16.msra.mxu0 %v975
    %2831 = vmatpush.bf16.msra.mxu0 %v972
    %2832 = vmatmul.bf16.gmra.mxu0 %v2810
    %v2833 = vpop.f32.mrf.mxu0
    %v2834 = vadd.f32 0.0, %v2833
    %v2835 = vpop.f32.mrf.mxu0
    %2836 = vdwg.mxu0
    %2837 = vmatpush.bf16.msra.mxu0 %v994
    %2838 = vmatpush.bf16.msra.mxu0 %v991
    %2839 = vmatpush.bf16.msra.mxu0 %v988
    %2840 = vmatpush.bf16.msra.mxu0 %v985
    %2841 = vmatpush.bf16.msra.mxu0 %v982
    %2842 = vmatpush.bf16.msra.mxu0 %v979
    %2843 = vmatpush.bf16.msra.mxu0 %v976
    %2844 = vmatpush.bf16.msra.mxu0 %v973
    %2845 = vmatmul.bf16.gmra.mxu0 %v2810
    %v2846 = vpop.f32.mrf.mxu0
    %v2847 = vadd.f32 0.0, %v2846
    %v2848 = vpop.f32.mrf.mxu0
    %2849 = vdwg.mxu0
    %v2850 = vadd.f32 %v2781, %v2821
    %v2851 = vadd.f32 %v2794, %v2834
    %v2852 = vxor.u32 %v2850, 2147483648
    %v2853 = vxor.u32 %v2851, 2147483648
    %v2854 = vmul.f32 %v2852, 1.442695
    %v2855 = vpow.pop %v2854
    %v2856 = vmul.f32 %v2853, 1.442695
    %v2857 = vpow.pop %v2856
    %v2858 = vadd.f32 %v2855, 1.0
    %v2859 = vadd.f32 %v2857, 1.0
    %v2860 = vrcp.pop %v2858
    %v2861 = vmul.f32 %v2858, %v2860
    %v2862 = vsub.f32 1.0, %v2861
    %v2863 = vmul.f32 %v2860, %v2862
    %v2864 = vadd.f32 %v2860, %v2863
    %vm2865 = vweird.f32 %v2858
    %vm2866 = vweird.f32 %v2860
    %vm2867 = vmor %vm2865, %vm2866
    %v2868 = vsel %vm2867, %v2860, %v2864
    %v2869 = vand.u32 2147483647, %v2858
    %vm2870 = vcmp.eq.f32.partialorder %v2869, 8.507059e+37
    %v2871 = vand.u32 %v2858, 2147483648
    %v2872 = vor.u32 1.1754944e-38, %v2871
    %v2873 = vsel %vm2870, %v2872, %v2868
    %v2874 = vmul.f32 1.0, %v2873
    %v2875 = vrcp.pop %v2859
    %v2876 = vmul.f32 %v2859, %v2875
    %v2877 = vsub.f32 1.0, %v2876
    %v2878 = vmul.f32 %v2875, %v2877
    %v2879 = vadd.f32 %v2875, %v2878
    %vm2880 = vweird.f32 %v2859
    %vm2881 = vweird.f32 %v2875
    %vm2882 = vmor %vm2880, %vm2881
    %v2883 = vsel %vm2882, %v2875, %v2879
    %v2884 = vand.u32 2147483647, %v2859
    %vm2885 = vcmp.eq.f32.partialorder %v2884, 8.507059e+37
    %v2886 = vand.u32 %v2859, 2147483648
    %v2887 = vor.u32 1.1754944e-38, %v2886
    %v2888 = vsel %vm2885, %v2887, %v2883
    %v2889 = vmul.f32 1.0, %v2888
    %v2890 = vadd.f32 %v2847, %v194
    %v2891 = vmul.f32 %v2874, %v2890
    %v2892 = vadd.f32 %v2807, %v2891
    %v2893 = vtanh.pop %v2892
    %v2894 = vsub.f32 1.0, %v2889
    %v2895 = vmul.f32 %v2894, %v2893
    %v2896 = vmul.f32 %v2889, %v2641
    %v2897 = vadd.f32 %v2895, %v2896
    %v2898 = vld [vmem:[%s1] sm:$0xf]
    %v2899 = vld [vmem:[#allocation9] sm:$0xff]
    %v2900 = vld [vmem:[#allocation9 + $0x8] sm:$0xff]
    %v2901 = vld [vmem:[#allocation9 + $0x10] sm:$0xff]
    %v2902 = vld [vmem:[#allocation9 + $0x18] sm:$0xff]
    %v2903 = vld [vmem:[#allocation9 + $0x20] sm:$0xff]
    %v2904 = vld [vmem:[#allocation9 + $0x28] sm:$0xff]
    %v2905 = vld [vmem:[#allocation9 + $0x30] sm:$0xff]
    %v2906 = vld [vmem:[#allocation9 + $0x38] sm:$0xff]
    %v2907 = vld [vmem:[#allocation9 + $0x40] sm:$0xff]
    %v2908 = vld [vmem:[#allocation9 + $0x48] sm:$0xff]
    %v2909 = vld [vmem:[#allocation9 + $0x50] sm:$0xff]
    %v2910 = vld [vmem:[#allocation9 + $0x58] sm:$0xff]
    %v2911 = vld [vmem:[#allocation9 + $0x60] sm:$0xff]
    %v2912 = vld [vmem:[#allocation9 + $0x68] sm:$0xff]
    %v2913 = vld [vmem:[#allocation9 + $0x70] sm:$0xff]
    %v2914 = vld [vmem:[#allocation9 + $0x78] sm:$0xff]
    %v2915 = vld [vmem:[#allocation9 + $0x80] sm:$0xff]
    %v2916 = vld [vmem:[#allocation9 + $0x88] sm:$0xff]
    %v2917 = vld [vmem:[#allocation9 + $0x90] sm:$0xff]
    %v2918 = vld [vmem:[#allocation9 + $0x98] sm:$0xff]
    %v2919 = vld [vmem:[#allocation9 + $0xa0] sm:$0xff]
    %v2920 = vld [vmem:[#allocation9 + $0xa8] sm:$0xff]
    %v2921 = vld [vmem:[#allocation9 + $0xb0] sm:$0xff]
    %v2922 = vld [vmem:[#allocation9 + $0xb8] sm:$0xff]
    %v2923 = vld [vmem:[#allocation9 + $0xc0] sm:$0xff]
    %v2924 = vld [vmem:[#allocation9 + $0xc8] sm:$0xff]
    %v2925 = vld [vmem:[#allocation9 + $0xd0] sm:$0xff]
    %v2926 = vld [vmem:[#allocation9 + $0xd8] sm:$0xff]
    %v2927 = vld [vmem:[#allocation9 + $0xe0] sm:$0xff]
    %v2928 = vld [vmem:[#allocation9 + $0xe8] sm:$0xff]
    %v2929 = vld [vmem:[#allocation9 + $0xf0] sm:$0xff]
    %v2930 = vld [vmem:[#allocation9 + $0xf8] sm:$0xff]
    %v2931 = vpack.c.bf16 %v2897, %v2897
    %v2932 = vld [vmem:[#allocation10] sm:$0xff]
    %v2933 = vld [vmem:[#allocation10 + $0x8] sm:$0xff]
    %v2934 = vld [vmem:[#allocation10 + $0x10] sm:$0xff]
    %v2935 = vld [vmem:[#allocation10 + $0x18] sm:$0xff]
    %v2936 = vld [vmem:[#allocation10 + $0x20] sm:$0xff]
    %v2937 = vld [vmem:[#allocation10 + $0x28] sm:$0xff]
    %v2938 = vld [vmem:[#allocation10 + $0x30] sm:$0xff]
    %v2939 = vld [vmem:[#allocation10 + $0x38] sm:$0xff]
    %v2940 = vld [vmem:[#allocation10 + $0x40] sm:$0xff]
    %v2941 = vld [vmem:[#allocation10 + $0x48] sm:$0xff]
    %v2942 = vld [vmem:[#allocation10 + $0x50] sm:$0xff]
    %v2943 = vld [vmem:[#allocation10 + $0x58] sm:$0xff]
    %v2944 = vld [vmem:[#allocation10 + $0x60] sm:$0xff]
    %v2945 = vld [vmem:[#allocation10 + $0x68] sm:$0xff]
    %v2946 = vld [vmem:[#allocation10 + $0x70] sm:$0xff]
    %v2947 = vld [vmem:[#allocation10 + $0x78] sm:$0xff]
    %v2948 = vld [vmem:[#allocation10 + $0x80] sm:$0xff]
    %v2949 = vld [vmem:[#allocation10 + $0x88] sm:$0xff]
    %v2950 = vld [vmem:[#allocation10 + $0x90] sm:$0xff]
    %v2951 = vld [vmem:[#allocation10 + $0x98] sm:$0xff]
    %v2952 = vld [vmem:[#allocation10 + $0xa0] sm:$0xff]
    %v2953 = vld [vmem:[#allocation10 + $0xa8] sm:$0xff]
    %v2954 = vld [vmem:[#allocation10 + $0xb0] sm:$0xff]
    %v2955 = vld [vmem:[#allocation10 + $0xb8] sm:$0xff]
    %v2956 = vld [vmem:[#allocation10 + $0xc0] sm:$0xff]
    %v2957 = vld [vmem:[#allocation10 + $0xc8] sm:$0xff]
    %v2958 = vld [vmem:[#allocation10 + $0xd0] sm:$0xff]
    %v2959 = vld [vmem:[#allocation10 + $0xd8] sm:$0xff]
    %v2960 = vld [vmem:[#allocation10 + $0xe0] sm:$0xff]
    %v2961 = vld [vmem:[#allocation10 + $0xe8] sm:$0xff]
    %v2962 = vld [vmem:[#allocation10 + $0xf0] sm:$0xff]
    %v2963 = vld [vmem:[#allocation10 + $0xf8] sm:$0xff]
    %v2996 = vunpack.c.l.b16 %v2932
    %v2997 = vunpack.c.h.b16 %v2932
    %v2998 = vunpack.c.l.b16 %v2933
    %v2999 = vunpack.c.h.b16 %v2933
    %v3000 = vunpack.c.l.b16 %v2934
    %v3001 = vunpack.c.h.b16 %v2934
    %v3002 = vunpack.c.l.b16 %v2935
    %v3003 = vunpack.c.h.b16 %v2935
    %v3004 = vunpack.c.l.b16 %v2936
    %v3005 = vunpack.c.h.b16 %v2936
    %v3006 = vunpack.c.l.b16 %v2937
    %v3007 = vunpack.c.h.b16 %v2937
    %v3008 = vunpack.c.l.b16 %v2938
    %v3009 = vunpack.c.h.b16 %v2938
    %v3010 = vunpack.c.l.b16 %v2939
    %v3011 = vunpack.c.h.b16 %v2939
    %v3012 = vunpack.c.l.b16 %v2940
    %v3013 = vunpack.c.h.b16 %v2940
    %v3014 = vunpack.c.l.b16 %v2941
    %v3015 = vunpack.c.h.b16 %v2941
    %v3016 = vunpack.c.l.b16 %v2942
    %v3017 = vunpack.c.h.b16 %v2942
    %v3018 = vunpack.c.l.b16 %v2943
    %v3019 = vunpack.c.h.b16 %v2943
    %v3020 = vunpack.c.l.b16 %v2944
    %v3021 = vunpack.c.h.b16 %v2944
    %v3022 = vunpack.c.l.b16 %v2945
    %v3023 = vunpack.c.h.b16 %v2945
    %v3024 = vunpack.c.l.b16 %v2946
    %v3025 = vunpack.c.h.b16 %v2946
    %v3026 = vunpack.c.l.b16 %v2947
    %v3027 = vunpack.c.h.b16 %v2947
    %v3028 = vunpack.c.l.b16 %v2948
    %v3029 = vunpack.c.h.b16 %v2948
    %v3030 = vunpack.c.l.b16 %v2949
    %v3031 = vunpack.c.h.b16 %v2949
    %v3032 = vunpack.c.l.b16 %v2950
    %v3033 = vunpack.c.h.b16 %v2950
    %v3034 = vunpack.c.l.b16 %v2951
    %v3035 = vunpack.c.h.b16 %v2951
    %v3036 = vunpack.c.l.b16 %v2952
    %v3037 = vunpack.c.h.b16 %v2952
    %v3038 = vunpack.c.l.b16 %v2953
    %v3039 = vunpack.c.h.b16 %v2953
    %v3040 = vunpack.c.l.b16 %v2954
    %v3041 = vunpack.c.h.b16 %v2954
    %v3042 = vunpack.c.l.b16 %v2955
    %v3043 = vunpack.c.h.b16 %v2955
    %v3044 = vunpack.c.l.b16 %v2956
    %v3045 = vunpack.c.h.b16 %v2956
    %v3046 = vunpack.c.l.b16 %v2957
    %v3047 = vunpack.c.h.b16 %v2957
    %v3048 = vunpack.c.l.b16 %v2958
    %v3049 = vunpack.c.h.b16 %v2958
    %v3050 = vunpack.c.l.b16 %v2959
    %v3051 = vunpack.c.h.b16 %v2959
    %v3052 = vunpack.c.l.b16 %v2960
    %v3053 = vunpack.c.h.b16 %v2960
    %v3054 = vunpack.c.l.b16 %v2961
    %v3055 = vunpack.c.h.b16 %v2961
    %v3056 = vunpack.c.l.b16 %v2962
    %v3057 = vunpack.c.h.b16 %v2962
    %v3058 = vunpack.c.l.b16 %v2963
    %v3059 = vunpack.c.h.b16 %v2963
    %v3060 = vpack.c.b16 %v3000, %v2996
    %v3061 = vpack.c.b16 %v3001, %v2997
    %v3062 = vpack.c.b16 %v3002, %v2998
    %v3063 = vpack.c.b16 %v3003, %v2999
    %v3064 = vpack.c.b16 %v3008, %v3004
    %v3065 = vpack.c.b16 %v3009, %v3005
    %v3066 = vpack.c.b16 %v3010, %v3006
    %v3067 = vpack.c.b16 %v3011, %v3007
    %v3068 = vpack.c.b16 %v3016, %v3012
    %v3069 = vpack.c.b16 %v3017, %v3013
    %v3070 = vpack.c.b16 %v3018, %v3014
    %v3071 = vpack.c.b16 %v3019, %v3015
    %v3072 = vpack.c.b16 %v3024, %v3020
    %v3073 = vpack.c.b16 %v3025, %v3021
    %v3074 = vpack.c.b16 %v3026, %v3022
    %v3075 = vpack.c.b16 %v3027, %v3023
    %v3076 = vpack.c.b16 %v3032, %v3028
    %v3077 = vpack.c.b16 %v3033, %v3029
    %v3078 = vpack.c.b16 %v3034, %v3030
    %v3079 = vpack.c.b16 %v3035, %v3031
    %v3080 = vpack.c.b16 %v3040, %v3036
    %v3081 = vpack.c.b16 %v3041, %v3037
    %v3082 = vpack.c.b16 %v3042, %v3038
    %v3083 = vpack.c.b16 %v3043, %v3039
    %v3084 = vpack.c.b16 %v3048, %v3044
    %v3085 = vpack.c.b16 %v3049, %v3045
    %v3086 = vpack.c.b16 %v3050, %v3046
    %v3087 = vpack.c.b16 %v3051, %v3047
    %v3088 = vpack.c.b16 %v3056, %v3052
    %v3089 = vpack.c.b16 %v3057, %v3053
    %v3090 = vpack.c.b16 %v3058, %v3054
    %v3091 = vpack.c.b16 %v3059, %v3055
    %3124 = vmatpush.bf16.msra.mxu0 %v3088
    %3125 = vmatpush.bf16.msra.mxu0 %v3084
    %3126 = vmatpush.bf16.msra.mxu0 %v3080
    %3127 = vmatpush.bf16.msra.mxu0 %v3076
    %3128 = vmatpush.bf16.msra.mxu0 %v3072
    %3129 = vmatpush.bf16.msra.mxu0 %v3068
    %3130 = vmatpush.bf16.msra.mxu0 %v3064
    %3131 = vmatpush.bf16.msra.mxu0 %v3060
    %3132 = vmatmul.bf16.gmra.mxu0 %v2931
    %v3133 = vpop.f32.mrf.mxu0
    %v3134 = vadd.f32 0.0, %v3133
    %v3135 = vpop.f32.mrf.mxu0
    %3136 = vdwg.mxu0
    %3137 = vmatpush.bf16.msra.mxu0 %v3089
    %3138 = vmatpush.bf16.msra.mxu0 %v3085
    %3139 = vmatpush.bf16.msra.mxu0 %v3081
    %3140 = vmatpush.bf16.msra.mxu0 %v3077
    %3141 = vmatpush.bf16.msra.mxu0 %v3073
    %3142 = vmatpush.bf16.msra.mxu0 %v3069
    %3143 = vmatpush.bf16.msra.mxu0 %v3065
    %3144 = vmatpush.bf16.msra.mxu0 %v3061
    %3145 = vmatmul.bf16.gmra.mxu0 %v2931
    %v3146 = vpop.f32.mrf.mxu0
    %v3147 = vadd.f32 0.0, %v3146
    %v3148 = vpop.f32.mrf.mxu0
    %3149 = vdwg.mxu0
    %3150 = vmatpush.bf16.msra.mxu0 %v3090
    %3151 = vmatpush.bf16.msra.mxu0 %v3086
    %3152 = vmatpush.bf16.msra.mxu0 %v3082
    %3153 = vmatpush.bf16.msra.mxu0 %v3078
    %3154 = vmatpush.bf16.msra.mxu0 %v3074
    %3155 = vmatpush.bf16.msra.mxu0 %v3070
    %3156 = vmatpush.bf16.msra.mxu0 %v3066
    %3157 = vmatpush.bf16.msra.mxu0 %v3062
    %3158 = vmatmul.bf16.gmra.mxu0 %v2931
    %v3159 = vpop.f32.mrf.mxu0
    %v3160 = vadd.f32 0.0, %v3159
    %v3161 = vpop.f32.mrf.mxu0
    %3162 = vdwg.mxu0
    %3163 = vmatpush.bf16.msra.mxu0 %v3091
    %3164 = vmatpush.bf16.msra.mxu0 %v3087
    %3165 = vmatpush.bf16.msra.mxu0 %v3083
    %3166 = vmatpush.bf16.msra.mxu0 %v3079
    %3167 = vmatpush.bf16.msra.mxu0 %v3075
    %3168 = vmatpush.bf16.msra.mxu0 %v3071
    %3169 = vmatpush.bf16.msra.mxu0 %v3067
    %3170 = vmatpush.bf16.msra.mxu0 %v3063
    %3171 = vmatmul.bf16.gmra.mxu0 %v2931
    %v3172 = vpop.f32.mrf.mxu0
    %v3173 = vadd.f32 0.0, %v3172
    %v3174 = vpop.f32.mrf.mxu0
    %3175 = vdwg.mxu0
    %v3208 = vunpack.c.l.b16 %v2899
    %v3209 = vunpack.c.h.b16 %v2899
    %v3210 = vunpack.c.l.b16 %v2900
    %v3211 = vunpack.c.h.b16 %v2900
    %v3212 = vunpack.c.l.b16 %v2901
    %v3213 = vunpack.c.h.b16 %v2901
    %v3214 = vunpack.c.l.b16 %v2902
    %v3215 = vunpack.c.h.b16 %v2902
    %v3216 = vunpack.c.l.b16 %v2903
    %v3217 = vunpack.c.h.b16 %v2903
    %v3218 = vunpack.c.l.b16 %v2904
    %v3219 = vunpack.c.h.b16 %v2904
    %v3220 = vunpack.c.l.b16 %v2905
    %v3221 = vunpack.c.h.b16 %v2905
    %v3222 = vunpack.c.l.b16 %v2906
    %v3223 = vunpack.c.h.b16 %v2906
    %v3224 = vunpack.c.l.b16 %v2907
    %v3225 = vunpack.c.h.b16 %v2907
    %v3226 = vunpack.c.l.b16 %v2908
    %v3227 = vunpack.c.h.b16 %v2908
    %v3228 = vunpack.c.l.b16 %v2909
    %v3229 = vunpack.c.h.b16 %v2909
    %v3230 = vunpack.c.l.b16 %v2910
    %v3231 = vunpack.c.h.b16 %v2910
    %v3232 = vunpack.c.l.b16 %v2911
    %v3233 = vunpack.c.h.b16 %v2911
    %v3234 = vunpack.c.l.b16 %v2912
    %v3235 = vunpack.c.h.b16 %v2912
    %v3236 = vunpack.c.l.b16 %v2913
    %v3237 = vunpack.c.h.b16 %v2913
    %v3238 = vunpack.c.l.b16 %v2914
    %v3239 = vunpack.c.h.b16 %v2914
    %v3240 = vunpack.c.l.b16 %v2915
    %v3241 = vunpack.c.h.b16 %v2915
    %v3242 = vunpack.c.l.b16 %v2916
    %v3243 = vunpack.c.h.b16 %v2916
    %v3244 = vunpack.c.l.b16 %v2917
    %v3245 = vunpack.c.h.b16 %v2917
    %v3246 = vunpack.c.l.b16 %v2918
    %v3247 = vunpack.c.h.b16 %v2918
    %v3248 = vunpack.c.l.b16 %v2919
    %v3249 = vunpack.c.h.b16 %v2919
    %v3250 = vunpack.c.l.b16 %v2920
    %v3251 = vunpack.c.h.b16 %v2920
    %v3252 = vunpack.c.l.b16 %v2921
    %v3253 = vunpack.c.h.b16 %v2921
    %v3254 = vunpack.c.l.b16 %v2922
    %v3255 = vunpack.c.h.b16 %v2922
    %v3256 = vunpack.c.l.b16 %v2923
    %v3257 = vunpack.c.h.b16 %v2923
    %v3258 = vunpack.c.l.b16 %v2924
    %v3259 = vunpack.c.h.b16 %v2924
    %v3260 = vunpack.c.l.b16 %v2925
    %v3261 = vunpack.c.h.b16 %v2925
    %v3262 = vunpack.c.l.b16 %v2926
    %v3263 = vunpack.c.h.b16 %v2926
    %v3264 = vunpack.c.l.b16 %v2927
    %v3265 = vunpack.c.h.b16 %v2927
    %v3266 = vunpack.c.l.b16 %v2928
    %v3267 = vunpack.c.h.b16 %v2928
    %v3268 = vunpack.c.l.b16 %v2929
    %v3269 = vunpack.c.h.b16 %v2929
    %v3270 = vunpack.c.l.b16 %v2930
    %v3271 = vunpack.c.h.b16 %v2930
    %v3272 = vpack.c.b16 %v3212, %v3208
    %v3273 = vpack.c.b16 %v3213, %v3209
    %v3274 = vpack.c.b16 %v3214, %v3210
    %v3275 = vpack.c.b16 %v3215, %v3211
    %v3276 = vpack.c.b16 %v3220, %v3216
    %v3277 = vpack.c.b16 %v3221, %v3217
    %v3278 = vpack.c.b16 %v3222, %v3218
    %v3279 = vpack.c.b16 %v3223, %v3219
    %v3280 = vpack.c.b16 %v3228, %v3224
    %v3281 = vpack.c.b16 %v3229, %v3225
    %v3282 = vpack.c.b16 %v3230, %v3226
    %v3283 = vpack.c.b16 %v3231, %v3227
    %v3284 = vpack.c.b16 %v3236, %v3232
    %v3285 = vpack.c.b16 %v3237, %v3233
    %v3286 = vpack.c.b16 %v3238, %v3234
    %v3287 = vpack.c.b16 %v3239, %v3235
    %v3288 = vpack.c.b16 %v3244, %v3240
    %v3289 = vpack.c.b16 %v3245, %v3241
    %v3290 = vpack.c.b16 %v3246, %v3242
    %v3291 = vpack.c.b16 %v3247, %v3243
    %v3292 = vpack.c.b16 %v3252, %v3248
    %v3293 = vpack.c.b16 %v3253, %v3249
    %v3294 = vpack.c.b16 %v3254, %v3250
    %v3295 = vpack.c.b16 %v3255, %v3251
    %v3296 = vpack.c.b16 %v3260, %v3256
    %v3297 = vpack.c.b16 %v3261, %v3257
    %v3298 = vpack.c.b16 %v3262, %v3258
    %v3299 = vpack.c.b16 %v3263, %v3259
    %v3300 = vpack.c.b16 %v3268, %v3264
    %v3301 = vpack.c.b16 %v3269, %v3265
    %v3302 = vpack.c.b16 %v3270, %v3266
    %v3303 = vpack.c.b16 %v3271, %v3267
    %3336 = vmatpush.bf16.msra.mxu0 %v3300
    %3337 = vmatpush.bf16.msra.mxu0 %v3296
    %3338 = vmatpush.bf16.msra.mxu0 %v3292
    %3339 = vmatpush.bf16.msra.mxu0 %v3288
    %3340 = vmatpush.bf16.msra.mxu0 %v3284
    %3341 = vmatpush.bf16.msra.mxu0 %v3280
    %3342 = vmatpush.bf16.msra.mxu0 %v3276
    %3343 = vmatpush.bf16.msra.mxu0 %v3272
    %3344 = vmatmul.bf16.gmra.mxu0 %v2898
    %v3345 = vpop.f32.mrf.mxu0
    %v3346 = vadd.f32 %v3134, %v3345
    %v3347 = vpop.f32.mrf.mxu0
    %3348 = vdwg.mxu0
    %3349 = vmatpush.bf16.msra.mxu0 %v3301
    %3350 = vmatpush.bf16.msra.mxu0 %v3297
    %3351 = vmatpush.bf16.msra.mxu0 %v3293
    %3352 = vmatpush.bf16.msra.mxu0 %v3289
    %3353 = vmatpush.bf16.msra.mxu0 %v3285
    %3354 = vmatpush.bf16.msra.mxu0 %v3281
    %3355 = vmatpush.bf16.msra.mxu0 %v3277
    %3356 = vmatpush.bf16.msra.mxu0 %v3273
    %3357 = vmatmul.bf16.gmra.mxu0 %v2898
    %v3358 = vpop.f32.mrf.mxu0
    %v3359 = vadd.f32 %v3147, %v3358
    %v3360 = vpop.f32.mrf.mxu0
    %3361 = vdwg.mxu0
    %3362 = vmatpush.bf16.msra.mxu0 %v3302
    %3363 = vmatpush.bf16.msra.mxu0 %v3298
    %3364 = vmatpush.bf16.msra.mxu0 %v3294
    %3365 = vmatpush.bf16.msra.mxu0 %v3290
    %3366 = vmatpush.bf16.msra.mxu0 %v3286
    %3367 = vmatpush.bf16.msra.mxu0 %v3282
    %3368 = vmatpush.bf16.msra.mxu0 %v3278
    %3369 = vmatpush.bf16.msra.mxu0 %v3274
    %3370 = vmatmul.bf16.gmra.mxu0 %v2898
    %v3371 = vpop.f32.mrf.mxu0
    %v3372 = vadd.f32 %v3160, %v3371
    %v3373 = vpop.f32.mrf.mxu0
    %3374 = vdwg.mxu0
    %3375 = vmatpush.bf16.msra.mxu0 %v3303
    %3376 = vmatpush.bf16.msra.mxu0 %v3299
    %3377 = vmatpush.bf16.msra.mxu0 %v3295
    %3378 = vmatpush.bf16.msra.mxu0 %v3291
    %3379 = vmatpush.bf16.msra.mxu0 %v3287
    %3380 = vmatpush.bf16.msra.mxu0 %v3283
    %3381 = vmatpush.bf16.msra.mxu0 %v3279
    %3382 = vmatpush.bf16.msra.mxu0 %v3275
    %3383 = vmatmul.bf16.gmra.mxu0 %v2898
    %v3384 = vpop.f32.mrf.mxu0
    %v3385 = vadd.f32 %v3173, %v3384
    %v3386 = vpop.f32.mrf.mxu0
    %3387 = vdwg.mxu0
    %v3388 = vld [vmem:[%s12] sm:$0xf]
    %v3390 = vperm.slane %v3388, 0
    %v3391 = vperm.slane %v3388, 1
    %v3392 = vperm.slane %v3388, 2
    %v3393 = vperm.slane %v3388, 3
    %v3398 = vadd.f32 %v3346, %v3390
    %v3399 = vadd.f32 %v3359, %v3391
    %v3400 = vadd.f32 %v3372, %v3392
    %v3401 = vadd.f32 %v3385, %v3393
    %v3402 = vpack.c.bf16 %v3398, %v3398
    %v3403 = vpack.c.bf16 %v3399, %v3399
    %v3404 = vpack.c.bf16 %v3400, %v3400
    %v3405 = vpack.c.bf16 %v3401, %v3401
    %v3406 = vld [vmem:[#allocation12] sm:$0xff]
    %v3407 = vld [vmem:[#allocation12 + $0x8] sm:$0xff]
    %v3408 = vld [vmem:[#allocation12 + $0x10] sm:$0xff]
    %v3409 = vld [vmem:[#allocation12 + $0x18] sm:$0xff]
    %v3410 = vld [vmem:[#allocation12 + $0x20] sm:$0xff]
    %v3411 = vld [vmem:[#allocation12 + $0x28] sm:$0xff]
    %v3412 = vld [vmem:[#allocation12 + $0x30] sm:$0xff]
    %v3413 = vld [vmem:[#allocation12 + $0x38] sm:$0xff]
    %v3414 = vld [vmem:[#allocation12 + $0x40] sm:$0xff]
    %v3415 = vld [vmem:[#allocation12 + $0x48] sm:$0xff]
    %v3416 = vld [vmem:[#allocation12 + $0x50] sm:$0xff]
    %v3417 = vld [vmem:[#allocation12 + $0x58] sm:$0xff]
    %v3418 = vld [vmem:[#allocation12 + $0x60] sm:$0xff]
    %v3419 = vld [vmem:[#allocation12 + $0x68] sm:$0xff]
    %v3420 = vld [vmem:[#allocation12 + $0x70] sm:$0xff]
    %v3421 = vld [vmem:[#allocation12 + $0x78] sm:$0xff]
    %v3422 = vld [vmem:[#allocation12 + $0x80] sm:$0xff]
    %v3423 = vld [vmem:[#allocation12 + $0x88] sm:$0xff]
    %v3424 = vld [vmem:[#allocation12 + $0x90] sm:$0xff]
    %v3425 = vld [vmem:[#allocation12 + $0x98] sm:$0xff]
    %v3426 = vld [vmem:[#allocation12 + $0xa0] sm:$0xff]
    %v3427 = vld [vmem:[#allocation12 + $0xa8] sm:$0xff]
    %v3428 = vld [vmem:[#allocation12 + $0xb0] sm:$0xff]
    %v3429 = vld [vmem:[#allocation12 + $0xb8] sm:$0xff]
    %v3430 = vld [vmem:[#allocation12 + $0xc0] sm:$0xff]
    %v3431 = vld [vmem:[#allocation12 + $0xc8] sm:$0xff]
    %v3432 = vld [vmem:[#allocation12 + $0xd0] sm:$0xff]
    %v3433 = vld [vmem:[#allocation12 + $0xd8] sm:$0xff]
    %v3434 = vld [vmem:[#allocation12 + $0xe0] sm:$0xff]
    %v3435 = vld [vmem:[#allocation12 + $0xe8] sm:$0xff]
    %v3436 = vld [vmem:[#allocation12 + $0xf0] sm:$0xff]
    %v3437 = vld [vmem:[#allocation12 + $0xf8] sm:$0xff]
    %v3438 = vld [vmem:[#allocation12 + $0x100] sm:$0xff]
    %v3439 = vld [vmem:[#allocation12 + $0x108] sm:$0xff]
    %v3440 = vld [vmem:[#allocation12 + $0x110] sm:$0xff]
    %v3441 = vld [vmem:[#allocation12 + $0x118] sm:$0xff]
    %v3442 = vld [vmem:[#allocation12 + $0x120] sm:$0xff]
    %v3443 = vld [vmem:[#allocation12 + $0x128] sm:$0xff]
    %v3444 = vld [vmem:[#allocation12 + $0x130] sm:$0xff]
    %v3445 = vld [vmem:[#allocation12 + $0x138] sm:$0xff]
    %v3446 = vld [vmem:[#allocation12 + $0x140] sm:$0xff]
    %v3447 = vld [vmem:[#allocation12 + $0x148] sm:$0xff]
    %v3448 = vld [vmem:[#allocation12 + $0x150] sm:$0xff]
    %v3449 = vld [vmem:[#allocation12 + $0x158] sm:$0xff]
    %v3450 = vld [vmem:[#allocation12 + $0x160] sm:$0xff]
    %v3451 = vld [vmem:[#allocation12 + $0x168] sm:$0xff]
    %v3452 = vld [vmem:[#allocation12 + $0x170] sm:$0xff]
    %v3453 = vld [vmem:[#allocation12 + $0x178] sm:$0xff]
    %v3454 = vld [vmem:[#allocation12 + $0x180] sm:$0xff]
    %v3455 = vld [vmem:[#allocation12 + $0x188] sm:$0xff]
    %v3456 = vld [vmem:[#allocation12 + $0x190] sm:$0xff]
    %v3457 = vld [vmem:[#allocation12 + $0x198] sm:$0xff]
    %v3458 = vld [vmem:[#allocation12 + $0x1a0] sm:$0xff]
    %v3459 = vld [vmem:[#allocation12 + $0x1a8] sm:$0xff]
    %v3460 = vld [vmem:[#allocation12 + $0x1b0] sm:$0xff]
    %v3461 = vld [vmem:[#allocation12 + $0x1b8] sm:$0xff]
    %v3462 = vld [vmem:[#allocation12 + $0x1c0] sm:$0xff]
    %v3463 = vld [vmem:[#allocation12 + $0x1c8] sm:$0xff]
    %v3464 = vld [vmem:[#allocation12 + $0x1d0] sm:$0xff]
    %v3465 = vld [vmem:[#allocation12 + $0x1d8] sm:$0xff]
    %v3466 = vld [vmem:[#allocation12 + $0x1e0] sm:$0xff]
    %v3467 = vld [vmem:[#allocation12 + $0x1e8] sm:$0xff]
    %v3468 = vld [vmem:[#allocation12 + $0x1f0] sm:$0xff]
    %v3469 = vld [vmem:[#allocation12 + $0x1f8] sm:$0xff]
    %v3470 = vld [vmem:[%s14] sm:$0x3]
    %v3472 = vperm.slane %v3470, 0
    %v3473 = vperm.slane %v3470, 1
    %v3540 = vunpack.c.l.b16 %v3406
    %v3541 = vunpack.c.h.b16 %v3406
    %v3542 = vunpack.c.l.b16 %v3407
    %v3543 = vunpack.c.h.b16 %v3407
    %v3544 = vunpack.c.l.b16 %v3408
    %v3545 = vunpack.c.h.b16 %v3408
    %v3546 = vunpack.c.l.b16 %v3409
    %v3547 = vunpack.c.h.b16 %v3409
    %v3548 = vunpack.c.l.b16 %v3410
    %v3549 = vunpack.c.h.b16 %v3410
    %v3550 = vunpack.c.l.b16 %v3411
    %v3551 = vunpack.c.h.b16 %v3411
    %v3552 = vunpack.c.l.b16 %v3412
    %v3553 = vunpack.c.h.b16 %v3412
    %v3554 = vunpack.c.l.b16 %v3413
    %v3555 = vunpack.c.h.b16 %v3413
    %v3556 = vunpack.c.l.b16 %v3414
    %v3557 = vunpack.c.h.b16 %v3414
    %v3558 = vunpack.c.l.b16 %v3415
    %v3559 = vunpack.c.h.b16 %v3415
    %v3560 = vunpack.c.l.b16 %v3416
    %v3561 = vunpack.c.h.b16 %v3416
    %v3562 = vunpack.c.l.b16 %v3417
    %v3563 = vunpack.c.h.b16 %v3417
    %v3564 = vunpack.c.l.b16 %v3418
    %v3565 = vunpack.c.h.b16 %v3418
    %v3566 = vunpack.c.l.b16 %v3419
    %v3567 = vunpack.c.h.b16 %v3419
    %v3568 = vunpack.c.l.b16 %v3420
    %v3569 = vunpack.c.h.b16 %v3420
    %v3570 = vunpack.c.l.b16 %v3421
    %v3571 = vunpack.c.h.b16 %v3421
    %v3572 = vunpack.c.l.b16 %v3422
    %v3573 = vunpack.c.h.b16 %v3422
    %v3574 = vunpack.c.l.b16 %v3423
    %v3575 = vunpack.c.h.b16 %v3423
    %v3576 = vunpack.c.l.b16 %v3424
    %v3577 = vunpack.c.h.b16 %v3424
    %v3578 = vunpack.c.l.b16 %v3425
    %v3579 = vunpack.c.h.b16 %v3425
    %v3580 = vunpack.c.l.b16 %v3426
    %v3581 = vunpack.c.h.b16 %v3426
    %v3582 = vunpack.c.l.b16 %v3427
    %v3583 = vunpack.c.h.b16 %v3427
    %v3584 = vunpack.c.l.b16 %v3428
    %v3585 = vunpack.c.h.b16 %v3428
    %v3586 = vunpack.c.l.b16 %v3429
    %v3587 = vunpack.c.h.b16 %v3429
    %v3588 = vunpack.c.l.b16 %v3430
    %v3589 = vunpack.c.h.b16 %v3430
    %v3590 = vunpack.c.l.b16 %v3431
    %v3591 = vunpack.c.h.b16 %v3431
    %v3592 = vunpack.c.l.b16 %v3432
    %v3593 = vunpack.c.h.b16 %v3432
    %v3594 = vunpack.c.l.b16 %v3433
    %v3595 = vunpack.c.h.b16 %v3433
    %v3596 = vunpack.c.l.b16 %v3434
    %v3597 = vunpack.c.h.b16 %v3434
    %v3598 = vunpack.c.l.b16 %v3435
    %v3599 = vunpack.c.h.b16 %v3435
    %v3600 = vunpack.c.l.b16 %v3436
    %v3601 = vunpack.c.h.b16 %v3436
    %v3602 = vunpack.c.l.b16 %v3437
    %v3603 = vunpack.c.h.b16 %v3437
    %v3604 = vunpack.c.l.b16 %v3438
    %v3605 = vunpack.c.h.b16 %v3438
    %v3606 = vunpack.c.l.b16 %v3439
    %v3607 = vunpack.c.h.b16 %v3439
    %v3608 = vunpack.c.l.b16 %v3440
    %v3609 = vunpack.c.h.b16 %v3440
    %v3610 = vunpack.c.l.b16 %v3441
    %v3611 = vunpack.c.h.b16 %v3441
    %v3612 = vunpack.c.l.b16 %v3442
    %v3613 = vunpack.c.h.b16 %v3442
    %v3614 = vunpack.c.l.b16 %v3443
    %v3615 = vunpack.c.h.b16 %v3443
    %v3616 = vunpack.c.l.b16 %v3444
    %v3617 = vunpack.c.h.b16 %v3444
    %v3618 = vunpack.c.l.b16 %v3445
    %v3619 = vunpack.c.h.b16 %v3445
    %v3620 = vunpack.c.l.b16 %v3446
    %v3621 = vunpack.c.h.b16 %v3446
    %v3622 = vunpack.c.l.b16 %v3447
    %v3623 = vunpack.c.h.b16 %v3447
    %v3624 = vunpack.c.l.b16 %v3448
    %v3625 = vunpack.c.h.b16 %v3448
    %v3626 = vunpack.c.l.b16 %v3449
    %v3627 = vunpack.c.h.b16 %v3449
    %v3628 = vunpack.c.l.b16 %v3450
    %v3629 = vunpack.c.h.b16 %v3450
    %v3630 = vunpack.c.l.b16 %v3451
    %v3631 = vunpack.c.h.b16 %v3451
    %v3632 = vunpack.c.l.b16 %v3452
    %v3633 = vunpack.c.h.b16 %v3452
    %v3634 = vunpack.c.l.b16 %v3453
    %v3635 = vunpack.c.h.b16 %v3453
    %v3636 = vunpack.c.l.b16 %v3454
    %v3637 = vunpack.c.h.b16 %v3454
    %v3638 = vunpack.c.l.b16 %v3455
    %v3639 = vunpack.c.h.b16 %v3455
    %v3640 = vunpack.c.l.b16 %v3456
    %v3641 = vunpack.c.h.b16 %v3456
    %v3642 = vunpack.c.l.b16 %v3457
    %v3643 = vunpack.c.h.b16 %v3457
    %v3644 = vunpack.c.l.b16 %v3458
    %v3645 = vunpack.c.h.b16 %v3458
    %v3646 = vunpack.c.l.b16 %v3459
    %v3647 = vunpack.c.h.b16 %v3459
    %v3648 = vunpack.c.l.b16 %v3460
    %v3649 = vunpack.c.h.b16 %v3460
    %v3650 = vunpack.c.l.b16 %v3461
    %v3651 = vunpack.c.h.b16 %v3461
    %v3652 = vunpack.c.l.b16 %v3462
    %v3653 = vunpack.c.h.b16 %v3462
    %v3654 = vunpack.c.l.b16 %v3463
    %v3655 = vunpack.c.h.b16 %v3463
    %v3656 = vunpack.c.l.b16 %v3464
    %v3657 = vunpack.c.h.b16 %v3464
    %v3658 = vunpack.c.l.b16 %v3465
    %v3659 = vunpack.c.h.b16 %v3465
    %v3660 = vunpack.c.l.b16 %v3466
    %v3661 = vunpack.c.h.b16 %v3466
    %v3662 = vunpack.c.l.b16 %v3467
    %v3663 = vunpack.c.h.b16 %v3467
    %v3664 = vunpack.c.l.b16 %v3468
    %v3665 = vunpack.c.h.b16 %v3468
    %v3666 = vunpack.c.l.b16 %v3469
    %v3667 = vunpack.c.h.b16 %v3469
    %v3668 = vpack.c.b16 %v3542, %v3540
    %v3669 = vpack.c.b16 %v3543, %v3541
    %v3670 = vpack.c.b16 %v3546, %v3544
    %v3671 = vpack.c.b16 %v3547, %v3545
    %v3672 = vpack.c.b16 %v3550, %v3548
    %v3673 = vpack.c.b16 %v3551, %v3549
    %v3674 = vpack.c.b16 %v3554, %v3552
    %v3675 = vpack.c.b16 %v3555, %v3553
    %v3676 = vpack.c.b16 %v3558, %v3556
    %v3677 = vpack.c.b16 %v3559, %v3557
    %v3678 = vpack.c.b16 %v3562, %v3560
    %v3679 = vpack.c.b16 %v3563, %v3561
    %v3680 = vpack.c.b16 %v3566, %v3564
    %v3681 = vpack.c.b16 %v3567, %v3565
    %v3682 = vpack.c.b16 %v3570, %v3568
    %v3683 = vpack.c.b16 %v3571, %v3569
    %v3684 = vpack.c.b16 %v3574, %v3572
    %v3685 = vpack.c.b16 %v3575, %v3573
    %v3686 = vpack.c.b16 %v3578, %v3576
    %v3687 = vpack.c.b16 %v3579, %v3577
    %v3688 = vpack.c.b16 %v3582, %v3580
    %v3689 = vpack.c.b16 %v3583, %v3581
    %v3690 = vpack.c.b16 %v3586, %v3584
    %v3691 = vpack.c.b16 %v3587, %v3585
    %v3692 = vpack.c.b16 %v3590, %v3588
    %v3693 = vpack.c.b16 %v3591, %v3589
    %v3694 = vpack.c.b16 %v3594, %v3592
    %v3695 = vpack.c.b16 %v3595, %v3593
    %v3696 = vpack.c.b16 %v3598, %v3596
    %v3697 = vpack.c.b16 %v3599, %v3597
    %v3698 = vpack.c.b16 %v3602, %v3600
    %v3699 = vpack.c.b16 %v3603, %v3601
    %v3700 = vpack.c.b16 %v3606, %v3604
    %v3701 = vpack.c.b16 %v3607, %v3605
    %v3702 = vpack.c.b16 %v3610, %v3608
    %v3703 = vpack.c.b16 %v3611, %v3609
    %v3704 = vpack.c.b16 %v3614, %v3612
    %v3705 = vpack.c.b16 %v3615, %v3613
    %v3706 = vpack.c.b16 %v3618, %v3616
    %v3707 = vpack.c.b16 %v3619, %v3617
    %v3708 = vpack.c.b16 %v3622, %v3620
    %v3709 = vpack.c.b16 %v3623, %v3621
    %v3710 = vpack.c.b16 %v3626, %v3624
    %v3711 = vpack.c.b16 %v3627, %v3625
    %v3712 = vpack.c.b16 %v3630, %v3628
    %v3713 = vpack.c.b16 %v3631, %v3629
    %v3714 = vpack.c.b16 %v3634, %v3632
    %v3715 = vpack.c.b16 %v3635, %v3633
    %v3716 = vpack.c.b16 %v3638, %v3636
    %v3717 = vpack.c.b16 %v3639, %v3637
    %v3718 = vpack.c.b16 %v3642, %v3640
    %v3719 = vpack.c.b16 %v3643, %v3641
    %v3720 = vpack.c.b16 %v3646, %v3644
    %v3721 = vpack.c.b16 %v3647, %v3645
    %v3722 = vpack.c.b16 %v3650, %v3648
    %v3723 = vpack.c.b16 %v3651, %v3649
    %v3724 = vpack.c.b16 %v3654, %v3652
    %v3725 = vpack.c.b16 %v3655, %v3653
    %v3726 = vpack.c.b16 %v3658, %v3656
    %v3727 = vpack.c.b16 %v3659, %v3657
    %v3728 = vpack.c.b16 %v3662, %v3660
    %v3729 = vpack.c.b16 %v3663, %v3661
    %v3730 = vpack.c.b16 %v3666, %v3664
    %v3731 = vpack.c.b16 %v3667, %v3665
    %3796 = vmatpush.bf16.msra.mxu0 %v3682
    %3797 = vmatpush.bf16.msra.mxu0 %v3680
    %3798 = vmatpush.bf16.msra.mxu0 %v3678
    %3799 = vmatpush.bf16.msra.mxu0 %v3676
    %3800 = vmatpush.bf16.msra.mxu0 %v3674
    %3801 = vmatpush.bf16.msra.mxu0 %v3672
    %3802 = vmatpush.bf16.msra.mxu0 %v3670
    %3803 = vmatpush.bf16.msra.mxu0 %v3668
    %3804 = vmatmul.bf16.gmra.mxu0 %v3402
    %v3805 = vpop.f32.mrf.mxu0
    %v3806 = vadd.f32 %v3472, %v3805
    %v3807 = vpop.f32.mrf.mxu0
    %3808 = vdwg.mxu0
    %3809 = vmatpush.bf16.msra.mxu0 %v3698
    %3810 = vmatpush.bf16.msra.mxu0 %v3696
    %3811 = vmatpush.bf16.msra.mxu0 %v3694
    %3812 = vmatpush.bf16.msra.mxu0 %v3692
    %3813 = vmatpush.bf16.msra.mxu0 %v3690
    %3814 = vmatpush.bf16.msra.mxu0 %v3688
    %3815 = vmatpush.bf16.msra.mxu0 %v3686
    %3816 = vmatpush.bf16.msra.mxu0 %v3684
    %3817 = vmatmul.bf16.gmra.mxu0 %v3403
    %v3818 = vpop.f32.mrf.mxu0
    %v3819 = vadd.f32 %v3806, %v3818
    %v3820 = vpop.f32.mrf.mxu0
    %3821 = vdwg.mxu0
    %3822 = vmatpush.bf16.msra.mxu0 %v3714
    %3823 = vmatpush.bf16.msra.mxu0 %v3712
    %3824 = vmatpush.bf16.msra.mxu0 %v3710
    %3825 = vmatpush.bf16.msra.mxu0 %v3708
    %3826 = vmatpush.bf16.msra.mxu0 %v3706
    %3827 = vmatpush.bf16.msra.mxu0 %v3704
    %3828 = vmatpush.bf16.msra.mxu0 %v3702
    %3829 = vmatpush.bf16.msra.mxu0 %v3700
    %3830 = vmatmul.bf16.gmra.mxu0 %v3404
    %v3831 = vpop.f32.mrf.mxu0
    %v3832 = vadd.f32 %v3819, %v3831
    %v3833 = vpop.f32.mrf.mxu0
    %3834 = vdwg.mxu0
    %3835 = vmatpush.bf16.msra.mxu0 %v3730
    %3836 = vmatpush.bf16.msra.mxu0 %v3728
    %3837 = vmatpush.bf16.msra.mxu0 %v3726
    %3838 = vmatpush.bf16.msra.mxu0 %v3724
    %3839 = vmatpush.bf16.msra.mxu0 %v3722
    %3840 = vmatpush.bf16.msra.mxu0 %v3720
    %3841 = vmatpush.bf16.msra.mxu0 %v3718
    %3842 = vmatpush.bf16.msra.mxu0 %v3716
    %3843 = vmatmul.bf16.gmra.mxu0 %v3405
    %v3844 = vpop.f32.mrf.mxu0
    %v3845 = vadd.f32 %v3832, %v3844
    %v3846 = vpop.f32.mrf.mxu0
    %3847 = vdwg.mxu0
    %3848 = vmatpush.bf16.msra.mxu0 %v3683
    %3849 = vmatpush.bf16.msra.mxu0 %v3681
    %3850 = vmatpush.bf16.msra.mxu0 %v3679
    %3851 = vmatpush.bf16.msra.mxu0 %v3677
    %3852 = vmatpush.bf16.msra.mxu0 %v3675
    %3853 = vmatpush.bf16.msra.mxu0 %v3673
    %3854 = vmatpush.bf16.msra.mxu0 %v3671
    %3855 = vmatpush.bf16.msra.mxu0 %v3669
    %3856 = vmatmul.bf16.gmra.mxu0 %v3402
    %v3857 = vpop.f32.mrf.mxu0
    %v3858 = vadd.f32 %v3473, %v3857
    %v3859 = vpop.f32.mrf.mxu0
    %3860 = vdwg.mxu0
    %3861 = vmatpush.bf16.msra.mxu0 %v3699
    %3862 = vmatpush.bf16.msra.mxu0 %v3697
    %3863 = vmatpush.bf16.msra.mxu0 %v3695
    %3864 = vmatpush.bf16.msra.mxu0 %v3693
    %3865 = vmatpush.bf16.msra.mxu0 %v3691
    %3866 = vmatpush.bf16.msra.mxu0 %v3689
    %3867 = vmatpush.bf16.msra.mxu0 %v3687
    %3868 = vmatpush.bf16.msra.mxu0 %v3685
    %3869 = vmatmul.bf16.gmra.mxu0 %v3403
    %v3870 = vpop.f32.mrf.mxu0
    %v3871 = vadd.f32 %v3858, %v3870
    %v3872 = vpop.f32.mrf.mxu0
    %3873 = vdwg.mxu0
    %3874 = vmatpush.bf16.msra.mxu0 %v3715
    %3875 = vmatpush.bf16.msra.mxu0 %v3713
    %3876 = vmatpush.bf16.msra.mxu0 %v3711
    %3877 = vmatpush.bf16.msra.mxu0 %v3709
    %3878 = vmatpush.bf16.msra.mxu0 %v3707
    %3879 = vmatpush.bf16.msra.mxu0 %v3705
    %3880 = vmatpush.bf16.msra.mxu0 %v3703
    %3881 = vmatpush.bf16.msra.mxu0 %v3701
    %3882 = vmatmul.bf16.gmra.mxu0 %v3404
    %v3883 = vpop.f32.mrf.mxu0
    %v3884 = vadd.f32 %v3871, %v3883
    %v3885 = vpop.f32.mrf.mxu0
    %3886 = vdwg.mxu0
    %3887 = vmatpush.bf16.msra.mxu0 %v3731
    %3888 = vmatpush.bf16.msra.mxu0 %v3729
    %3889 = vmatpush.bf16.msra.mxu0 %v3727
    %3890 = vmatpush.bf16.msra.mxu0 %v3725
    %3891 = vmatpush.bf16.msra.mxu0 %v3723
    %3892 = vmatpush.bf16.msra.mxu0 %v3721
    %3893 = vmatpush.bf16.msra.mxu0 %v3719
    %3894 = vmatpush.bf16.msra.mxu0 %v3717
    %3895 = vmatmul.bf16.gmra.mxu0 %v3405
    %v3896 = vpop.f32.mrf.mxu0
    %v3897 = vadd.f32 %v3884, %v3896
    %v3898 = vpop.f32.mrf.mxu0
    %3899 = vdwg.mxu0
    %v3900 = vmax.f32 %v3845, 0.0
    %v3901 = vmax.f32 %v3897, 0.0
    %v3902 = vpack.c.bf16 %v3900, %v3900
    %v3903 = vpack.c.bf16 %v3901, %v3901
    %v3904 = vld [vmem:[#allocation13] sm:$0xf]
    %v3905 = vld [vmem:[#allocation13 + $0x4] sm:$0xf]
    %v3906 = vld [vmem:[#allocation13 + $0x8] sm:$0xf]
    %v3907 = vld [vmem:[#allocation13 + $0xc] sm:$0xf]
    %v3908 = vld [vmem:[#allocation13 + $0x10] sm:$0xf]
    %v3909 = vld [vmem:[#allocation13 + $0x14] sm:$0xf]
    %v3910 = vld [vmem:[#allocation13 + $0x18] sm:$0xf]
    %v3911 = vld [vmem:[#allocation13 + $0x1c] sm:$0xf]
    %v3912 = vld [vmem:[#allocation13 + $0x20] sm:$0xf]
    %v3913 = vld [vmem:[#allocation13 + $0x24] sm:$0xf]
    %v3914 = vld [vmem:[#allocation13 + $0x28] sm:$0xf]
    %v3915 = vld [vmem:[#allocation13 + $0x2c] sm:$0xf]
    %v3916 = vld [vmem:[#allocation13 + $0x30] sm:$0xf]
    %v3917 = vld [vmem:[#allocation13 + $0x34] sm:$0xf]
    %v3918 = vld [vmem:[#allocation13 + $0x38] sm:$0xf]
    %v3919 = vld [vmem:[#allocation13 + $0x3c] sm:$0xf]
    %v3920 = vld [vmem:[#allocation13 + $0x40] sm:$0xf]
    %v3921 = vld [vmem:[#allocation13 + $0x44] sm:$0xf]
    %v3922 = vld [vmem:[#allocation13 + $0x48] sm:$0xf]
    %v3923 = vld [vmem:[#allocation13 + $0x4c] sm:$0xf]
    %v3924 = vld [vmem:[#allocation13 + $0x50] sm:$0xf]
    %v3925 = vld [vmem:[#allocation13 + $0x54] sm:$0xf]
    %v3926 = vld [vmem:[#allocation13 + $0x58] sm:$0xf]
    %v3927 = vld [vmem:[#allocation13 + $0x5c] sm:$0xf]
    %v3928 = vld [vmem:[#allocation13 + $0x60] sm:$0xf]
    %v3929 = vld [vmem:[#allocation13 + $0x64] sm:$0xf]
    %v3930 = vld [vmem:[#allocation13 + $0x68] sm:$0xf]
    %v3931 = vld [vmem:[#allocation13 + $0x6c] sm:$0xf]
    %v3932 = vld [vmem:[#allocation13 + $0x70] sm:$0xf]
    %v3933 = vld [vmem:[#allocation13 + $0x74] sm:$0xf]
    %v3934 = vld [vmem:[#allocation13 + $0x78] sm:$0xf]
    %v3935 = vld [vmem:[#allocation13 + $0x7c] sm:$0xf]
    %v3936 = vld [vmem:[%s16] sm:$0x1]
    %v3938 = vperm.slane %v3936, 0
    %v3972 = vunpack.c.l.b16 %v3904
    %v3973 = vunpack.c.l.b16 %v3905
    %v3974 = vunpack.c.l.b16 %v3906
    %v3975 = vunpack.c.l.b16 %v3907
    %v3976 = vunpack.c.l.b16 %v3908
    %v3977 = vunpack.c.l.b16 %v3909
    %v3978 = vunpack.c.l.b16 %v3910
    %v3979 = vunpack.c.l.b16 %v3911
    %v3980 = vunpack.c.l.b16 %v3912
    %v3981 = vunpack.c.l.b16 %v3913
    %v3982 = vunpack.c.l.b16 %v3914
    %v3983 = vunpack.c.l.b16 %v3915
    %v3984 = vunpack.c.l.b16 %v3916
    %v3985 = vunpack.c.l.b16 %v3917
    %v3986 = vunpack.c.l.b16 %v3918
    %v3987 = vunpack.c.l.b16 %v3919
    %v3988 = vunpack.c.l.b16 %v3920
    %v3989 = vunpack.c.l.b16 %v3921
    %v3990 = vunpack.c.l.b16 %v3922
    %v3991 = vunpack.c.l.b16 %v3923
    %v3992 = vunpack.c.l.b16 %v3924
    %v3993 = vunpack.c.l.b16 %v3925
    %v3994 = vunpack.c.l.b16 %v3926
    %v3995 = vunpack.c.l.b16 %v3927
    %v3996 = vunpack.c.l.b16 %v3928
    %v3997 = vunpack.c.l.b16 %v3929
    %v3998 = vunpack.c.l.b16 %v3930
    %v3999 = vunpack.c.l.b16 %v3931
    %v4000 = vunpack.c.l.b16 %v3932
    %v4001 = vunpack.c.l.b16 %v3933
    %v4002 = vunpack.c.l.b16 %v3934
    %v4003 = vunpack.c.l.b16 %v3935
    %v4004 = vpack.c.b16 %v3973, %v3972
    %v4005 = vpack.c.b16 %v3975, %v3974
    %v4006 = vpack.c.b16 %v3977, %v3976
    %v4007 = vpack.c.b16 %v3979, %v3978
    %v4008 = vpack.c.b16 %v3981, %v3980
    %v4009 = vpack.c.b16 %v3983, %v3982
    %v4010 = vpack.c.b16 %v3985, %v3984
    %v4011 = vpack.c.b16 %v3987, %v3986
    %v4012 = vpack.c.b16 %v3989, %v3988
    %v4013 = vpack.c.b16 %v3991, %v3990
    %v4014 = vpack.c.b16 %v3993, %v3992
    %v4015 = vpack.c.b16 %v3995, %v3994
    %v4016 = vpack.c.b16 %v3997, %v3996
    %v4017 = vpack.c.b16 %v3999, %v3998
    %v4018 = vpack.c.b16 %v4001, %v4000
    %v4019 = vpack.c.b16 %v4003, %v4002
    %4036 = vmatpush.bf16.msra.mxu0 %v4011
    %4037 = vmatpush.bf16.msra.mxu0 %v4010
    %4038 = vmatpush.bf16.msra.mxu0 %v4009
    %4039 = vmatpush.bf16.msra.mxu0 %v4008
    %4040 = vmatpush.bf16.msra.mxu0 %v4007
    %4041 = vmatpush.bf16.msra.mxu0 %v4006
    %4042 = vmatpush.bf16.msra.mxu0 %v4005
    %4043 = vmatpush.bf16.msra.mxu0 %v4004
    %4044 = vmatmul.bf16.gmra.mxu0 %v3902
    %v4045 = vpop.f32.mrf.mxu0
    %v4046 = vadd.f32 %v3938, %v4045
    %v4047 = vpop.f32.mrf.mxu0
    %4048 = vdwg.mxu0
    %4049 = vmatpush.bf16.msra.mxu0 %v4019
    %4050 = vmatpush.bf16.msra.mxu0 %v4018
    %4051 = vmatpush.bf16.msra.mxu0 %v4017
    %4052 = vmatpush.bf16.msra.mxu0 %v4016
    %4053 = vmatpush.bf16.msra.mxu0 %v4015
    %4054 = vmatpush.bf16.msra.mxu0 %v4014
    %4055 = vmatpush.bf16.msra.mxu0 %v4013
    %4056 = vmatpush.bf16.msra.mxu0 %v4012
    %4057 = vmatmul.bf16.gmra.mxu0 %v3903
    %v4058 = vpop.f32.mrf.mxu0
    %v4059 = vadd.f32 %v4046, %v4058
    %v4060 = vpop.f32.mrf.mxu0
    %4061 = vdwg.mxu0
    %v4062 = vmax.f32 %v4059, 0.0
    %v4063 = vpack.c.bf16 %v4062, %v4062
    %v4064 = vld [vmem:[%s17] sm:$0xf]
    %v4065 = vld [vmem:[%s17 + $0x4] sm:$0xf]
    %v4066 = vld [vmem:[%s17 + $0x8] sm:$0xf]
    %v4067 = vld [vmem:[%s17 + $0xc] sm:$0xf]
    %v4068 = vld [vmem:[%s17 + $0x10] sm:$0xf]
    %v4069 = vld [vmem:[%s17 + $0x14] sm:$0xf]
    %v4070 = vld [vmem:[%s17 + $0x18] sm:$0xf]
    %v4071 = vld [vmem:[%s17 + $0x1c] sm:$0xf]
    %v4072 = vld [vmem:[%s17 + $0x20] sm:$0xf]
    %v4073 = vld [vmem:[%s17 + $0x24] sm:$0xf]
    %v4074 = vld [vmem:[%s17 + $0x28] sm:$0xf]
    %v4075 = vld [vmem:[%s17 + $0x2c] sm:$0xf]
    %v4076 = vld [vmem:[%s17 + $0x30] sm:$0xf]
    %v4077 = vld [vmem:[%s17 + $0x34] sm:$0xf]
    %v4078 = vld [vmem:[%s17 + $0x38] sm:$0xf]
    %v4079 = vld [vmem:[%s17 + $0x3c] sm:$0xf]
    %v4080 = vld [vmem:[%s18] sm:$0x1]
    %v4082 = vperm.slane %v4080, 0
    %v4100 = vunpack.c.l.b16 %v4064
    %v4101 = vunpack.c.l.b16 %v4065
    %v4102 = vunpack.c.l.b16 %v4066
    %v4103 = vunpack.c.l.b16 %v4067
    %v4104 = vunpack.c.l.b16 %v4068
    %v4105 = vunpack.c.l.b16 %v4069
    %v4106 = vunpack.c.l.b16 %v4070
    %v4107 = vunpack.c.l.b16 %v4071
    %v4108 = vunpack.c.l.b16 %v4072
    %v4109 = vunpack.c.l.b16 %v4073
    %v4110 = vunpack.c.l.b16 %v4074
    %v4111 = vunpack.c.l.b16 %v4075
    %v4112 = vunpack.c.l.b16 %v4076
    %v4113 = vunpack.c.l.b16 %v4077
    %v4114 = vunpack.c.l.b16 %v4078
    %v4115 = vunpack.c.l.b16 %v4079
    %v4116 = vpack.c.b16 %v4101, %v4100
    %v4117 = vpack.c.b16 %v4103, %v4102
    %v4118 = vpack.c.b16 %v4105, %v4104
    %v4119 = vpack.c.b16 %v4107, %v4106
    %v4120 = vpack.c.b16 %v4109, %v4108
    %v4121 = vpack.c.b16 %v4111, %v4110
    %v4122 = vpack.c.b16 %v4113, %v4112
    %v4123 = vpack.c.b16 %v4115, %v4114
    %4132 = vmatpush.bf16.msra.mxu0 %v4123
    %4133 = vmatpush.bf16.msra.mxu0 %v4122
    %4134 = vmatpush.bf16.msra.mxu0 %v4121
    %4135 = vmatpush.bf16.msra.mxu0 %v4120
    %4136 = vmatpush.bf16.msra.mxu0 %v4119
    %4137 = vmatpush.bf16.msra.mxu0 %v4118
    %4138 = vmatpush.bf16.msra.mxu0 %v4117
    %4139 = vmatpush.bf16.msra.mxu0 %v4116
    %4140 = vmatmul.bf16.gmra.mxu0 %v4063
    %v4141 = vpop.f32.mrf.mxu0
    %v4142 = vadd.f32 %v4082, %v4141
    %v4143 = vpop.f32.mrf.mxu0
    %4144 = vdwg.mxu0
    %4145 = vmax.xlane.f32.xlu0 %v4142
    %v4146 = vpop.xlane.xlu0 %4145
    %v4147 = vsub.f32 %v4142, %v4146
    %v4148 = vmul.f32 %v4147, 1.442695
    %v4149 = vpow.pop %v4148
    %4150 = vadd.xlane.f32.xlu0 %v4149
    %v4151 = vpop.xlane.xlu0 %4150
    %v4152 = vlog2.pop %v4151
    %v4153 = vmul.f32 %v4152, 0.6931472
    %v4154 = vadd.f32 %v4146, %v4153
    %v4155 = vsub.f32 %v4142, %v4154
    %4156 = vst [vmem:[%s19] sm:$0xff] %v4155
    // Predicated region
    $region110: #{_lambda_.1} parent=1 // pred_check
      _
    $region111: #{_lambda_.1} parent=1 // pred_check_branch
      %4158 = sbr.rel (0) target = $region113
    $region112: #{_lambda_.1} parent=1 // pred_region
      _
    $region113: #{_lambda_.1} parent=1 // pred_fallthru
      _
    // Predicated region
    $region114: #{_lambda_.1} parent=1 // pred_check
      _
    $region115: #{_lambda_.1} parent=1 // pred_check_branch
      %4160 = sbr.rel (0) target = $region117
    $region116: #{_lambda_.1} parent=1 // pred_region
      _
    $region117: #{_lambda_.1} parent=1 // pred_fallthru
      _
    %4161 = vsyncpa [#allocation3], 1
    %4162 = vsyncpa [#allocation5], 1
    %4163 = vsyncpa [#allocation8], 1
    %4164 = vsyncpa [#allocation11], 1
    %4165 = vsyncpa [#allocation14], 1

</llo_original>
